<compile_context>
chip_gen: v6e
topology: v6e:2x2x1
jax: 0.10.0
libtpu: 0.0.40
codegen_flags: <defaults>
</compile_context>

<pallas_src>
import functools
import math

import numpy as np
import jax
import jax.numpy as jnp
from jax.experimental import pallas as pl
from jax.experimental.pallas import tpu as pltpu

# dtype fed to the MXU (weights stored in this dtype; accumulation is f32).
MXU_DTYPE = jnp.bfloat16


# ------------------------------ tile helpers --------------------------------

def _pick_tile(dim, target, align):
    """Largest tile <= target that divides `dim` and is a multiple of `align`.
    Falls back to the full dim when no aligned divisor exists (small shapes)."""
    if dim <= target:
        return dim
    if dim % align:
        return dim
    t = (target // align) * align
    while t > 0 and dim % t:
        t -= align
    return t if t > 0 else dim


# --------------------------- fused linear kernel -----------------------------
# out = [residual +] [relu](  [LN](x) @ W + b  )
# grid = (M/tm, N/tn); K (= d_model or 4*d_model) kept as a full block so the
# LayerNorm prologue sees whole rows.

def _fused_linear_kernel(*refs, ln, relu, residual, eps):
    i = 0
    x_ref = refs[i]; i += 1
    w_ref = refs[i]; i += 1
    b_ref = refs[i]; i += 1
    if ln:
        g_ref = refs[i]; i += 1
        bt_ref = refs[i]; i += 1
    if residual:
        r_ref = refs[i]; i += 1
    o_ref = refs[i]

    x = x_ref[...]                                   # (tm, K) f32
    if ln:
        mu = jnp.mean(x, axis=-1, keepdims=True)
        var = jnp.mean(jnp.square(x - mu), axis=-1, keepdims=True)
        x = (x - mu) * jax.lax.rsqrt(var + eps) * g_ref[...] + bt_ref[...]
    y = jnp.dot(x.astype(MXU_DTYPE), w_ref[...].astype(MXU_DTYPE),
                preferred_element_type=jnp.float32)
    y = y + b_ref[...]
    if relu:
        y = jnp.maximum(y, 0.0)
    if residual:
        y = y + r_ref[...]
    o_ref[...] = y


def fused_linear(x, w, b, *, gamma=None, beta=None, residual=None,
                 relu=False, eps=1e-5, tm_target=256, tn_target=512):
    M, K = x.shape
    N = w.shape[1]
    tm = _pick_tile(M, tm_target, 8)
    tn = _pick_tile(N, tn_target, 128)
    ln = gamma is not None
    res = residual is not None

    inputs = [x, w, b.reshape(1, N)]
    in_specs = [
        pl.BlockSpec((tm, K), lambda i, j: (i, 0)),
        pl.BlockSpec((K, tn), lambda i, j: (0, j)),
        pl.BlockSpec((1, tn), lambda i, j: (0, j)),
    ]
    if ln:
        inputs += [gamma.reshape(1, K), beta.reshape(1, K)]
        in_specs += [pl.BlockSpec((1, K), lambda i, j: (0, 0)),
                     pl.BlockSpec((1, K), lambda i, j: (0, 0))]
    if res:
        inputs.append(residual)
        in_specs.append(pl.BlockSpec((tm, tn), lambda i, j: (i, j)))

    kern = functools.partial(_fused_linear_kernel, ln=ln, relu=relu,
                             residual=res, eps=eps)
    return pl.pallas_call(
        kern,
        out_shape=jax.ShapeDtypeStruct((M, N), jnp.float32),
        grid=(M // tm, N // tn),
        in_specs=in_specs,
        out_specs=pl.BlockSpec((tm, tn), lambda i, j: (i, j)),
        compiler_params=pltpu.CompilerParams(
            dimension_semantics=("parallel", "parallel")),
    )(*inputs)


# ------------------------------- fused FFN -----------------------------------
# out = x + relu(LN(x) @ W1 + b1) @ W2 + b2   — 4*D hidden stays in VMEM.

def _ffn_kernel(x_ref, g_ref, bt_ref, w1_ref, b1_ref, w2_ref, b2_ref, o_ref,
                *, eps):
    x = x_ref[...]                                   # (tm, D) f32
    mu = jnp.mean(x, axis=-1, keepdims=True)
    var = jnp.mean(jnp.square(x - mu), axis=-1, keepdims=True)
    xln = (x - mu) * jax.lax.rsqrt(var + eps) * g_ref[...] + bt_ref[...]
    h = jnp.dot(xln.astype(MXU_DTYPE), w1_ref[...].astype(MXU_DTYPE),
                preferred_element_type=jnp.float32) + b1_ref[...]
    h = jnp.maximum(h, 0.0)
    y = jnp.dot(h.astype(MXU_DTYPE), w2_ref[...].astype(MXU_DTYPE),
                preferred_element_type=jnp.float32) + b2_ref[...]
    o_ref[...] = x + y                               # residual


def fused_ffn(x, gamma, beta, w1, b1, w2, b2, *, eps=1e-5, tm_target=256):
    M, D = x.shape
    H = w1.shape[1]
    tm = _pick_tile(M, tm_target, 8)
    kern = functools.partial(_ffn_kernel, eps=eps)
    return pl.pallas_call(
        kern,
        out_shape=jax.ShapeDtypeStruct((M, D), jnp.float32),
        grid=(M // tm,),
        in_specs=[
            pl.BlockSpec((tm, D), lambda i: (i, 0)),
            pl.BlockSpec((1, D), lambda i: (0, 0)),
            pl.BlockSpec((1, D), lambda i: (0, 0)),
            pl.BlockSpec((D, H), lambda i: (0, 0)),
            pl.BlockSpec((1, H), lambda i: (0, 0)),
            pl.BlockSpec((H, D), lambda i: (0, 0)),
            pl.BlockSpec((1, D), lambda i: (0, 0)),
        ],
        out_specs=pl.BlockSpec((tm, D), lambda i: (i, 0)),
        compiler_params=pltpu.CompilerParams(
            dimension_semantics=("parallel",)),
    )(x, gamma.reshape(1, D), beta.reshape(1, D),
      w1, b1.reshape(1, H), w2, b2.reshape(1, D))


# ----------------------------- attention kernel ------------------------------
# One grid step per batch element, all heads processed inside; output is the
# lane-dense (Sq, D) merged-head layout.  Mask built in-kernel from the int32
# pad vector (+ causal triangle via broadcasted_iota).

def _attention_kernel(*refs, n_head, dh, scale, causal, split_qkv):
    d = n_head * dh
    if split_qkv:
        qkv_ref, pad_ref, o_ref = refs
        q = qkv_ref[0, :, 0:d]                       # (Sq, D)
        kmat = qkv_ref[0, :, d:2 * d]                # (Sk, D)
        vmat = qkv_ref[0, :, 2 * d:3 * d]            # (Sk, D)
    else:
        q_ref, kv_ref, pad_ref, o_ref = refs
        q = q_ref[0]
        kmat = kv_ref[0, :, 0:d]
        vmat = kv_ref[0, :, d:2 * d]

    sq, sk = q.shape[0], kmat.shape[0]
    pad = pad_ref[0]                                 # (1, Sk) int32
    masked = jnp.broadcast_to(pad > 0, (sq, sk))
    if causal:
        row = jax.lax.broadcasted_iota(jnp.int32, (sq, sk), 0)
        col = jax.lax.broadcasted_iota(jnp.int32, (sq, sk), 1)
        masked = jnp.logical_or(masked, col > row)

    outs = []
    for h in range(n_head):                          # static unroll over heads
        qh = q[:, h * dh:(h + 1) * dh].astype(MXU_DTYPE)
        kh = kmat[:, h * dh:(h + 1) * dh].astype(MXU_DTYPE)
        vh = vmat[:, h * dh:(h + 1) * dh].astype(MXU_DTYPE)
        s = jax.lax.dot_general(qh, kh, (((1,), (1,)), ((), ())),
                                preferred_element_type=jnp.float32)
        # masked_fill(-1e9) happens BEFORE the /sqrt(dk) scaling, exactly as in
        # the reference torch code — do not "fix" the order.
        s = jnp.where(masked, -1e9, s)
        s = s * scale
        s = s - jnp.max(s, axis=-1, keepdims=True)
        e = jnp.exp(s)
        p = e * pl.reciprocal(jnp.sum(e, axis=-1, keepdims=True), approx=True)
        outs.append(jnp.dot(p.astype(MXU_DTYPE), vh,
                            preferred_element_type=jnp.float32))
    o_ref[0] = jnp.concatenate(outs, axis=-1)        # lane-dense (Sq, D) store


def self_attention(qkv, pad, *, n_head, causal, scale):
    # qkv: (B, S, 3D) from the fused QKV GEMM;  pad: (B, 1, S) int32.
    B, S, D3 = qkv.shape
    D = D3 // 3
    kern = functools.partial(_attention_kernel, n_head=n_head, dh=D // n_head,
                             scale=scale, causal=causal, split_qkv=True)
    return pl.pallas_call(
        kern,
        out_shape=jax.ShapeDtypeStruct((B, S, D), jnp.float32),
        grid=(B,),
        in_specs=[
            pl.BlockSpec((1, S, D3), lambda b: (b, 0, 0)),
            pl.BlockSpec((1, 1, S), lambda b: (b, 0, 0)),
        ],
        out_specs=pl.BlockSpec((1, S, D), lambda b: (b, 0, 0)),
        compiler_params=pltpu.CompilerParams(dimension_semantics=("parallel",)),
    )(qkv, pad)


def cross_attention(q, kv, pad, *, n_head, scale):
    # q: (B, Sq, D);  kv: (B, Sk, 2D);  pad: (B, 1, Sk) int32.
    B, Sq, D = q.shape
    Sk = kv.shape[1]
    kern = functools.partial(_attention_kernel, n_head=n_head, dh=D // n_head,
                             scale=scale, causal=False, split_qkv=False)
    return pl.pallas_call(
        kern,
        out_shape=jax.ShapeDtypeStruct((B, Sq, D), jnp.float32),
        grid=(B,),
        in_specs=[
            pl.BlockSpec((1, Sq, D), lambda b: (b, 0, 0)),
            pl.BlockSpec((1, Sk, 2 * D), lambda b: (b, 0, 0)),
            pl.BlockSpec((1, 1, Sk), lambda b: (b, 0, 0)),
        ],
        out_specs=pl.BlockSpec((1, Sq, D), lambda b: (b, 0, 0)),
        compiler_params=pltpu.CompilerParams(dimension_semantics=("parallel",)),
    )(q, kv, pad)


# ------------------------------ forward pass ---------------------------------

def transformer_forward(params, src_tokens, prev_tgt_tokens, cfg):
    d_model, n_head = cfg['d_model'], cfg['n_head']
    B, Ss = src_tokens.shape
    St = prev_tgt_tokens.shape[1]
    scale = 1.0 / math.sqrt(d_model // n_head)
    pe = params['pos_encode']

    src_pad = (src_tokens == cfg['src_pdx']).astype(jnp.int32).reshape(B, 1, Ss)
    tgt_pad = (prev_tgt_tokens == cfg['tgt_pdx']).astype(jnp.int32).reshape(B, 1, St)

    # ----- Encoder -----
    x = jnp.take(params['src_embed'], src_tokens, axis=0) * math.sqrt(d_model)
    x = x + pe[:Ss][None]
    x2d = x.reshape(B * Ss, d_model)
    for lp in params['enc_layers']:
        a = lp['attn']
        qkv = fused_linear(x2d, a['w_qkv'], a['b_qkv'],
                           gamma=lp['ln1_g'], beta=lp['ln1_b'])
        attn = self_attention(qkv.reshape(B, Ss, 3 * d_model), src_pad,
                              n_head=n_head, causal=False, scale=scale)
        x2d = fused_linear(attn.reshape(B * Ss, d_model), a['wo'], a['bo'],
                           residual=x2d)
        f = lp['ffn']
        x2d = fused_ffn(x2d, lp['ln2_g'], lp['ln2_b'],
                        f['w1'], f['b1'], f['w2'], f['b2'])
    # Encoder's final LayerNorm is fused into every decoder context-KV GEMM
    # below, so keep the pre-norm activations here.
    memory2d = x2d

    # ----- Decoder -----
    y = jnp.take(params['tgt_embed'], prev_tgt_tokens, axis=0) * math.sqrt(d_model)
    y = y + pe[:St][None]
    y2d = y.reshape(B * St, d_model)
    for lp in params['dec_layers']:
        sa = lp['self_attn']
        qkv = fused_linear(y2d, sa['w_qkv'], sa['b_qkv'],
                           gamma=lp['ln1_g'], beta=lp['ln1_b'])
        attn = self_attention(qkv.reshape(B, St, 3 * d_model), tgt_pad,
                              n_head=n_head, causal=True, scale=scale)
        y2d = fused_linear(attn.reshape(B * St, d_model), sa['wo'], sa['bo'],
                           residual=y2d)

        ca = lp['ctx_attn']
        q = fused_linear(y2d, ca['wq'], ca['bq'],
                         gamma=lp['ln2_g'], beta=lp['ln2_b'])
        kv = fused_linear(memory2d, ca['w_kv'], ca['b_kv'],
                          gamma=params['enc_ln_g'], beta=params['enc_ln_b'])
        attn = cross_attention(q.reshape(B, St, d_model),
                               kv.reshape(B, Ss, 2 * d_model), src_pad,
                               n_head=n_head, scale=scale)
        y2d = fused_linear(attn.reshape(B * St, d_model), ca['wo'], ca['bo'],
                           residual=y2d)

        f = lp['ffn']
        y2d = fused_ffn(y2d, lp['ln3_g'], lp['ln3_b'],
                        f['w1'], f['b1'], f['w2'], f['b2'])

    # Output vocab projection (tiled over M and the vocab dim).
    logits = fused_linear(y2d, params['out_w'], params['out_b'])
    return logits.reshape(B, St, -1)


# ----------------------------- parameter init --------------------------------

def _xavier(key, shape):
    limit = math.sqrt(6.0 / (shape[0] + shape[1]))
    return jax.random.uniform(key, shape, jnp.float32, -limit, limit)


def _init_linear(key, din, dout):
    kw, kb = jax.random.split(key)
    w = _xavier(kw, (din, dout))
    bound = 1.0 / math.sqrt(din)
    b = jax.random.uniform(kb, (dout,), jnp.float32, -bound, bound)
    return w, b


def _init_mha_self(key, d):
    ks = jax.random.split(key, 4)
    wq, bq = _init_linear(ks[0], d, d)
    wk, bk = _init_linear(ks[1], d, d)
    wv, bv = _init_linear(ks[2], d, d)
    wo, bo = _init_linear(ks[3], d, d)
    return dict(
        w_qkv=jnp.concatenate([wq, wk, wv], axis=1).astype(MXU_DTYPE),
        b_qkv=jnp.concatenate([bq, bk, bv]),
        wo=wo.astype(MXU_DTYPE), bo=bo)


def _init_mha_cross(key, d):
    ks = jax.random.split(key, 4)
    wq, bq = _init_linear(ks[0], d, d)
    wk, bk = _init_linear(ks[1], d, d)
    wv, bv = _init_linear(ks[2], d, d)
    wo, bo = _init_linear(ks[3], d, d)
    return dict(
        wq=wq.astype(MXU_DTYPE), bq=bq,
        w_kv=jnp.concatenate([wk, wv], axis=1).astype(MXU_DTYPE),
        b_kv=jnp.concatenate([bk, bv]),
        wo=wo.astype(MXU_DTYPE), bo=bo)


def _init_ffn(key, d):
    k1, k2 = jax.random.split(key)
    w1, b1 = _init_linear(k1, d, 4 * d)
    w2, b2 = _init_linear(k2, 4 * d, d)
    return dict(w1=w1.astype(MXU_DTYPE), b1=b1,
                w2=w2.astype(MXU_DTYPE), b2=b2)


def _init_encoder_layer(key, d):
    k1, k2 = jax.random.split(key)
    return dict(
        ln1_g=jnp.ones(d, jnp.float32), ln1_b=jnp.zeros(d, jnp.float32),
        attn=_init_mha_self(k1, d),
        ln2_g=jnp.ones(d, jnp.float32), ln2_b=jnp.zeros(d, jnp.float32),
        ffn=_init_ffn(k2, d),
    )


def _init_decoder_layer(key, d):
    k1, k2, k3 = jax.random.split(key, 3)
    return dict(
        ln1_g=jnp.ones(d, jnp.float32), ln1_b=jnp.zeros(d, jnp.float32),
        self_attn=_init_mha_self(k1, d),
        ln2_g=jnp.ones(d, jnp.float32), ln2_b=jnp.zeros(d, jnp.float32),
        ctx_attn=_init_mha_cross(k2, d),
        ln3_g=jnp.ones(d, jnp.float32), ln3_b=jnp.zeros(d, jnp.float32),
        ffn=_init_ffn(k3, d),
    )


def _get_pos_encode(max_seq_len, d_model):
    pos = np.arange(max_seq_len, dtype=np.float64)[:, None]
    i = np.arange(d_model, dtype=np.float64)[None, :]
    angle = pos / np.power(10000.0, 2.0 * np.floor(i / 2.0) / d_model)
    pe = np.zeros((max_seq_len, d_model), dtype=np.float64)
    pe[:, 0::2] = np.sin(angle[:, 0::2])
    pe[:, 1::2] = np.cos(angle[:, 1::2])
    return jnp.asarray(pe, jnp.float32)


def init_params(key, cfg):
    d = cfg['d_model']
    keys = jax.random.split(key, 5)
    out_w, out_b = _init_linear(keys[4], d, cfg['n_tgt_words'])
    return dict(
        src_embed=_xavier(keys[0], (cfg['n_src_words'], d)),
        tgt_embed=_xavier(keys[1], (cfg['n_tgt_words'], d)),
        pos_encode=_get_pos_encode(cfg['max_seq_len'], d),
        enc_layers=[_init_encoder_layer(k, d)
                    for k in jax.random.split(keys[2], cfg['n_layers'])],
        enc_ln_g=jnp.ones(d, jnp.float32), enc_ln_b=jnp.zeros(d, jnp.float32),
        dec_layers=[_init_decoder_layer(k, d)
                    for k in jax.random.split(keys[3], cfg['n_layers'])],
        out_w=out_w.astype(MXU_DTYPE), out_b=out_b,
    )


# ----------------------------------- main ------------------------------------

if __name__ == "__main__":
    cfg = dict(n_src_words=50, n_tgt_words=60, src_pdx=0, tgt_pdx=0,
               d_model=32, n_head=4, n_layers=2, max_seq_len=64)

    params = init_params(jax.random.PRNGKey(0), cfg)

    B, Ss, St = 2, 8, 8
    k_src, k_tgt = jax.random.split(jax.random.PRNGKey(1))
    src_tokens = jax.random.randint(k_src, (B, Ss), 0, cfg['n_src_words'],
                                    dtype=jnp.int32)
    prev_tgt_tokens = jax.random.randint(k_tgt, (B, St), 0, cfg['n_tgt_words'],
                                         dtype=jnp.int32)

    fwd = jax.jit(lambda p, s, t: transformer_forward(p, s, t, cfg))
    out = fwd(params, src_tokens, prev_tgt_tokens)
    out = jax.block_until_ready(out)

    assert out.shape == (B, St, cfg['n_tgt_words']), out.shape
    assert bool(jnp.all(jnp.isfinite(out)))
    print("KERNEL_OK")
</pallas_src>

<mosaic_0001>
module attributes {stable_mosaic.version = 11 : i64} {
  func.func @_attention_kernel(%arg0: i32, %arg1: memref<1x8x96xf32, #tpu.memory_space<vmem>>, %arg2: memref<1x1x8xi32, #tpu.memory_space<vmem>>, %arg3: memref<1x8x32xf32, #tpu.memory_space<vmem>>) attributes {dimension_semantics = [#tpu.dimension_semantics<parallel>], iteration_bounds = array<i64: 2>, scalar_prefetch = 0 : i64, scratch_operands = 0 : i64, tpu.core_type = #tpu.core_type<tc>, window_params = [{transform_indices = @transform_0, window_bounds = array<i64: 1, 8, 96>}, {transform_indices = @transform_1, window_bounds = array<i64: 1, 1, 8>}, {transform_indices = @transform_2, window_bounds = array<i64: 1, 8, 32>}]} {
    %c0 = arith.constant 0 : index
    %c0_0 = arith.constant 0 : index
    %c0_1 = arith.constant 0 : index
    %0 = vector.load %arg1[%c0, %c0_0, %c0_1] : memref<1x8x96xf32, #tpu.memory_space<vmem>>, vector<1x8x32xf32>
    %1 = vector.shape_cast %0 : vector<1x8x32xf32> to vector<8x32xf32>
    %c0_2 = arith.constant 0 : index
    %c0_3 = arith.constant 0 : index
    %c32 = arith.constant 32 : index
    %2 = vector.load %arg1[%c0_2, %c0_3, %c32] : memref<1x8x96xf32, #tpu.memory_space<vmem>>, vector<1x8x32xf32>
    %3 = vector.shape_cast %2 : vector<1x8x32xf32> to vector<8x32xf32>
    %c0_4 = arith.constant 0 : index
    %c0_5 = arith.constant 0 : index
    %c64 = arith.constant 64 : index
    %4 = vector.load %arg1[%c0_4, %c0_5, %c64] : memref<1x8x96xf32, #tpu.memory_space<vmem>>, vector<1x8x32xf32>
    %5 = vector.shape_cast %4 : vector<1x8x32xf32> to vector<8x32xf32>
    %c0_6 = arith.constant 0 : index
    %c0_7 = arith.constant 0 : index
    %c0_8 = arith.constant 0 : index
    %6 = vector.load %arg2[%c0_6, %c0_7, %c0_8] : memref<1x1x8xi32, #tpu.memory_space<vmem>>, vector<1x1x8xi32>
    %7 = vector.shape_cast %6 : vector<1x1x8xi32> to vector<1x8xi32>
    %c0_i32 = arith.constant 0 : i32
    %8 = vector.broadcast %c0_i32 : i32 to vector<1x8xi32>
    %9 = arith.cmpi sgt, %7, %8 : vector<1x8xi32>
    %10 = vector.shape_cast %9 : vector<1x8xi1> to vector<1x8xi1>
    %11 = vector.broadcast %10 : vector<1x8xi1> to vector<8x8xi1>
    %12 = vector.extract_strided_slice %1 {offsets = [0, 0], sizes = [8, 8], strides = [1, 1]} : vector<8x32xf32> to vector<8x8xf32>
    %13 = arith.truncf %12 : vector<8x8xf32> to vector<8x8xbf16>
    %14 = vector.extract_strided_slice %3 {offsets = [0, 0], sizes = [8, 8], strides = [1, 1]} : vector<8x32xf32> to vector<8x8xf32>
    %15 = arith.truncf %14 : vector<8x8xf32> to vector<8x8xbf16>
    %16 = vector.extract_strided_slice %5 {offsets = [0, 0], sizes = [8, 8], strides = [1, 1]} : vector<8x32xf32> to vector<8x8xf32>
    %17 = arith.truncf %16 : vector<8x8xf32> to vector<8x8xbf16>
    %cst = arith.constant dense<0.000000e+00> : vector<8x8xf32>
    %18 = tpu.matmul %13, %15, %cst {dimension_numbers = #tpu.dot_dimension_numbers<[1], [1], [0], [0], [0, 0, 1, 0], [], []>} : vector<8x8xbf16>, vector<8x8xbf16>, vector<8x8xf32> -> vector<8x8xf32>
    %cst_9 = arith.constant -1.000000e+09 : f32
    %19 = vector.broadcast %cst_9 : f32 to vector<8x8xf32>
    %20 = arith.select %11, %19, %18 : vector<8x8xi1>, vector<8x8xf32>
    %cst_10 = arith.constant 0.353553385 : f32
    %21 = vector.broadcast %cst_10 : f32 to vector<8x8xf32>
    %22 = arith.mulf %20, %21 : vector<8x8xf32>
    %cst_11 = arith.constant dense<0xFF800000> : vector<8xf32>
    %23 = vector.multi_reduction <maximumf>, %22, %cst_11 [1] : vector<8x8xf32> to vector<8xf32>
    %24 = vector.shape_cast %23 : vector<8xf32> to vector<8x1xf32>
    %25 = vector.broadcast %24 : vector<8x1xf32> to vector<8x8xf32>
    %26 = arith.subf %22, %25 : vector<8x8xf32>
    %27 = math.exp %26 : vector<8x8xf32>
    %cst_12 = arith.constant dense<0.000000e+00> : vector<8xf32>
    %28 = vector.multi_reduction <add>, %27, %cst_12 [1] : vector<8x8xf32> to vector<8xf32>
    %29 = vector.shape_cast %28 : vector<8xf32> to vector<8x1xf32>
    %30 = tpu.reciprocal %29 {approx = true} : vector<8x1xf32> -> vector<8x1xf32>
    %31 = vector.broadcast %30 : vector<8x1xf32> to vector<8x8xf32>
    %32 = arith.mulf %27, %31 : vector<8x8xf32>
    %33 = arith.truncf %32 : vector<8x8xf32> to vector<8x8xbf16>
    %cst_13 = arith.constant dense<0.000000e+00> : vector<8x8xf32>
    %34 = tpu.matmul %33, %17, %cst_13 {dimension_numbers = #tpu.dot_dimension_numbers<[1], [0], [0], [1], [0, 0, 1, 1], [], []>} : vector<8x8xbf16>, vector<8x8xbf16>, vector<8x8xf32> -> vector<8x8xf32>
    %35 = vector.extract_strided_slice %1 {offsets = [0, 8], sizes = [8, 8], strides = [1, 1]} : vector<8x32xf32> to vector<8x8xf32>
    %36 = arith.truncf %35 : vector<8x8xf32> to vector<8x8xbf16>
    %37 = vector.extract_strided_slice %3 {offsets = [0, 8], sizes = [8, 8], strides = [1, 1]} : vector<8x32xf32> to vector<8x8xf32>
    %38 = arith.truncf %37 : vector<8x8xf32> to vector<8x8xbf16>
    %39 = vector.extract_strided_slice %5 {offsets = [0, 8], sizes = [8, 8], strides = [1, 1]} : vector<8x32xf32> to vector<8x8xf32>
    %40 = arith.truncf %39 : vector<8x8xf32> to vector<8x8xbf16>
    %cst_14 = arith.constant dense<0.000000e+00> : vector<8x8xf32>
    %41 = tpu.matmul %36, %38, %cst_14 {dimension_numbers = #tpu.dot_dimension_numbers<[1], [1], [0], [0], [0, 0, 1, 0], [], []>} : vector<8x8xbf16>, vector<8x8xbf16>, vector<8x8xf32> -> vector<8x8xf32>
    %cst_15 = arith.constant -1.000000e+09 : f32
    %42 = vector.broadcast %cst_15 : f32 to vector<8x8xf32>
    %43 = arith.select %11, %42, %41 : vector<8x8xi1>, vector<8x8xf32>
    %cst_16 = arith.constant 0.353553385 : f32
    %44 = vector.broadcast %cst_16 : f32 to vector<8x8xf32>
    %45 = arith.mulf %43, %44 : vector<8x8xf32>
    %cst_17 = arith.constant dense<0xFF800000> : vector<8xf32>
    %46 = vector.multi_reduction <maximumf>, %45, %cst_17 [1] : vector<8x8xf32> to vector<8xf32>
    %47 = vector.shape_cast %46 : vector<8xf32> to vector<8x1xf32>
    %48 = vector.broadcast %47 : vector<8x1xf32> to vector<8x8xf32>
    %49 = arith.subf %45, %48 : vector<8x8xf32>
    %50 = math.exp %49 : vector<8x8xf32>
    %cst_18 = arith.constant dense<0.000000e+00> : vector<8xf32>
    %51 = vector.multi_reduction <add>, %50, %cst_18 [1] : vector<8x8xf32> to vector<8xf32>
    %52 = vector.shape_cast %51 : vector<8xf32> to vector<8x1xf32>
    %53 = tpu.reciprocal %52 {approx = true} : vector<8x1xf32> -> vector<8x1xf32>
    %54 = vector.broadcast %53 : vector<8x1xf32> to vector<8x8xf32>
    %55 = arith.mulf %50, %54 : vector<8x8xf32>
    %56 = arith.truncf %55 : vector<8x8xf32> to vector<8x8xbf16>
    %cst_19 = arith.constant dense<0.000000e+00> : vector<8x8xf32>
    %57 = tpu.matmul %56, %40, %cst_19 {dimension_numbers = #tpu.dot_dimension_numbers<[1], [0], [0], [1], [0, 0, 1, 1], [], []>} : vector<8x8xbf16>, vector<8x8xbf16>, vector<8x8xf32> -> vector<8x8xf32>
    %58 = vector.extract_strided_slice %1 {offsets = [0, 16], sizes = [8, 8], strides = [1, 1]} : vector<8x32xf32> to vector<8x8xf32>
    %59 = arith.truncf %58 : vector<8x8xf32> to vector<8x8xbf16>
    %60 = vector.extract_strided_slice %3 {offsets = [0, 16], sizes = [8, 8], strides = [1, 1]} : vector<8x32xf32> to vector<8x8xf32>
    %61 = arith.truncf %60 : vector<8x8xf32> to vector<8x8xbf16>
    %62 = vector.extract_strided_slice %5 {offsets = [0, 16], sizes = [8, 8], strides = [1, 1]} : vector<8x32xf32> to vector<8x8xf32>
    %63 = arith.truncf %62 : vector<8x8xf32> to vector<8x8xbf16>
    %cst_20 = arith.constant dense<0.000000e+00> : vector<8x8xf32>
    %64 = tpu.matmul %59, %61, %cst_20 {dimension_numbers = #tpu.dot_dimension_numbers<[1], [1], [0], [0], [0, 0, 1, 0], [], []>} : vector<8x8xbf16>, vector<8x8xbf16>, vector<8x8xf32> -> vector<8x8xf32>
    %cst_21 = arith.constant -1.000000e+09 : f32
    %65 = vector.broadcast %cst_21 : f32 to vector<8x8xf32>
    %66 = arith.select %11, %65, %64 : vector<8x8xi1>, vector<8x8xf32>
    %cst_22 = arith.constant 0.353553385 : f32
    %67 = vector.broadcast %cst_22 : f32 to vector<8x8xf32>
    %68 = arith.mulf %66, %67 : vector<8x8xf32>
    %cst_23 = arith.constant dense<0xFF800000> : vector<8xf32>
    %69 = vector.multi_reduction <maximumf>, %68, %cst_23 [1] : vector<8x8xf32> to vector<8xf32>
    %70 = vector.shape_cast %69 : vector<8xf32> to vector<8x1xf32>
    %71 = vector.broadcast %70 : vector<8x1xf32> to vector<8x8xf32>
    %72 = arith.subf %68, %71 : vector<8x8xf32>
    %73 = math.exp %72 : vector<8x8xf32>
    %cst_24 = arith.constant dense<0.000000e+00> : vector<8xf32>
    %74 = vector.multi_reduction <add>, %73, %cst_24 [1] : vector<8x8xf32> to vector<8xf32>
    %75 = vector.shape_cast %74 : vector<8xf32> to vector<8x1xf32>
    %76 = tpu.reciprocal %75 {approx = true} : vector<8x1xf32> -> vector<8x1xf32>
    %77 = vector.broadcast %76 : vector<8x1xf32> to vector<8x8xf32>
    %78 = arith.mulf %73, %77 : vector<8x8xf32>
    %79 = arith.truncf %78 : vector<8x8xf32> to vector<8x8xbf16>
    %cst_25 = arith.constant dense<0.000000e+00> : vector<8x8xf32>
    %80 = tpu.matmul %79, %63, %cst_25 {dimension_numbers = #tpu.dot_dimension_numbers<[1], [0], [0], [1], [0, 0, 1, 1], [], []>} : vector<8x8xbf16>, vector<8x8xbf16>, vector<8x8xf32> -> vector<8x8xf32>
    %81 = vector.extract_strided_slice %1 {offsets = [0, 24], sizes = [8, 8], strides = [1, 1]} : vector<8x32xf32> to vector<8x8xf32>
    %82 = arith.truncf %81 : vector<8x8xf32> to vector<8x8xbf16>
    %83 = vector.extract_strided_slice %3 {offsets = [0, 24], sizes = [8, 8], strides = [1, 1]} : vector<8x32xf32> to vector<8x8xf32>
    %84 = arith.truncf %83 : vector<8x8xf32> to vector<8x8xbf16>
    %85 = vector.extract_strided_slice %5 {offsets = [0, 24], sizes = [8, 8], strides = [1, 1]} : vector<8x32xf32> to vector<8x8xf32>
    %86 = arith.truncf %85 : vector<8x8xf32> to vector<8x8xbf16>
    %cst_26 = arith.constant dense<0.000000e+00> : vector<8x8xf32>
    %87 = tpu.matmul %82, %84, %cst_26 {dimension_numbers = #tpu.dot_dimension_numbers<[1], [1], [0], [0], [0, 0, 1, 0], [], []>} : vector<8x8xbf16>, vector<8x8xbf16>, vector<8x8xf32> -> vector<8x8xf32>
    %cst_27 = arith.constant -1.000000e+09 : f32
    %88 = vector.broadcast %cst_27 : f32 to vector<8x8xf32>
    %89 = arith.select %11, %88, %87 : vector<8x8xi1>, vector<8x8xf32>
    %cst_28 = arith.constant 0.353553385 : f32
    %90 = vector.broadcast %cst_28 : f32 to vector<8x8xf32>
    %91 = arith.mulf %89, %90 : vector<8x8xf32>
    %cst_29 = arith.constant dense<0xFF800000> : vector<8xf32>
    %92 = vector.multi_reduction <maximumf>, %91, %cst_29 [1] : vector<8x8xf32> to vector<8xf32>
    %93 = vector.shape_cast %92 : vector<8xf32> to vector<8x1xf32>
    %94 = vector.broadcast %93 : vector<8x1xf32> to vector<8x8xf32>
    %95 = arith.subf %91, %94 : vector<8x8xf32>
    %96 = math.exp %95 : vector<8x8xf32>
    %cst_30 = arith.constant dense<0.000000e+00> : vector<8xf32>
    %97 = vector.multi_reduction <add>, %96, %cst_30 [1] : vector<8x8xf32> to vector<8xf32>
    %98 = vector.shape_cast %97 : vector<8xf32> to vector<8x1xf32>
    %99 = tpu.reciprocal %98 {approx = true} : vector<8x1xf32> -> vector<8x1xf32>
    %100 = vector.broadcast %99 : vector<8x1xf32> to vector<8x8xf32>
    %101 = arith.mulf %96, %100 : vector<8x8xf32>
    %102 = arith.truncf %101 : vector<8x8xf32> to vector<8x8xbf16>
    %cst_31 = arith.constant dense<0.000000e+00> : vector<8x8xf32>
    %103 = tpu.matmul %102, %86, %cst_31 {dimension_numbers = #tpu.dot_dimension_numbers<[1], [0], [0], [1], [0, 0, 1, 1], [], []>} : vector<8x8xbf16>, vector<8x8xbf16>, vector<8x8xf32> -> vector<8x8xf32>
    %104 = tpu.concatenate %34, %57, %80, %103 in 1 : vector<8x8xf32>, vector<8x8xf32>, vector<8x8xf32>, vector<8x8xf32> -> vector<8x32xf32>
    %c0_32 = arith.constant 0 : index
    %c0_33 = arith.constant 0 : index
    %c0_34 = arith.constant 0 : index
    %105 = vector.load %arg3[%c0_32, %c0_33, %c0_34] : memref<1x8x32xf32, #tpu.memory_space<vmem>>, vector<1x8x32xf32>
    %106 = vector.shape_cast %105 : vector<1x8x32xf32> to vector<8x32xf32>
    %107 = vector.shape_cast %104 : vector<8x32xf32> to vector<1x8x32xf32>
    tpu.vector_store %arg3[%c0_32, %c0_33, %c0_34], %107 {strides = array<i32>} : memref<1x8x32xf32, #tpu.memory_space<vmem>>, vector<1x8x32xf32>,
    return
  }
  func.func @transform_0(%arg0: i32) -> (i32, i32, i32) {
    %c0_i32 = arith.constant 0 : i32
    %c0_i32_0 = arith.constant 0 : i32
    %c0_i32_1 = arith.constant 0 : i32
    return %arg0, %c0_i32, %c0_i32_0 : i32, i32, i32
  }
  func.func @transform_1(%arg0: i32) -> (i32, i32, i32) {
    %c0_i32 = arith.constant 0 : i32
    %c0_i32_0 = arith.constant 0 : i32
    %c0_i32_1 = arith.constant 0 : i32
    return %arg0, %c0_i32, %c0_i32_0 : i32, i32, i32
  }
  func.func @transform_2(%arg0: i32) -> (i32, i32, i32) {
    %c0_i32 = arith.constant 0 : i32
    %c0_i32_0 = arith.constant 0 : i32
    %c0_i32_1 = arith.constant 0 : i32
    return %arg0, %c0_i32, %c0_i32_0 : i32, i32, i32
  }
}

module attributes {stable_mosaic.version = 11 : i64} {
  func.func @_fused_linear_kernel(%arg0: i32, %arg1: i32, %arg2: memref<16x32xf32, #tpu.memory_space<vmem>>, %arg3: memref<32x96xbf16, #tpu.memory_space<vmem>>, %arg4: memref<1x96xf32, #tpu.memory_space<vmem>>, %arg5: memref<1x32xf32, #tpu.memory_space<vmem>>, %arg6: memref<1x32xf32, #tpu.memory_space<vmem>>, %arg7: memref<16x96xf32, #tpu.memory_space<vmem>>) attributes {dimension_semantics = [#tpu.dimension_semantics<parallel>, #tpu.dimension_semantics<parallel>], iteration_bounds = array<i64: 1, 1>, scalar_prefetch = 0 : i64, scratch_operands = 0 : i64, tpu.core_type = #tpu.core_type<tc>, window_params = [{transform_indices = @transform_0, window_bounds = array<i64: 16, 32>}, {transform_indices = @transform_1, window_bounds = array<i64: 32, 96>}, {transform_indices = @transform_2, window_bounds = array<i64: 1, 96>}, {pipeline_mode = #tpu.pipeline_mode<synchronous>, transform_indices = @transform_3, window_bounds = array<i64: 1, 32>}, {pipeline_mode = #tpu.pipeline_mode<synchronous>, transform_indices = @transform_4, window_bounds = array<i64: 1, 32>}, {transform_indices = @transform_5, window_bounds = array<i64: 16, 96>}]} {
    %c0 = arith.constant 0 : index
    %c0_0 = arith.constant 0 : index
    %0 = vector.load %arg2[%c0, %c0_0] : memref<16x32xf32, #tpu.memory_space<vmem>>, vector<16x32xf32>
    %cst = arith.constant dense<0.000000e+00> : vector<16xf32>
    %1 = vector.multi_reduction <add>, %0, %cst [1] : vector<16x32xf32> to vector<16xf32>
    %2 = vector.shape_cast %1 : vector<16xf32> to vector<16x1xf32>
    %cst_1 = arith.constant 3.200000e+01 : f32
    %3 = vector.broadcast %cst_1 : f32 to vector<16x1xf32>
    %4 = arith.divf %2, %3 : vector<16x1xf32>
    %5 = vector.broadcast %4 : vector<16x1xf32> to vector<16x32xf32>
    %6 = arith.subf %0, %5 : vector<16x32xf32>
    %7 = arith.mulf %6, %6 : vector<16x32xf32>
    %cst_2 = arith.constant dense<0.000000e+00> : vector<16xf32>
    %8 = vector.multi_reduction <add>, %7, %cst_2 [1] : vector<16x32xf32> to vector<16xf32>
    %9 = vector.shape_cast %8 : vector<16xf32> to vector<16x1xf32>
    %cst_3 = arith.constant 3.200000e+01 : f32
    %10 = vector.broadcast %cst_3 : f32 to vector<16x1xf32>
    %11 = arith.divf %9, %10 : vector<16x1xf32>
    %12 = vector.broadcast %4 : vector<16x1xf32> to vector<16x32xf32>
    %13 = arith.subf %0, %12 : vector<16x32xf32>
    %cst_4 = arith.constant 9.99999974E-6 : f32
    %14 = vector.broadcast %cst_4 : f32 to vector<16x1xf32>
    %15 = arith.addf %11, %14 : vector<16x1xf32>
    %16 = math.rsqrt %15 : vector<16x1xf32>
    %17 = vector.broadcast %16 : vector<16x1xf32> to vector<16x32xf32>
    %18 = arith.mulf %13, %17 : vector<16x32xf32>
    %c0_5 = arith.constant 0 : index
    %c0_6 = arith.constant 0 : index
    %19 = vector.load %arg5[%c0_5, %c0_6] : memref<1x32xf32, #tpu.memory_space<vmem>>, vector<1x32xf32>
    %20 = vector.broadcast %19 : vector<1x32xf32> to vector<16x32xf32>
    %21 = arith.mulf %18, %20 : vector<16x32xf32>
    %c0_7 = arith.constant 0 : index
    %c0_8 = arith.constant 0 : index
    %22 = vector.load %arg6[%c0_7, %c0_8] : memref<1x32xf32, #tpu.memory_space<vmem>>, vector<1x32xf32>
    %23 = vector.broadcast %22 : vector<1x32xf32> to vector<16x32xf32>
    %24 = arith.addf %21, %23 : vector<16x32xf32>
    %25 = arith.truncf %24 : vector<16x32xf32> to vector<16x32xbf16>
    %c0_9 = arith.constant 0 : index
    %c0_10 = arith.constant 0 : index
    %26 = vector.load %arg3[%c0_9, %c0_10] : memref<32x96xbf16, #tpu.memory_space<vmem>>, vector<32x96xbf16>
    %cst_11 = arith.constant dense<0.000000e+00> : vector<16x96xf32>
    %27 = tpu.matmul %25, %26, %cst_11 {dimension_numbers = #tpu.dot_dimension_numbers<[1], [0], [0], [1], [0, 0, 1, 1], [], []>} : vector<16x32xbf16>, vector<32x96xbf16>, vector<16x96xf32> -> vector<16x96xf32>
    %c0_12 = arith.constant 0 : index
    %c0_13 = arith.constant 0 : index
    %28 = vector.load %arg4[%c0_12, %c0_13] : memref<1x96xf32, #tpu.memory_space<vmem>>, vector<1x96xf32>
    %29 = vector.broadcast %28 : vector<1x96xf32> to vector<16x96xf32>
    %30 = arith.addf %27, %29 : vector<16x96xf32>
    %c0_14 = arith.constant 0 : index
    %c0_15 = arith.constant 0 : index
    %31 = vector.load %arg7[%c0_14, %c0_15] : memref<16x96xf32, #tpu.memory_space<vmem>>, vector<16x96xf32>
    tpu.vector_store %arg7[%c0_14, %c0_15], %30 {strides = array<i32>} : memref<16x96xf32, #tpu.memory_space<vmem>>, vector<16x96xf32>,
    return
  }
  func.func @transform_0(%arg0: i32, %arg1: i32) -> (i32, i32) {
    %c0_i32 = arith.constant 0 : i32
    %c0_i32_0 = arith.constant 0 : i32
    return %arg0, %c0_i32 : i32, i32
  }
  func.func @transform_1(%arg0: i32, %arg1: i32) -> (i32, i32) {
    %c0_i32 = arith.constant 0 : i32
    %c0_i32_0 = arith.constant 0 : i32
    return %c0_i32, %arg1 : i32, i32
  }
  func.func @transform_2(%arg0: i32, %arg1: i32) -> (i32, i32) {
    %c0_i32 = arith.constant 0 : i32
    %c0_i32_0 = arith.constant 0 : i32
    return %c0_i32, %arg1 : i32, i32
  }
  func.func @transform_3(%arg0: i32, %arg1: i32) -> (i32, i32) {
    %c0_i32 = arith.constant 0 : i32
    %c0_i32_0 = arith.constant 0 : i32
    %c0_i32_1 = arith.constant 0 : i32
    return %c0_i32, %c0_i32_0 : i32, i32
  }
  func.func @transform_4(%arg0: i32, %arg1: i32) -> (i32, i32) {
    %c0_i32 = arith.constant 0 : i32
    %c0_i32_0 = arith.constant 0 : i32
    %c0_i32_1 = arith.constant 0 : i32
    return %c0_i32, %c0_i32_0 : i32, i32
  }
  func.func @transform_5(%arg0: i32, %arg1: i32) -> (i32, i32) {
    %c0_i32 = arith.constant 0 : i32
    return %arg0, %arg1 : i32, i32
  }
}

module attributes {stable_mosaic.version = 11 : i64} {
  func.func @_fused_linear_kernel(%arg0: i32, %arg1: i32, %arg2: memref<16x32xf32, #tpu.memory_space<vmem>>, %arg3: memref<32x32xbf16, #tpu.memory_space<vmem>>, %arg4: memref<1x32xf32, #tpu.memory_space<vmem>>, %arg5: memref<16x32xf32, #tpu.memory_space<vmem>>, %arg6: memref<16x32xf32, #tpu.memory_space<vmem>>) attributes {dimension_semantics = [#tpu.dimension_semantics<parallel>, #tpu.dimension_semantics<parallel>], iteration_bounds = array<i64: 1, 1>, scalar_prefetch = 0 : i64, scratch_operands = 0 : i64, tpu.core_type = #tpu.core_type<tc>, window_params = [{transform_indices = @transform_0, window_bounds = array<i64: 16, 32>}, {transform_indices = @transform_1, window_bounds = array<i64: 32, 32>}, {transform_indices = @transform_2, window_bounds = array<i64: 1, 32>}, {transform_indices = @transform_3, window_bounds = array<i64: 16, 32>}, {transform_indices = @transform_4, window_bounds = array<i64: 16, 32>}]} {
    %c0 = arith.constant 0 : index
    %c0_0 = arith.constant 0 : index
    %0 = vector.load %arg2[%c0, %c0_0] : memref<16x32xf32, #tpu.memory_space<vmem>>, vector<16x32xf32>
    %1 = arith.truncf %0 : vector<16x32xf32> to vector<16x32xbf16>
    %c0_1 = arith.constant 0 : index
    %c0_2 = arith.constant 0 : index
    %2 = vector.load %arg3[%c0_1, %c0_2] : memref<32x32xbf16, #tpu.memory_space<vmem>>, vector<32x32xbf16>
    %cst = arith.constant dense<0.000000e+00> : vector<16x32xf32>
    %3 = tpu.matmul %1, %2, %cst {dimension_numbers = #tpu.dot_dimension_numbers<[1], [0], [0], [1], [0, 0, 1, 1], [], []>} : vector<16x32xbf16>, vector<32x32xbf16>, vector<16x32xf32> -> vector<16x32xf32>
    %c0_3 = arith.constant 0 : index
    %c0_4 = arith.constant 0 : index
    %4 = vector.load %arg4[%c0_3, %c0_4] : memref<1x32xf32, #tpu.memory_space<vmem>>, vector<1x32xf32>
    %5 = vector.broadcast %4 : vector<1x32xf32> to vector<16x32xf32>
    %6 = arith.addf %3, %5 : vector<16x32xf32>
    %c0_5 = arith.constant 0 : index
    %c0_6 = arith.constant 0 : index
    %7 = vector.load %arg5[%c0_5, %c0_6] : memref<16x32xf32, #tpu.memory_space<vmem>>, vector<16x32xf32>
    %8 = arith.addf %6, %7 : vector<16x32xf32>
    %c0_7 = arith.constant 0 : index
    %c0_8 = arith.constant 0 : index
    %9 = vector.load %arg6[%c0_7, %c0_8] : memref<16x32xf32, #tpu.memory_space<vmem>>, vector<16x32xf32>
    tpu.vector_store %arg6[%c0_7, %c0_8], %8 {strides = array<i32>} : memref<16x32xf32, #tpu.memory_space<vmem>>, vector<16x32xf32>,
    return
  }
  func.func @transform_0(%arg0: i32, %arg1: i32) -> (i32, i32) {
    %c0_i32 = arith.constant 0 : i32
    %c0_i32_0 = arith.constant 0 : i32
    return %arg0, %c0_i32 : i32, i32
  }
  func.func @transform_1(%arg0: i32, %arg1: i32) -> (i32, i32) {
    %c0_i32 = arith.constant 0 : i32
    %c0_i32_0 = arith.constant 0 : i32
    return %c0_i32, %arg1 : i32, i32
  }
  func.func @transform_2(%arg0: i32, %arg1: i32) -> (i32, i32) {
    %c0_i32 = arith.constant 0 : i32
    %c0_i32_0 = arith.constant 0 : i32
    return %c0_i32, %arg1 : i32, i32
  }
  func.func @transform_3(%arg0: i32, %arg1: i32) -> (i32, i32) {
    %c0_i32 = arith.constant 0 : i32
    return %arg0, %arg1 : i32, i32
  }
  func.func @transform_4(%arg0: i32, %arg1: i32) -> (i32, i32) {
    %c0_i32 = arith.constant 0 : i32
    return %arg0, %arg1 : i32, i32
  }
}

module attributes {stable_mosaic.version = 11 : i64} {
  func.func @_ffn_kernel(%arg0: i32, %arg1: memref<16x32xf32, #tpu.memory_space<vmem>>, %arg2: memref<1x32xf32, #tpu.memory_space<vmem>>, %arg3: memref<1x32xf32, #tpu.memory_space<vmem>>, %arg4: memref<32x128xbf16, #tpu.memory_space<vmem>>, %arg5: memref<1x128xf32, #tpu.memory_space<vmem>>, %arg6: memref<128x32xbf16, #tpu.memory_space<vmem>>, %arg7: memref<1x32xf32, #tpu.memory_space<vmem>>, %arg8: memref<16x32xf32, #tpu.memory_space<vmem>>) attributes {dimension_semantics = [#tpu.dimension_semantics<parallel>], iteration_bounds = array<i64: 1>, scalar_prefetch = 0 : i64, scratch_operands = 0 : i64, tpu.core_type = #tpu.core_type<tc>, window_params = [{transform_indices = @transform_0, window_bounds = array<i64: 16, 32>}, {pipeline_mode = #tpu.pipeline_mode<synchronous>, transform_indices = @transform_1, window_bounds = array<i64: 1, 32>}, {pipeline_mode = #tpu.pipeline_mode<synchronous>, transform_indices = @transform_2, window_bounds = array<i64: 1, 32>}, {pipeline_mode = #tpu.pipeline_mode<synchronous>, transform_indices = @transform_3, window_bounds = array<i64: 32, 128>}, {pipeline_mode = #tpu.pipeline_mode<synchronous>, transform_indices = @transform_4, window_bounds = array<i64: 1, 128>}, {pipeline_mode = #tpu.pipeline_mode<synchronous>, transform_indices = @transform_5, window_bounds = array<i64: 128, 32>}, {pipeline_mode = #tpu.pipeline_mode<synchronous>, transform_indices = @transform_6, window_bounds = array<i64: 1, 32>}, {transform_indices = @transform_7, window_bounds = array<i64: 16, 32>}]} {
    %c0 = arith.constant 0 : index
    %c0_0 = arith.constant 0 : index
    %0 = vector.load %arg1[%c0, %c0_0] : memref<16x32xf32, #tpu.memory_space<vmem>>, vector<16x32xf32>
    %cst = arith.constant dense<0.000000e+00> : vector<16xf32>
    %1 = vector.multi_reduction <add>, %0, %cst [1] : vector<16x32xf32> to vector<16xf32>
    %2 = vector.shape_cast %1 : vector<16xf32> to vector<16x1xf32>
    %cst_1 = arith.constant 3.200000e+01 : f32
    %3 = vector.broadcast %cst_1 : f32 to vector<16x1xf32>
    %4 = arith.divf %2, %3 : vector<16x1xf32>
    %5 = vector.broadcast %4 : vector<16x1xf32> to vector<16x32xf32>
    %6 = arith.subf %0, %5 : vector<16x32xf32>
    %7 = arith.mulf %6, %6 : vector<16x32xf32>
    %cst_2 = arith.constant dense<0.000000e+00> : vector<16xf32>
    %8 = vector.multi_reduction <add>, %7, %cst_2 [1] : vector<16x32xf32> to vector<16xf32>
    %9 = vector.shape_cast %8 : vector<16xf32> to vector<16x1xf32>
    %cst_3 = arith.constant 3.200000e+01 : f32
    %10 = vector.broadcast %cst_3 : f32 to vector<16x1xf32>
    %11 = arith.divf %9, %10 : vector<16x1xf32>
    %12 = vector.broadcast %4 : vector<16x1xf32> to vector<16x32xf32>
    %13 = arith.subf %0, %12 : vector<16x32xf32>
    %cst_4 = arith.constant 9.99999974E-6 : f32
    %14 = vector.broadcast %cst_4 : f32 to vector<16x1xf32>
    %15 = arith.addf %11, %14 : vector<16x1xf32>
    %16 = math.rsqrt %15 : vector<16x1xf32>
    %17 = vector.broadcast %16 : vector<16x1xf32> to vector<16x32xf32>
    %18 = arith.mulf %13, %17 : vector<16x32xf32>
    %c0_5 = arith.constant 0 : index
    %c0_6 = arith.constant 0 : index
    %19 = vector.load %arg2[%c0_5, %c0_6] : memref<1x32xf32, #tpu.memory_space<vmem>>, vector<1x32xf32>
    %20 = vector.broadcast %19 : vector<1x32xf32> to vector<16x32xf32>
    %21 = arith.mulf %18, %20 : vector<16x32xf32>
    %c0_7 = arith.constant 0 : index
    %c0_8 = arith.constant 0 : index
    %22 = vector.load %arg3[%c0_7, %c0_8] : memref<1x32xf32, #tpu.memory_space<vmem>>, vector<1x32xf32>
    %23 = vector.broadcast %22 : vector<1x32xf32> to vector<16x32xf32>
    %24 = arith.addf %21, %23 : vector<16x32xf32>
    %25 = arith.truncf %24 : vector<16x32xf32> to vector<16x32xbf16>
    %c0_9 = arith.constant 0 : index
    %c0_10 = arith.constant 0 : index
    %26 = vector.load %arg4[%c0_9, %c0_10] : memref<32x128xbf16, #tpu.memory_space<vmem>>, vector<32x128xbf16>
    %cst_11 = arith.constant dense<0.000000e+00> : vector<16x128xf32>
    %27 = tpu.matmul %25, %26, %cst_11 {dimension_numbers = #tpu.dot_dimension_numbers<[1], [0], [0], [1], [0, 0, 1, 1], [], []>} : vector<16x32xbf16>, vector<32x128xbf16>, vector<16x128xf32> -> vector<16x128xf32>
    %c0_12 = arith.constant 0 : index
    %c0_13 = arith.constant 0 : index
    %28 = vector.load %arg5[%c0_12, %c0_13] : memref<1x128xf32, #tpu.memory_space<vmem>>, vector<1x128xf32>
    %29 = vector.broadcast %28 : vector<1x128xf32> to vector<16x128xf32>
    %30 = arith.addf %27, %29 : vector<16x128xf32>
    %cst_14 = arith.constant 0.000000e+00 : f32
    %31 = vector.broadcast %cst_14 : f32 to vector<16x128xf32>
    %32 = arith.maximumf %30, %31 : vector<16x128xf32>
    %33 = arith.truncf %32 : vector<16x128xf32> to vector<16x128xbf16>
    %c0_15 = arith.constant 0 : index
    %c0_16 = arith.constant 0 : index
    %34 = vector.load %arg6[%c0_15, %c0_16] : memref<128x32xbf16, #tpu.memory_space<vmem>>, vector<128x32xbf16>
    %cst_17 = arith.constant dense<0.000000e+00> : vector<16x32xf32>
    %35 = tpu.matmul %33, %34, %cst_17 {dimension_numbers = #tpu.dot_dimension_numbers<[1], [0], [0], [1], [0, 0, 1, 1], [], []>} : vector<16x128xbf16>, vector<128x32xbf16>, vector<16x32xf32> -> vector<16x32xf32>
    %c0_18 = arith.constant 0 : index
    %c0_19 = arith.constant 0 : index
    %36 = vector.load %arg7[%c0_18, %c0_19] : memref<1x32xf32, #tpu.memory_space<vmem>>, vector<1x32xf32>
    %37 = vector.broadcast %36 : vector<1x32xf32> to vector<16x32xf32>
    %38 = arith.addf %35, %37 : vector<16x32xf32>
    %39 = arith.addf %0, %38 : vector<16x32xf32>
    %c0_20 = arith.constant 0 : index
    %c0_21 = arith.constant 0 : index
    %40 = vector.load %arg8[%c0_20, %c0_21] : memref<16x32xf32, #tpu.memory_space<vmem>>, vector<16x32xf32>
    tpu.vector_store %arg8[%c0_20, %c0_21], %39 {strides = array<i32>} : memref<16x32xf32, #tpu.memory_space<vmem>>, vector<16x32xf32>,
    return
  }
  func.func @transform_0(%arg0: i32) -> (i32, i32) {
    %c0_i32 = arith.constant 0 : i32
    %c0_i32_0 = arith.constant 0 : i32
    return %arg0, %c0_i32 : i32, i32
  }
  func.func @transform_1(%arg0: i32) -> (i32, i32) {
    %c0_i32 = arith.constant 0 : i32
    %c0_i32_0 = arith.constant 0 : i32
    %c0_i32_1 = arith.constant 0 : i32
    return %c0_i32, %c0_i32_0 : i32, i32
  }
  func.func @transform_2(%arg0: i32) -> (i32, i32) {
    %c0_i32 = arith.constant 0 : i32
    %c0_i32_0 = arith.constant 0 : i32
    %c0_i32_1 = arith.constant 0 : i32
    return %c0_i32, %c0_i32_0 : i32, i32
  }
  func.func @transform_3(%arg0: i32) -> (i32, i32) {
    %c0_i32 = arith.constant 0 : i32
    %c0_i32_0 = arith.constant 0 : i32
    %c0_i32_1 = arith.constant 0 : i32
    return %c0_i32, %c0_i32_0 : i32, i32
  }
  func.func @transform_4(%arg0: i32) -> (i32, i32) {
    %c0_i32 = arith.constant 0 : i32
    %c0_i32_0 = arith.constant 0 : i32
    %c0_i32_1 = arith.constant 0 : i32
    return %c0_i32, %c0_i32_0 : i32, i32
  }
  func.func @transform_5(%arg0: i32) -> (i32, i32) {
    %c0_i32 = arith.constant 0 : i32
    %c0_i32_0 = arith.constant 0 : i32
    %c0_i32_1 = arith.constant 0 : i32
    return %c0_i32, %c0_i32_0 : i32, i32
  }
  func.func @transform_6(%arg0: i32) -> (i32, i32) {
    %c0_i32 = arith.constant 0 : i32
    %c0_i32_0 = arith.constant 0 : i32
    %c0_i32_1 = arith.constant 0 : i32
    return %c0_i32, %c0_i32_0 : i32, i32
  }
  func.func @transform_7(%arg0: i32) -> (i32, i32) {
    %c0_i32 = arith.constant 0 : i32
    %c0_i32_0 = arith.constant 0 : i32
    return %arg0, %c0_i32 : i32, i32
  }
}

module attributes {stable_mosaic.version = 11 : i64} {
  func.func @_fused_linear_kernel(%arg0: i32, %arg1: i32, %arg2: memref<16x32xf32, #tpu.memory_space<vmem>>, %arg3: memref<32x64xbf16, #tpu.memory_space<vmem>>, %arg4: memref<1x64xf32, #tpu.memory_space<vmem>>, %arg5: memref<1x32xf32, #tpu.memory_space<vmem>>, %arg6: memref<1x32xf32, #tpu.memory_space<vmem>>, %arg7: memref<16x64xf32, #tpu.memory_space<vmem>>) attributes {dimension_semantics = [#tpu.dimension_semantics<parallel>, #tpu.dimension_semantics<parallel>], iteration_bounds = array<i64: 1, 1>, scalar_prefetch = 0 : i64, scratch_operands = 0 : i64, tpu.core_type = #tpu.core_type<tc>, window_params = [{transform_indices = @transform_0, window_bounds = array<i64: 16, 32>}, {transform_indices = @transform_1, window_bounds = array<i64: 32, 64>}, {transform_indices = @transform_2, window_bounds = array<i64: 1, 64>}, {pipeline_mode = #tpu.pipeline_mode<synchronous>, transform_indices = @transform_3, window_bounds = array<i64: 1, 32>}, {pipeline_mode = #tpu.pipeline_mode<synchronous>, transform_indices = @transform_4, window_bounds = array<i64: 1, 32>}, {transform_indices = @transform_5, window_bounds = array<i64: 16, 64>}]} {
    %c0 = arith.constant 0 : index
    %c0_0 = arith.constant 0 : index
    %0 = vector.load %arg2[%c0, %c0_0] : memref<16x32xf32, #tpu.memory_space<vmem>>, vector<16x32xf32>
    %cst = arith.constant dense<0.000000e+00> : vector<16xf32>
    %1 = vector.multi_reduction <add>, %0, %cst [1] : vector<16x32xf32> to vector<16xf32>
    %2 = vector.shape_cast %1 : vector<16xf32> to vector<16x1xf32>
    %cst_1 = arith.constant 3.200000e+01 : f32
    %3 = vector.broadcast %cst_1 : f32 to vector<16x1xf32>
    %4 = arith.divf %2, %3 : vector<16x1xf32>
    %5 = vector.broadcast %4 : vector<16x1xf32> to vector<16x32xf32>
    %6 = arith.subf %0, %5 : vector<16x32xf32>
    %7 = arith.mulf %6, %6 : vector<16x32xf32>
    %cst_2 = arith.constant dense<0.000000e+00> : vector<16xf32>
    %8 = vector.multi_reduction <add>, %7, %cst_2 [1] : vector<16x32xf32> to vector<16xf32>
    %9 = vector.shape_cast %8 : vector<16xf32> to vector<16x1xf32>
    %cst_3 = arith.constant 3.200000e+01 : f32
    %10 = vector.broadcast %cst_3 : f32 to vector<16x1xf32>
    %11 = arith.divf %9, %10 : vector<16x1xf32>
    %12 = vector.broadcast %4 : vector<16x1xf32> to vector<16x32xf32>
    %13 = arith.subf %0, %12 : vector<16x32xf32>
    %cst_4 = arith.constant 9.99999974E-6 : f32
    %14 = vector.broadcast %cst_4 : f32 to vector<16x1xf32>
    %15 = arith.addf %11, %14 : vector<16x1xf32>
    %16 = math.rsqrt %15 : vector<16x1xf32>
    %17 = vector.broadcast %16 : vector<16x1xf32> to vector<16x32xf32>
    %18 = arith.mulf %13, %17 : vector<16x32xf32>
    %c0_5 = arith.constant 0 : index
    %c0_6 = arith.constant 0 : index
    %19 = vector.load %arg5[%c0_5, %c0_6] : memref<1x32xf32, #tpu.memory_space<vmem>>, vector<1x32xf32>
    %20 = vector.broadcast %19 : vector<1x32xf32> to vector<16x32xf32>
    %21 = arith.mulf %18, %20 : vector<16x32xf32>
    %c0_7 = arith.constant 0 : index
    %c0_8 = arith.constant 0 : index
    %22 = vector.load %arg6[%c0_7, %c0_8] : memref<1x32xf32, #tpu.memory_space<vmem>>, vector<1x32xf32>
    %23 = vector.broadcast %22 : vector<1x32xf32> to vector<16x32xf32>
    %24 = arith.addf %21, %23 : vector<16x32xf32>
    %25 = arith.truncf %24 : vector<16x32xf32> to vector<16x32xbf16>
    %c0_9 = arith.constant 0 : index
    %c0_10 = arith.constant 0 : index
    %26 = vector.load %arg3[%c0_9, %c0_10] : memref<32x64xbf16, #tpu.memory_space<vmem>>, vector<32x64xbf16>
    %cst_11 = arith.constant dense<0.000000e+00> : vector<16x64xf32>
    %27 = tpu.matmul %25, %26, %cst_11 {dimension_numbers = #tpu.dot_dimension_numbers<[1], [0], [0], [1], [0, 0, 1, 1], [], []>} : vector<16x32xbf16>, vector<32x64xbf16>, vector<16x64xf32> -> vector<16x64xf32>
    %c0_12 = arith.constant 0 : index
    %c0_13 = arith.constant 0 : index
    %28 = vector.load %arg4[%c0_12, %c0_13] : memref<1x64xf32, #tpu.memory_space<vmem>>, vector<1x64xf32>
    %29 = vector.broadcast %28 : vector<1x64xf32> to vector<16x64xf32>
    %30 = arith.addf %27, %29 : vector<16x64xf32>
    %c0_14 = arith.constant 0 : index
    %c0_15 = arith.constant 0 : index
    %31 = vector.load %arg7[%c0_14, %c0_15] : memref<16x64xf32, #tpu.memory_space<vmem>>, vector<16x64xf32>
    tpu.vector_store %arg7[%c0_14, %c0_15], %30 {strides = array<i32>} : memref<16x64xf32, #tpu.memory_space<vmem>>, vector<16x64xf32>,
    return
  }
  func.func @transform_0(%arg0: i32, %arg1: i32) -> (i32, i32) {
    %c0_i32 = arith.constant 0 : i32
    %c0_i32_0 = arith.constant 0 : i32
    return %arg0, %c0_i32 : i32, i32
  }
  func.func @transform_1(%arg0: i32, %arg1: i32) -> (i32, i32) {
    %c0_i32 = arith.constant 0 : i32
    %c0_i32_0 = arith.constant 0 : i32
    return %c0_i32, %arg1 : i32, i32
  }
  func.func @transform_2(%arg0: i32, %arg1: i32) -> (i32, i32) {
    %c0_i32 = arith.constant 0 : i32
    %c0_i32_0 = arith.constant 0 : i32
    return %c0_i32, %arg1 : i32, i32
  }
  func.func @transform_3(%arg0: i32, %arg1: i32) -> (i32, i32) {
    %c0_i32 = arith.constant 0 : i32
    %c0_i32_0 = arith.constant 0 : i32
    %c0_i32_1 = arith.constant 0 : i32
    return %c0_i32, %c0_i32_0 : i32, i32
  }
  func.func @transform_4(%arg0: i32, %arg1: i32) -> (i32, i32) {
    %c0_i32 = arith.constant 0 : i32
    %c0_i32_0 = arith.constant 0 : i32
    %c0_i32_1 = arith.constant 0 : i32
    return %c0_i32, %c0_i32_0 : i32, i32
  }
  func.func @transform_5(%arg0: i32, %arg1: i32) -> (i32, i32) {
    %c0_i32 = arith.constant 0 : i32
    return %arg0, %arg1 : i32, i32
  }
}

module attributes {stable_mosaic.version = 11 : i64} {
  func.func @_fused_linear_kernel(%arg0: i32, %arg1: i32, %arg2: memref<16x32xf32, #tpu.memory_space<vmem>>, %arg3: memref<32x32xbf16, #tpu.memory_space<vmem>>, %arg4: memref<1x32xf32, #tpu.memory_space<vmem>>, %arg5: memref<1x32xf32, #tpu.memory_space<vmem>>, %arg6: memref<1x32xf32, #tpu.memory_space<vmem>>, %arg7: memref<16x32xf32, #tpu.memory_space<vmem>>) attributes {dimension_semantics = [#tpu.dimension_semantics<parallel>, #tpu.dimension_semantics<parallel>], iteration_bounds = array<i64: 1, 1>, scalar_prefetch = 0 : i64, scratch_operands = 0 : i64, tpu.core_type = #tpu.core_type<tc>, window_params = [{transform_indices = @transform_0, window_bounds = array<i64: 16, 32>}, {transform_indices = @transform_1, window_bounds = array<i64: 32, 32>}, {transform_indices = @transform_2, window_bounds = array<i64: 1, 32>}, {pipeline_mode = #tpu.pipeline_mode<synchronous>, transform_indices = @transform_3, window_bounds = array<i64: 1, 32>}, {pipeline_mode = #tpu.pipeline_mode<synchronous>, transform_indices = @transform_4, window_bounds = array<i64: 1, 32>}, {transform_indices = @transform_5, window_bounds = array<i64: 16, 32>}]} {
    %c0 = arith.constant 0 : index
    %c0_0 = arith.constant 0 : index
    %0 = vector.load %arg2[%c0, %c0_0] : memref<16x32xf32, #tpu.memory_space<vmem>>, vector<16x32xf32>
    %cst = arith.constant dense<0.000000e+00> : vector<16xf32>
    %1 = vector.multi_reduction <add>, %0, %cst [1] : vector<16x32xf32> to vector<16xf32>
    %2 = vector.shape_cast %1 : vector<16xf32> to vector<16x1xf32>
    %cst_1 = arith.constant 3.200000e+01 : f32
    %3 = vector.broadcast %cst_1 : f32 to vector<16x1xf32>
    %4 = arith.divf %2, %3 : vector<16x1xf32>
    %5 = vector.broadcast %4 : vector<16x1xf32> to vector<16x32xf32>
    %6 = arith.subf %0, %5 : vector<16x32xf32>
    %7 = arith.mulf %6, %6 : vector<16x32xf32>
    %cst_2 = arith.constant dense<0.000000e+00> : vector<16xf32>
    %8 = vector.multi_reduction <add>, %7, %cst_2 [1] : vector<16x32xf32> to vector<16xf32>
    %9 = vector.shape_cast %8 : vector<16xf32> to vector<16x1xf32>
    %cst_3 = arith.constant 3.200000e+01 : f32
    %10 = vector.broadcast %cst_3 : f32 to vector<16x1xf32>
    %11 = arith.divf %9, %10 : vector<16x1xf32>
    %12 = vector.broadcast %4 : vector<16x1xf32> to vector<16x32xf32>
    %13 = arith.subf %0, %12 : vector<16x32xf32>
    %cst_4 = arith.constant 9.99999974E-6 : f32
    %14 = vector.broadcast %cst_4 : f32 to vector<16x1xf32>
    %15 = arith.addf %11, %14 : vector<16x1xf32>
    %16 = math.rsqrt %15 : vector<16x1xf32>
    %17 = vector.broadcast %16 : vector<16x1xf32> to vector<16x32xf32>
    %18 = arith.mulf %13, %17 : vector<16x32xf32>
    %c0_5 = arith.constant 0 : index
    %c0_6 = arith.constant 0 : index
    %19 = vector.load %arg5[%c0_5, %c0_6] : memref<1x32xf32, #tpu.memory_space<vmem>>, vector<1x32xf32>
    %20 = vector.broadcast %19 : vector<1x32xf32> to vector<16x32xf32>
    %21 = arith.mulf %18, %20 : vector<16x32xf32>
    %c0_7 = arith.constant 0 : index
    %c0_8 = arith.constant 0 : index
    %22 = vector.load %arg6[%c0_7, %c0_8] : memref<1x32xf32, #tpu.memory_space<vmem>>, vector<1x32xf32>
    %23 = vector.broadcast %22 : vector<1x32xf32> to vector<16x32xf32>
    %24 = arith.addf %21, %23 : vector<16x32xf32>
    %25 = arith.truncf %24 : vector<16x32xf32> to vector<16x32xbf16>
    %c0_9 = arith.constant 0 : index
    %c0_10 = arith.constant 0 : index
    %26 = vector.load %arg3[%c0_9, %c0_10] : memref<32x32xbf16, #tpu.memory_space<vmem>>, vector<32x32xbf16>
    %cst_11 = arith.constant dense<0.000000e+00> : vector<16x32xf32>
    %27 = tpu.matmul %25, %26, %cst_11 {dimension_numbers = #tpu.dot_dimension_numbers<[1], [0], [0], [1], [0, 0, 1, 1], [], []>} : vector<16x32xbf16>, vector<32x32xbf16>, vector<16x32xf32> -> vector<16x32xf32>
    %c0_12 = arith.constant 0 : index
    %c0_13 = arith.constant 0 : index
    %28 = vector.load %arg4[%c0_12, %c0_13] : memref<1x32xf32, #tpu.memory_space<vmem>>, vector<1x32xf32>
    %29 = vector.broadcast %28 : vector<1x32xf32> to vector<16x32xf32>
    %30 = arith.addf %27, %29 : vector<16x32xf32>
    %c0_14 = arith.constant 0 : index
    %c0_15 = arith.constant 0 : index
    %31 = vector.load %arg7[%c0_14, %c0_15] : memref<16x32xf32, #tpu.memory_space<vmem>>, vector<16x32xf32>
    tpu.vector_store %arg7[%c0_14, %c0_15], %30 {strides = array<i32>} : memref<16x32xf32, #tpu.memory_space<vmem>>, vector<16x32xf32>,
    return
  }
  func.func @transform_0(%arg0: i32, %arg1: i32) -> (i32, i32) {
    %c0_i32 = arith.constant 0 : i32
    %c0_i32_0 = arith.constant 0 : i32
    return %arg0, %c0_i32 : i32, i32
  }
  func.func @transform_1(%arg0: i32, %arg1: i32) -> (i32, i32) {
    %c0_i32 = arith.constant 0 : i32
    %c0_i32_0 = arith.constant 0 : i32
    return %c0_i32, %arg1 : i32, i32
  }
  func.func @transform_2(%arg0: i32, %arg1: i32) -> (i32, i32) {
    %c0_i32 = arith.constant 0 : i32
    %c0_i32_0 = arith.constant 0 : i32
    return %c0_i32, %arg1 : i32, i32
  }
  func.func @transform_3(%arg0: i32, %arg1: i32) -> (i32, i32) {
    %c0_i32 = arith.constant 0 : i32
    %c0_i32_0 = arith.constant 0 : i32
    %c0_i32_1 = arith.constant 0 : i32
    return %c0_i32, %c0_i32_0 : i32, i32
  }
  func.func @transform_4(%arg0: i32, %arg1: i32) -> (i32, i32) {
    %c0_i32 = arith.constant 0 : i32
    %c0_i32_0 = arith.constant 0 : i32
    %c0_i32_1 = arith.constant 0 : i32
    return %c0_i32, %c0_i32_0 : i32, i32
  }
  func.func @transform_5(%arg0: i32, %arg1: i32) -> (i32, i32) {
    %c0_i32 = arith.constant 0 : i32
    return %arg0, %arg1 : i32, i32
  }
}

module attributes {stable_mosaic.version = 11 : i64} {
  func.func @_attention_kernel(%arg0: i32, %arg1: memref<1x8x96xf32, #tpu.memory_space<vmem>>, %arg2: memref<1x1x8xi32, #tpu.memory_space<vmem>>, %arg3: memref<1x8x32xf32, #tpu.memory_space<vmem>>) attributes {dimension_semantics = [#tpu.dimension_semantics<parallel>], iteration_bounds = array<i64: 2>, scalar_prefetch = 0 : i64, scratch_operands = 0 : i64, tpu.core_type = #tpu.core_type<tc>, window_params = [{transform_indices = @transform_0, window_bounds = array<i64: 1, 8, 96>}, {transform_indices = @transform_1, window_bounds = array<i64: 1, 1, 8>}, {transform_indices = @transform_2, window_bounds = array<i64: 1, 8, 32>}]} {
    %c0 = arith.constant 0 : index
    %c0_0 = arith.constant 0 : index
    %c0_1 = arith.constant 0 : index
    %0 = vector.load %arg1[%c0, %c0_0, %c0_1] : memref<1x8x96xf32, #tpu.memory_space<vmem>>, vector<1x8x32xf32>
    %1 = vector.shape_cast %0 : vector<1x8x32xf32> to vector<8x32xf32>
    %c0_2 = arith.constant 0 : index
    %c0_3 = arith.constant 0 : index
    %c32 = arith.constant 32 : index
    %2 = vector.load %arg1[%c0_2, %c0_3, %c32] : memref<1x8x96xf32, #tpu.memory_space<vmem>>, vector<1x8x32xf32>
    %3 = vector.shape_cast %2 : vector<1x8x32xf32> to vector<8x32xf32>
    %c0_4 = arith.constant 0 : index
    %c0_5 = arith.constant 0 : index
    %c64 = arith.constant 64 : index
    %4 = vector.load %arg1[%c0_4, %c0_5, %c64] : memref<1x8x96xf32, #tpu.memory_space<vmem>>, vector<1x8x32xf32>
    %5 = vector.shape_cast %4 : vector<1x8x32xf32> to vector<8x32xf32>
    %c0_6 = arith.constant 0 : index
    %c0_7 = arith.constant 0 : index
    %c0_8 = arith.constant 0 : index
    %6 = vector.load %arg2[%c0_6, %c0_7, %c0_8] : memref<1x1x8xi32, #tpu.memory_space<vmem>>, vector<1x1x8xi32>
    %7 = vector.shape_cast %6 : vector<1x1x8xi32> to vector<1x8xi32>
    %c0_i32 = arith.constant 0 : i32
    %8 = vector.broadcast %c0_i32 : i32 to vector<1x8xi32>
    %9 = arith.cmpi sgt, %7, %8 : vector<1x8xi32>
    %10 = vector.shape_cast %9 : vector<1x8xi1> to vector<1x8xi1>
    %11 = vector.broadcast %10 : vector<1x8xi1> to vector<8x8xi1>
    %12 = tpu.iota {dimensions = array<i32: 0>} : vector<8x8xi32>
    %13 = tpu.iota {dimensions = array<i32: 1>} : vector<8x8xi32>
    %14 = arith.cmpi sgt, %13, %12 : vector<8x8xi32>
    %15 = arith.ori %11, %14 : vector<8x8xi1>
    %16 = vector.extract_strided_slice %1 {offsets = [0, 0], sizes = [8, 8], strides = [1, 1]} : vector<8x32xf32> to vector<8x8xf32>
    %17 = arith.truncf %16 : vector<8x8xf32> to vector<8x8xbf16>
    %18 = vector.extract_strided_slice %3 {offsets = [0, 0], sizes = [8, 8], strides = [1, 1]} : vector<8x32xf32> to vector<8x8xf32>
    %19 = arith.truncf %18 : vector<8x8xf32> to vector<8x8xbf16>
    %20 = vector.extract_strided_slice %5 {offsets = [0, 0], sizes = [8, 8], strides = [1, 1]} : vector<8x32xf32> to vector<8x8xf32>
    %21 = arith.truncf %20 : vector<8x8xf32> to vector<8x8xbf16>
    %cst = arith.constant dense<0.000000e+00> : vector<8x8xf32>
    %22 = tpu.matmul %17, %19, %cst {dimension_numbers = #tpu.dot_dimension_numbers<[1], [1], [0], [0], [0, 0, 1, 0], [], []>} : vector<8x8xbf16>, vector<8x8xbf16>, vector<8x8xf32> -> vector<8x8xf32>
    %cst_9 = arith.constant -1.000000e+09 : f32
    %23 = vector.broadcast %cst_9 : f32 to vector<8x8xf32>
    %24 = arith.select %15, %23, %22 : vector<8x8xi1>, vector<8x8xf32>
    %cst_10 = arith.constant 0.353553385 : f32
    %25 = vector.broadcast %cst_10 : f32 to vector<8x8xf32>
    %26 = arith.mulf %24, %25 : vector<8x8xf32>
    %cst_11 = arith.constant dense<0xFF800000> : vector<8xf32>
    %27 = vector.multi_reduction <maximumf>, %26, %cst_11 [1] : vector<8x8xf32> to vector<8xf32>
    %28 = vector.shape_cast %27 : vector<8xf32> to vector<8x1xf32>
    %29 = vector.broadcast %28 : vector<8x1xf32> to vector<8x8xf32>
    %30 = arith.subf %26, %29 : vector<8x8xf32>
    %31 = math.exp %30 : vector<8x8xf32>
    %cst_12 = arith.constant dense<0.000000e+00> : vector<8xf32>
    %32 = vector.multi_reduction <add>, %31, %cst_12 [1] : vector<8x8xf32> to vector<8xf32>
    %33 = vector.shape_cast %32 : vector<8xf32> to vector<8x1xf32>
    %34 = tpu.reciprocal %33 {approx = true} : vector<8x1xf32> -> vector<8x1xf32>
    %35 = vector.broadcast %34 : vector<8x1xf32> to vector<8x8xf32>
    %36 = arith.mulf %31, %35 : vector<8x8xf32>
    %37 = arith.truncf %36 : vector<8x8xf32> to vector<8x8xbf16>
    %cst_13 = arith.constant dense<0.000000e+00> : vector<8x8xf32>
    %38 = tpu.matmul %37, %21, %cst_13 {dimension_numbers = #tpu.dot_dimension_numbers<[1], [0], [0], [1], [0, 0, 1, 1], [], []>} : vector<8x8xbf16>, vector<8x8xbf16>, vector<8x8xf32> -> vector<8x8xf32>
    %39 = vector.extract_strided_slice %1 {offsets = [0, 8], sizes = [8, 8], strides = [1, 1]} : vector<8x32xf32> to vector<8x8xf32>
    %40 = arith.truncf %39 : vector<8x8xf32> to vector<8x8xbf16>
    %41 = vector.extract_strided_slice %3 {offsets = [0, 8], sizes = [8, 8], strides = [1, 1]} : vector<8x32xf32> to vector<8x8xf32>
    %42 = arith.truncf %41 : vector<8x8xf32> to vector<8x8xbf16>
    %43 = vector.extract_strided_slice %5 {offsets = [0, 8], sizes = [8, 8], strides = [1, 1]} : vector<8x32xf32> to vector<8x8xf32>
    %44 = arith.truncf %43 : vector<8x8xf32> to vector<8x8xbf16>
    %cst_14 = arith.constant dense<0.000000e+00> : vector<8x8xf32>
    %45 = tpu.matmul %40, %42, %cst_14 {dimension_numbers = #tpu.dot_dimension_numbers<[1], [1], [0], [0], [0, 0, 1, 0], [], []>} : vector<8x8xbf16>, vector<8x8xbf16>, vector<8x8xf32> -> vector<8x8xf32>
    %cst_15 = arith.constant -1.000000e+09 : f32
    %46 = vector.broadcast %cst_15 : f32 to vector<8x8xf32>
    %47 = arith.select %15, %46, %45 : vector<8x8xi1>, vector<8x8xf32>
    %cst_16 = arith.constant 0.353553385 : f32
    %48 = vector.broadcast %cst_16 : f32 to vector<8x8xf32>
    %49 = arith.mulf %47, %48 : vector<8x8xf32>
    %cst_17 = arith.constant dense<0xFF800000> : vector<8xf32>
    %50 = vector.multi_reduction <maximumf>, %49, %cst_17 [1] : vector<8x8xf32> to vector<8xf32>
    %51 = vector.shape_cast %50 : vector<8xf32> to vector<8x1xf32>
    %52 = vector.broadcast %51 : vector<8x1xf32> to vector<8x8xf32>
    %53 = arith.subf %49, %52 : vector<8x8xf32>
    %54 = math.exp %53 : vector<8x8xf32>
    %cst_18 = arith.constant dense<0.000000e+00> : vector<8xf32>
    %55 = vector.multi_reduction <add>, %54, %cst_18 [1] : vector<8x8xf32> to vector<8xf32>
    %56 = vector.shape_cast %55 : vector<8xf32> to vector<8x1xf32>
    %57 = tpu.reciprocal %56 {approx = true} : vector<8x1xf32> -> vector<8x1xf32>
    %58 = vector.broadcast %57 : vector<8x1xf32> to vector<8x8xf32>
    %59 = arith.mulf %54, %58 : vector<8x8xf32>
    %60 = arith.truncf %59 : vector<8x8xf32> to vector<8x8xbf16>
    %cst_19 = arith.constant dense<0.000000e+00> : vector<8x8xf32>
    %61 = tpu.matmul %60, %44, %cst_19 {dimension_numbers = #tpu.dot_dimension_numbers<[1], [0], [0], [1], [0, 0, 1, 1], [], []>} : vector<8x8xbf16>, vector<8x8xbf16>, vector<8x8xf32> -> vector<8x8xf32>
    %62 = vector.extract_strided_slice %1 {offsets = [0, 16], sizes = [8, 8], strides = [1, 1]} : vector<8x32xf32> to vector<8x8xf32>
    %63 = arith.truncf %62 : vector<8x8xf32> to vector<8x8xbf16>
    %64 = vector.extract_strided_slice %3 {offsets = [0, 16], sizes = [8, 8], strides = [1, 1]} : vector<8x32xf32> to vector<8x8xf32>
    %65 = arith.truncf %64 : vector<8x8xf32> to vector<8x8xbf16>
    %66 = vector.extract_strided_slice %5 {offsets = [0, 16], sizes = [8, 8], strides = [1, 1]} : vector<8x32xf32> to vector<8x8xf32>
    %67 = arith.truncf %66 : vector<8x8xf32> to vector<8x8xbf16>
    %cst_20 = arith.constant dense<0.000000e+00> : vector<8x8xf32>
    %68 = tpu.matmul %63, %65, %cst_20 {dimension_numbers = #tpu.dot_dimension_numbers<[1], [1], [0], [0], [0, 0, 1, 0], [], []>} : vector<8x8xbf16>, vector<8x8xbf16>, vector<8x8xf32> -> vector<8x8xf32>
    %cst_21 = arith.constant -1.000000e+09 : f32
    %69 = vector.broadcast %cst_21 : f32 to vector<8x8xf32>
    %70 = arith.select %15, %69, %68 : vector<8x8xi1>, vector<8x8xf32>
    %cst_22 = arith.constant 0.353553385 : f32
    %71 = vector.broadcast %cst_22 : f32 to vector<8x8xf32>
    %72 = arith.mulf %70, %71 : vector<8x8xf32>
    %cst_23 = arith.constant dense<0xFF800000> : vector<8xf32>
    %73 = vector.multi_reduction <maximumf>, %72, %cst_23 [1] : vector<8x8xf32> to vector<8xf32>
    %74 = vector.shape_cast %73 : vector<8xf32> to vector<8x1xf32>
    %75 = vector.broadcast %74 : vector<8x1xf32> to vector<8x8xf32>
    %76 = arith.subf %72, %75 : vector<8x8xf32>
    %77 = math.exp %76 : vector<8x8xf32>
    %cst_24 = arith.constant dense<0.000000e+00> : vector<8xf32>
    %78 = vector.multi_reduction <add>, %77, %cst_24 [1] : vector<8x8xf32> to vector<8xf32>
    %79 = vector.shape_cast %78 : vector<8xf32> to vector<8x1xf32>
    %80 = tpu.reciprocal %79 {approx = true} : vector<8x1xf32> -> vector<8x1xf32>
    %81 = vector.broadcast %80 : vector<8x1xf32> to vector<8x8xf32>
    %82 = arith.mulf %77, %81 : vector<8x8xf32>
    %83 = arith.truncf %82 : vector<8x8xf32> to vector<8x8xbf16>
    %cst_25 = arith.constant dense<0.000000e+00> : vector<8x8xf32>
    %84 = tpu.matmul %83, %67, %cst_25 {dimension_numbers = #tpu.dot_dimension_numbers<[1], [0], [0], [1], [0, 0, 1, 1], [], []>} : vector<8x8xbf16>, vector<8x8xbf16>, vector<8x8xf32> -> vector<8x8xf32>
    %85 = vector.extract_strided_slice %1 {offsets = [0, 24], sizes = [8, 8], strides = [1, 1]} : vector<8x32xf32> to vector<8x8xf32>
    %86 = arith.truncf %85 : vector<8x8xf32> to vector<8x8xbf16>
    %87 = vector.extract_strided_slice %3 {offsets = [0, 24], sizes = [8, 8], strides = [1, 1]} : vector<8x32xf32> to vector<8x8xf32>
    %88 = arith.truncf %87 : vector<8x8xf32> to vector<8x8xbf16>
    %89 = vector.extract_strided_slice %5 {offsets = [0, 24], sizes = [8, 8], strides = [1, 1]} : vector<8x32xf32> to vector<8x8xf32>
    %90 = arith.truncf %89 : vector<8x8xf32> to vector<8x8xbf16>
    %cst_26 = arith.constant dense<0.000000e+00> : vector<8x8xf32>
    %91 = tpu.matmul %86, %88, %cst_26 {dimension_numbers = #tpu.dot_dimension_numbers<[1], [1], [0], [0], [0, 0, 1, 0], [], []>} : vector<8x8xbf16>, vector<8x8xbf16>, vector<8x8xf32> -> vector<8x8xf32>
    %cst_27 = arith.constant -1.000000e+09 : f32
    %92 = vector.broadcast %cst_27 : f32 to vector<8x8xf32>
    %93 = arith.select %15, %92, %91 : vector<8x8xi1>, vector<8x8xf32>
    %cst_28 = arith.constant 0.353553385 : f32
    %94 = vector.broadcast %cst_28 : f32 to vector<8x8xf32>
    %95 = arith.mulf %93, %94 : vector<8x8xf32>
    %cst_29 = arith.constant dense<0xFF800000> : vector<8xf32>
    %96 = vector.multi_reduction <maximumf>, %95, %cst_29 [1] : vector<8x8xf32> to vector<8xf32>
    %97 = vector.shape_cast %96 : vector<8xf32> to vector<8x1xf32>
    %98 = vector.broadcast %97 : vector<8x1xf32> to vector<8x8xf32>
    %99 = arith.subf %95, %98 : vector<8x8xf32>
    %100 = math.exp %99 : vector<8x8xf32>
    %cst_30 = arith.constant dense<0.000000e+00> : vector<8xf32>
    %101 = vector.multi_reduction <add>, %100, %cst_30 [1] : vector<8x8xf32> to vector<8xf32>
    %102 = vector.shape_cast %101 : vector<8xf32> to vector<8x1xf32>
    %103 = tpu.reciprocal %102 {approx = true} : vector<8x1xf32> -> vector<8x1xf32>
    %104 = vector.broadcast %103 : vector<8x1xf32> to vector<8x8xf32>
    %105 = arith.mulf %100, %104 : vector<8x8xf32>
    %106 = arith.truncf %105 : vector<8x8xf32> to vector<8x8xbf16>
    %cst_31 = arith.constant dense<0.000000e+00> : vector<8x8xf32>
    %107 = tpu.matmul %106, %90, %cst_31 {dimension_numbers = #tpu.dot_dimension_numbers<[1], [0], [0], [1], [0, 0, 1, 1], [], []>} : vector<8x8xbf16>, vector<8x8xbf16>, vector<8x8xf32> -> vector<8x8xf32>
    %108 = tpu.concatenate %38, %61, %84, %107 in 1 : vector<8x8xf32>, vector<8x8xf32>, vector<8x8xf32>, vector<8x8xf32> -> vector<8x32xf32>
    %c0_32 = arith.constant 0 : index
    %c0_33 = arith.constant 0 : index
    %c0_34 = arith.constant 0 : index
    %109 = vector.load %arg3[%c0_32, %c0_33, %c0_34] : memref<1x8x32xf32, #tpu.memory_space<vmem>>, vector<1x8x32xf32>
    %110 = vector.shape_cast %109 : vector<1x8x32xf32> to vector<8x32xf32>
    %111 = vector.shape_cast %108 : vector<8x32xf32> to vector<1x8x32xf32>
    tpu.vector_store %arg3[%c0_32, %c0_33, %c0_34], %111 {strides = array<i32>} : memref<1x8x32xf32, #tpu.memory_space<vmem>>, vector<1x8x32xf32>,
    return
  }
  func.func @transform_0(%arg0: i32) -> (i32, i32, i32) {
    %c0_i32 = arith.constant 0 : i32
    %c0_i32_0 = arith.constant 0 : i32
    %c0_i32_1 = arith.constant 0 : i32
    return %arg0, %c0_i32, %c0_i32_0 : i32, i32, i32
  }
  func.func @transform_1(%arg0: i32) -> (i32, i32, i32) {
    %c0_i32 = arith.constant 0 : i32
    %c0_i32_0 = arith.constant 0 : i32
    %c0_i32_1 = arith.constant 0 : i32
    return %arg0, %c0_i32, %c0_i32_0 : i32, i32, i32
  }
  func.func @transform_2(%arg0: i32) -> (i32, i32, i32) {
    %c0_i32 = arith.constant 0 : i32
    %c0_i32_0 = arith.constant 0 : i32
    %c0_i32_1 = arith.constant 0 : i32
    return %arg0, %c0_i32, %c0_i32_0 : i32, i32, i32
  }
}

module attributes {stable_mosaic.version = 11 : i64} {
  func.func @_attention_kernel(%arg0: i32, %arg1: memref<1x8x32xf32, #tpu.memory_space<vmem>>, %arg2: memref<1x8x64xf32, #tpu.memory_space<vmem>>, %arg3: memref<1x1x8xi32, #tpu.memory_space<vmem>>, %arg4: memref<1x8x32xf32, #tpu.memory_space<vmem>>) attributes {dimension_semantics = [#tpu.dimension_semantics<parallel>], iteration_bounds = array<i64: 2>, scalar_prefetch = 0 : i64, scratch_operands = 0 : i64, tpu.core_type = #tpu.core_type<tc>, window_params = [{transform_indices = @transform_0, window_bounds = array<i64: 1, 8, 32>}, {transform_indices = @transform_1, window_bounds = array<i64: 1, 8, 64>}, {transform_indices = @transform_2, window_bounds = array<i64: 1, 1, 8>}, {transform_indices = @transform_3, window_bounds = array<i64: 1, 8, 32>}]} {
    %c0 = arith.constant 0 : index
    %c0_0 = arith.constant 0 : index
    %c0_1 = arith.constant 0 : index
    %0 = vector.load %arg1[%c0, %c0_0, %c0_1] : memref<1x8x32xf32, #tpu.memory_space<vmem>>, vector<1x8x32xf32>
    %1 = vector.shape_cast %0 : vector<1x8x32xf32> to vector<8x32xf32>
    %c0_2 = arith.constant 0 : index
    %c0_3 = arith.constant 0 : index
    %c0_4 = arith.constant 0 : index
    %2 = vector.load %arg2[%c0_2, %c0_3, %c0_4] : memref<1x8x64xf32, #tpu.memory_space<vmem>>, vector<1x8x32xf32>
    %3 = vector.shape_cast %2 : vector<1x8x32xf32> to vector<8x32xf32>
    %c0_5 = arith.constant 0 : index
    %c0_6 = arith.constant 0 : index
    %c32 = arith.constant 32 : index
    %4 = vector.load %arg2[%c0_5, %c0_6, %c32] : memref<1x8x64xf32, #tpu.memory_space<vmem>>, vector<1x8x32xf32>
    %5 = vector.shape_cast %4 : vector<1x8x32xf32> to vector<8x32xf32>
    %c0_7 = arith.constant 0 : index
    %c0_8 = arith.constant 0 : index
    %c0_9 = arith.constant 0 : index
    %6 = vector.load %arg3[%c0_7, %c0_8, %c0_9] : memref<1x1x8xi32, #tpu.memory_space<vmem>>, vector<1x1x8xi32>
    %7 = vector.shape_cast %6 : vector<1x1x8xi32> to vector<1x8xi32>
    %c0_i32 = arith.constant 0 : i32
    %8 = vector.broadcast %c0_i32 : i32 to vector<1x8xi32>
    %9 = arith.cmpi sgt, %7, %8 : vector<1x8xi32>
    %10 = vector.shape_cast %9 : vector<1x8xi1> to vector<1x8xi1>
    %11 = vector.broadcast %10 : vector<1x8xi1> to vector<8x8xi1>
    %12 = vector.extract_strided_slice %1 {offsets = [0, 0], sizes = [8, 8], strides = [1, 1]} : vector<8x32xf32> to vector<8x8xf32>
    %13 = arith.truncf %12 : vector<8x8xf32> to vector<8x8xbf16>
    %14 = vector.extract_strided_slice %3 {offsets = [0, 0], sizes = [8, 8], strides = [1, 1]} : vector<8x32xf32> to vector<8x8xf32>
    %15 = arith.truncf %14 : vector<8x8xf32> to vector<8x8xbf16>
    %16 = vector.extract_strided_slice %5 {offsets = [0, 0], sizes = [8, 8], strides = [1, 1]} : vector<8x32xf32> to vector<8x8xf32>
    %17 = arith.truncf %16 : vector<8x8xf32> to vector<8x8xbf16>
    %cst = arith.constant dense<0.000000e+00> : vector<8x8xf32>
    %18 = tpu.matmul %13, %15, %cst {dimension_numbers = #tpu.dot_dimension_numbers<[1], [1], [0], [0], [0, 0, 1, 0], [], []>} : vector<8x8xbf16>, vector<8x8xbf16>, vector<8x8xf32> -> vector<8x8xf32>
    %cst_10 = arith.constant -1.000000e+09 : f32
    %19 = vector.broadcast %cst_10 : f32 to vector<8x8xf32>
    %20 = arith.select %11, %19, %18 : vector<8x8xi1>, vector<8x8xf32>
    %cst_11 = arith.constant 0.353553385 : f32
    %21 = vector.broadcast %cst_11 : f32 to vector<8x8xf32>
    %22 = arith.mulf %20, %21 : vector<8x8xf32>
    %cst_12 = arith.constant dense<0xFF800000> : vector<8xf32>
    %23 = vector.multi_reduction <maximumf>, %22, %cst_12 [1] : vector<8x8xf32> to vector<8xf32>
    %24 = vector.shape_cast %23 : vector<8xf32> to vector<8x1xf32>
    %25 = vector.broadcast %24 : vector<8x1xf32> to vector<8x8xf32>
    %26 = arith.subf %22, %25 : vector<8x8xf32>
    %27 = math.exp %26 : vector<8x8xf32>
    %cst_13 = arith.constant dense<0.000000e+00> : vector<8xf32>
    %28 = vector.multi_reduction <add>, %27, %cst_13 [1] : vector<8x8xf32> to vector<8xf32>
    %29 = vector.shape_cast %28 : vector<8xf32> to vector<8x1xf32>
    %30 = tpu.reciprocal %29 {approx = true} : vector<8x1xf32> -> vector<8x1xf32>
    %31 = vector.broadcast %30 : vector<8x1xf32> to vector<8x8xf32>
    %32 = arith.mulf %27, %31 : vector<8x8xf32>
    %33 = arith.truncf %32 : vector<8x8xf32> to vector<8x8xbf16>
    %cst_14 = arith.constant dense<0.000000e+00> : vector<8x8xf32>
    %34 = tpu.matmul %33, %17, %cst_14 {dimension_numbers = #tpu.dot_dimension_numbers<[1], [0], [0], [1], [0, 0, 1, 1], [], []>} : vector<8x8xbf16>, vector<8x8xbf16>, vector<8x8xf32> -> vector<8x8xf32>
    %35 = vector.extract_strided_slice %1 {offsets = [0, 8], sizes = [8, 8], strides = [1, 1]} : vector<8x32xf32> to vector<8x8xf32>
    %36 = arith.truncf %35 : vector<8x8xf32> to vector<8x8xbf16>
    %37 = vector.extract_strided_slice %3 {offsets = [0, 8], sizes = [8, 8], strides = [1, 1]} : vector<8x32xf32> to vector<8x8xf32>
    %38 = arith.truncf %37 : vector<8x8xf32> to vector<8x8xbf16>
    %39 = vector.extract_strided_slice %5 {offsets = [0, 8], sizes = [8, 8], strides = [1, 1]} : vector<8x32xf32> to vector<8x8xf32>
    %40 = arith.truncf %39 : vector<8x8xf32> to vector<8x8xbf16>
    %cst_15 = arith.constant dense<0.000000e+00> : vector<8x8xf32>
    %41 = tpu.matmul %36, %38, %cst_15 {dimension_numbers = #tpu.dot_dimension_numbers<[1], [1], [0], [0], [0, 0, 1, 0], [], []>} : vector<8x8xbf16>, vector<8x8xbf16>, vector<8x8xf32> -> vector<8x8xf32>
    %cst_16 = arith.constant -1.000000e+09 : f32
    %42 = vector.broadcast %cst_16 : f32 to vector<8x8xf32>
    %43 = arith.select %11, %42, %41 : vector<8x8xi1>, vector<8x8xf32>
    %cst_17 = arith.constant 0.353553385 : f32
    %44 = vector.broadcast %cst_17 : f32 to vector<8x8xf32>
    %45 = arith.mulf %43, %44 : vector<8x8xf32>
    %cst_18 = arith.constant dense<0xFF800000> : vector<8xf32>
    %46 = vector.multi_reduction <maximumf>, %45, %cst_18 [1] : vector<8x8xf32> to vector<8xf32>
    %47 = vector.shape_cast %46 : vector<8xf32> to vector<8x1xf32>
    %48 = vector.broadcast %47 : vector<8x1xf32> to vector<8x8xf32>
    %49 = arith.subf %45, %48 : vector<8x8xf32>
    %50 = math.exp %49 : vector<8x8xf32>
    %cst_19 = arith.constant dense<0.000000e+00> : vector<8xf32>
    %51 = vector.multi_reduction <add>, %50, %cst_19 [1] : vector<8x8xf32> to vector<8xf32>
    %52 = vector.shape_cast %51 : vector<8xf32> to vector<8x1xf32>
    %53 = tpu.reciprocal %52 {approx = true} : vector<8x1xf32> -> vector<8x1xf32>
    %54 = vector.broadcast %53 : vector<8x1xf32> to vector<8x8xf32>
    %55 = arith.mulf %50, %54 : vector<8x8xf32>
    %56 = arith.truncf %55 : vector<8x8xf32> to vector<8x8xbf16>
    %cst_20 = arith.constant dense<0.000000e+00> : vector<8x8xf32>
    %57 = tpu.matmul %56, %40, %cst_20 {dimension_numbers = #tpu.dot_dimension_numbers<[1], [0], [0], [1], [0, 0, 1, 1], [], []>} : vector<8x8xbf16>, vector<8x8xbf16>, vector<8x8xf32> -> vector<8x8xf32>
    %58 = vector.extract_strided_slice %1 {offsets = [0, 16], sizes = [8, 8], strides = [1, 1]} : vector<8x32xf32> to vector<8x8xf32>
    %59 = arith.truncf %58 : vector<8x8xf32> to vector<8x8xbf16>
    %60 = vector.extract_strided_slice %3 {offsets = [0, 16], sizes = [8, 8], strides = [1, 1]} : vector<8x32xf32> to vector<8x8xf32>
    %61 = arith.truncf %60 : vector<8x8xf32> to vector<8x8xbf16>
    %62 = vector.extract_strided_slice %5 {offsets = [0, 16], sizes = [8, 8], strides = [1, 1]} : vector<8x32xf32> to vector<8x8xf32>
    %63 = arith.truncf %62 : vector<8x8xf32> to vector<8x8xbf16>
    %cst_21 = arith.constant dense<0.000000e+00> : vector<8x8xf32>
    %64 = tpu.matmul %59, %61, %cst_21 {dimension_numbers = #tpu.dot_dimension_numbers<[1], [1], [0], [0], [0, 0, 1, 0], [], []>} : vector<8x8xbf16>, vector<8x8xbf16>, vector<8x8xf32> -> vector<8x8xf32>
    %cst_22 = arith.constant -1.000000e+09 : f32
    %65 = vector.broadcast %cst_22 : f32 to vector<8x8xf32>
    %66 = arith.select %11, %65, %64 : vector<8x8xi1>, vector<8x8xf32>
    %cst_23 = arith.constant 0.353553385 : f32
    %67 = vector.broadcast %cst_23 : f32 to vector<8x8xf32>
    %68 = arith.mulf %66, %67 : vector<8x8xf32>
    %cst_24 = arith.constant dense<0xFF800000> : vector<8xf32>
    %69 = vector.multi_reduction <maximumf>, %68, %cst_24 [1] : vector<8x8xf32> to vector<8xf32>
    %70 = vector.shape_cast %69 : vector<8xf32> to vector<8x1xf32>
    %71 = vector.broadcast %70 : vector<8x1xf32> to vector<8x8xf32>
    %72 = arith.subf %68, %71 : vector<8x8xf32>
    %73 = math.exp %72 : vector<8x8xf32>
    %cst_25 = arith.constant dense<0.000000e+00> : vector<8xf32>
    %74 = vector.multi_reduction <add>, %73, %cst_25 [1] : vector<8x8xf32> to vector<8xf32>
    %75 = vector.shape_cast %74 : vector<8xf32> to vector<8x1xf32>
    %76 = tpu.reciprocal %75 {approx = true} : vector<8x1xf32> -> vector<8x1xf32>
    %77 = vector.broadcast %76 : vector<8x1xf32> to vector<8x8xf32>
    %78 = arith.mulf %73, %77 : vector<8x8xf32>
    %79 = arith.truncf %78 : vector<8x8xf32> to vector<8x8xbf16>
    %cst_26 = arith.constant dense<0.000000e+00> : vector<8x8xf32>
    %80 = tpu.matmul %79, %63, %cst_26 {dimension_numbers = #tpu.dot_dimension_numbers<[1], [0], [0], [1], [0, 0, 1, 1], [], []>} : vector<8x8xbf16>, vector<8x8xbf16>, vector<8x8xf32> -> vector<8x8xf32>
    %81 = vector.extract_strided_slice %1 {offsets = [0, 24], sizes = [8, 8], strides = [1, 1]} : vector<8x32xf32> to vector<8x8xf32>
    %82 = arith.truncf %81 : vector<8x8xf32> to vector<8x8xbf16>
    %83 = vector.extract_strided_slice %3 {offsets = [0, 24], sizes = [8, 8], strides = [1, 1]} : vector<8x32xf32> to vector<8x8xf32>
    %84 = arith.truncf %83 : vector<8x8xf32> to vector<8x8xbf16>
    %85 = vector.extract_strided_slice %5 {offsets = [0, 24], sizes = [8, 8], strides = [1, 1]} : vector<8x32xf32> to vector<8x8xf32>
    %86 = arith.truncf %85 : vector<8x8xf32> to vector<8x8xbf16>
    %cst_27 = arith.constant dense<0.000000e+00> : vector<8x8xf32>
    %87 = tpu.matmul %82, %84, %cst_27 {dimension_numbers = #tpu.dot_dimension_numbers<[1], [1], [0], [0], [0, 0, 1, 0], [], []>} : vector<8x8xbf16>, vector<8x8xbf16>, vector<8x8xf32> -> vector<8x8xf32>
    %cst_28 = arith.constant -1.000000e+09 : f32
    %88 = vector.broadcast %cst_28 : f32 to vector<8x8xf32>
    %89 = arith.select %11, %88, %87 : vector<8x8xi1>, vector<8x8xf32>
    %cst_29 = arith.constant 0.353553385 : f32
    %90 = vector.broadcast %cst_29 : f32 to vector<8x8xf32>
    %91 = arith.mulf %89, %90 : vector<8x8xf32>
    %cst_30 = arith.constant dense<0xFF800000> : vector<8xf32>
    %92 = vector.multi_reduction <maximumf>, %91, %cst_30 [1] : vector<8x8xf32> to vector<8xf32>
    %93 = vector.shape_cast %92 : vector<8xf32> to vector<8x1xf32>
    %94 = vector.broadcast %93 : vector<8x1xf32> to vector<8x8xf32>
    %95 = arith.subf %91, %94 : vector<8x8xf32>
    %96 = math.exp %95 : vector<8x8xf32>
    %cst_31 = arith.constant dense<0.000000e+00> : vector<8xf32>
    %97 = vector.multi_reduction <add>, %96, %cst_31 [1] : vector<8x8xf32> to vector<8xf32>
    %98 = vector.shape_cast %97 : vector<8xf32> to vector<8x1xf32>
    %99 = tpu.reciprocal %98 {approx = true} : vector<8x1xf32> -> vector<8x1xf32>
    %100 = vector.broadcast %99 : vector<8x1xf32> to vector<8x8xf32>
    %101 = arith.mulf %96, %100 : vector<8x8xf32>
    %102 = arith.truncf %101 : vector<8x8xf32> to vector<8x8xbf16>
    %cst_32 = arith.constant dense<0.000000e+00> : vector<8x8xf32>
    %103 = tpu.matmul %102, %86, %cst_32 {dimension_numbers = #tpu.dot_dimension_numbers<[1], [0], [0], [1], [0, 0, 1, 1], [], []>} : vector<8x8xbf16>, vector<8x8xbf16>, vector<8x8xf32> -> vector<8x8xf32>
    %104 = tpu.concatenate %34, %57, %80, %103 in 1 : vector<8x8xf32>, vector<8x8xf32>, vector<8x8xf32>, vector<8x8xf32> -> vector<8x32xf32>
    %c0_33 = arith.constant 0 : index
    %c0_34 = arith.constant 0 : index
    %c0_35 = arith.constant 0 : index
    %105 = vector.load %arg4[%c0_33, %c0_34, %c0_35] : memref<1x8x32xf32, #tpu.memory_space<vmem>>, vector<1x8x32xf32>
    %106 = vector.shape_cast %105 : vector<1x8x32xf32> to vector<8x32xf32>
    %107 = vector.shape_cast %104 : vector<8x32xf32> to vector<1x8x32xf32>
    tpu.vector_store %arg4[%c0_33, %c0_34, %c0_35], %107 {strides = array<i32>} : memref<1x8x32xf32, #tpu.memory_space<vmem>>, vector<1x8x32xf32>,
    return
  }
  func.func @transform_0(%arg0: i32) -> (i32, i32, i32) {
    %c0_i32 = arith.constant 0 : i32
    %c0_i32_0 = arith.constant 0 : i32
    %c0_i32_1 = arith.constant 0 : i32
    return %arg0, %c0_i32, %c0_i32_0 : i32, i32, i32
  }
  func.func @transform_1(%arg0: i32) -> (i32, i32, i32) {
    %c0_i32 = arith.constant 0 : i32
    %c0_i32_0 = arith.constant 0 : i32
    %c0_i32_1 = arith.constant 0 : i32
    return %arg0, %c0_i32, %c0_i32_0 : i32, i32, i32
  }
  func.func @transform_2(%arg0: i32) -> (i32, i32, i32) {
    %c0_i32 = arith.constant 0 : i32
    %c0_i32_0 = arith.constant 0 : i32
    %c0_i32_1 = arith.constant 0 : i32
    return %arg0, %c0_i32, %c0_i32_0 : i32, i32, i32
  }
  func.func @transform_3(%arg0: i32) -> (i32, i32, i32) {
    %c0_i32 = arith.constant 0 : i32
    %c0_i32_0 = arith.constant 0 : i32
    %c0_i32_1 = arith.constant 0 : i32
    return %arg0, %c0_i32, %c0_i32_0 : i32, i32, i32
  }
}

module attributes {stable_mosaic.version = 11 : i64} {
  func.func @_fused_linear_kernel(%arg0: i32, %arg1: i32, %arg2: memref<16x32xf32, #tpu.memory_space<vmem>>, %arg3: memref<32x60xbf16, #tpu.memory_space<vmem>>, %arg4: memref<1x60xf32, #tpu.memory_space<vmem>>, %arg5: memref<16x60xf32, #tpu.memory_space<vmem>>) attributes {dimension_semantics = [#tpu.dimension_semantics<parallel>, #tpu.dimension_semantics<parallel>], iteration_bounds = array<i64: 1, 1>, scalar_prefetch = 0 : i64, scratch_operands = 0 : i64, tpu.core_type = #tpu.core_type<tc>, window_params = [{transform_indices = @transform_0, window_bounds = array<i64: 16, 32>}, {transform_indices = @transform_1, window_bounds = array<i64: 32, 60>}, {transform_indices = @transform_2, window_bounds = array<i64: 1, 60>}, {transform_indices = @transform_3, window_bounds = array<i64: 16, 60>}]} {
    %c0 = arith.constant 0 : index
    %c0_0 = arith.constant 0 : index
    %0 = vector.load %arg2[%c0, %c0_0] : memref<16x32xf32, #tpu.memory_space<vmem>>, vector<16x32xf32>
    %1 = arith.truncf %0 : vector<16x32xf32> to vector<16x32xbf16>
    %c0_1 = arith.constant 0 : index
    %c0_2 = arith.constant 0 : index
    %2 = vector.load %arg3[%c0_1, %c0_2] : memref<32x60xbf16, #tpu.memory_space<vmem>>, vector<32x60xbf16>
    %cst = arith.constant dense<0.000000e+00> : vector<16x60xf32>
    %3 = tpu.matmul %1, %2, %cst {dimension_numbers = #tpu.dot_dimension_numbers<[1], [0], [0], [1], [0, 0, 1, 1], [], []>} : vector<16x32xbf16>, vector<32x60xbf16>, vector<16x60xf32> -> vector<16x60xf32>
    %c0_3 = arith.constant 0 : index
    %c0_4 = arith.constant 0 : index
    %4 = vector.load %arg4[%c0_3, %c0_4] : memref<1x60xf32, #tpu.memory_space<vmem>>, vector<1x60xf32>
    %5 = vector.broadcast %4 : vector<1x60xf32> to vector<16x60xf32>
    %6 = arith.addf %3, %5 : vector<16x60xf32>
    %c0_5 = arith.constant 0 : index
    %c0_6 = arith.constant 0 : index
    %7 = vector.load %arg5[%c0_5, %c0_6] : memref<16x60xf32, #tpu.memory_space<vmem>>, vector<16x60xf32>
    tpu.vector_store %arg5[%c0_5, %c0_6], %6 {strides = array<i32>} : memref<16x60xf32, #tpu.memory_space<vmem>>, vector<16x60xf32>,
    return
  }
  func.func @transform_0(%arg0: i32, %arg1: i32) -> (i32, i32) {
    %c0_i32 = arith.constant 0 : i32
    %c0_i32_0 = arith.constant 0 : i32
    return %arg0, %c0_i32 : i32, i32
  }
  func.func @transform_1(%arg0: i32, %arg1: i32) -> (i32, i32) {
    %c0_i32 = arith.constant 0 : i32
    %c0_i32_0 = arith.constant 0 : i32
    return %c0_i32, %arg1 : i32, i32
  }
  func.func @transform_2(%arg0: i32, %arg1: i32) -> (i32, i32) {
    %c0_i32 = arith.constant 0 : i32
    %c0_i32_0 = arith.constant 0 : i32
    return %c0_i32, %arg1 : i32, i32
  }
  func.func @transform_3(%arg0: i32, %arg1: i32) -> (i32, i32) {
    %c0_i32 = arith.constant 0 : i32
    return %arg0, %arg1 : i32, i32
  }
}

</mosaic_0001>

<llo_original>
// kernel: _lambda_.27
$region0: #{_lambda_.27}
  #allocation0 [shape = 'u32[]', space=smem, size = 0x4, offset = 0x4, fixed_abs, tag = 'smem constant byte address 0x4 - core index']
  #allocation1 [shape = 'u32[144,128]{1,0:T(1,128)}', space=vmem, size = 0x12000, scoped, tag = 'internal scratch']
  %s0 = inlined_call_operand.vmem [shape: f32[16,32], index: 0, kind: input, shape index: {}]
  %s1 = inlined_call_operand.vmem [shape: bf16[32,32], index: 1, kind: input, shape index: {}]
  %s2 = inlined_call_operand.vmem [shape: f32[1,32], index: 2, kind: input, shape index: {}]
  %s3 = inlined_call_operand.vmem [shape: f32[16,32], index: 3, kind: input, shape index: {}]
  %s4 = inlined_call_operand.vmem [shape: f32[16,32], index: 4, kind: output, shape index: {}]
  %s5 = sld [smem:[#allocation0]]
  $region26: #{_lambda_.27} parent=0
    _
  %s7 = ssub.s32 1, %s5
  %s8 = scalar_select 0, %s7, %s5
  // Predicated region
  $region2: #{_lambda_.27} parent=0 // pred_check
    _
  $region3: #{_lambda_.27} parent=0 // pred_check_branch
    %10 = sbr.rel (0) target = $region5
  $region4: #{_lambda_.27} parent=0 // pred_region
    _
  $region5: #{_lambda_.27} parent=0 // pred_fallthru
    _
  // Predicated region
  $region6: #{_lambda_.27} parent=0 // pred_check
    _
  $region7: #{_lambda_.27} parent=0 // pred_check_branch
    %12 = sbr.rel (0) target = $region9
  $region8: #{_lambda_.27} parent=0 // pred_region
    _
  $region9: #{_lambda_.27} parent=0 // pred_fallthru
    _
  // Predicated region
  $region10: #{_lambda_.27} parent=0 // pred_check
    _
  $region11: #{_lambda_.27} parent=0 // pred_check_branch
    %14 = sbr.rel (0) target = $region13
  $region12: #{_lambda_.27} parent=0 // pred_region
    _
  $region13: #{_lambda_.27} parent=0 // pred_fallthru
    _
  // Predicated region
  $region14: #{_lambda_.27} parent=0 // pred_check
    _
  $region15: #{_lambda_.27} parent=0 // pred_check_branch
    %16 = sbr.rel (0) target = $region17
  $region16: #{_lambda_.27} parent=0 // pred_region
    _
  $region17: #{_lambda_.27} parent=0 // pred_fallthru
    _
  %v18 = vld [vmem:[%s0] sm:$0xff]
  %v19 = vld [vmem:[%s0 + $0x8] sm:$0xff]
  %v20 = vpack.c.bf16 %v19, %v18
  %v21 = vld [vmem:[%s1] sm:$0xf]
  %v22 = vld [vmem:[%s1 + $0x4] sm:$0xf]
  %v23 = vld [vmem:[%s1 + $0x8] sm:$0xf]
  %v24 = vld [vmem:[%s1 + $0xc] sm:$0xf]
  %v25 = vld [vmem:[%s2] sm:$0x1]
  %v27 = vlaneseq
  %v28 = vshrl.u32 %v27, 7
  %v29 = vsub.s32 0, %v28
  %v30 = vrot.slane %v25, %v29
  %v36 = vunpack.c.l.b16 %v21
  %v37 = vunpack.c.l.b16 %v22
  %v38 = vunpack.c.l.b16 %v23
  %v39 = vunpack.c.l.b16 %v24
  %v40 = vpack.c.b16 %v37, %v36
  %v41 = vpack.c.b16 %v39, %v38
  %vm44 = vcmask 261120
  %v46 = vsel %vm44, %v20, 0
  %48 = vmatprep.subr.bf16.mxu0 0
  %49 = vmatpush1.bf16.msra.mxu0 0
  %50 = vmatprep.subr.bf16.mxu0 0
  %51 = vmatpush1.bf16.msra.mxu0 0
  %52 = vmatprep.subr.bf16.mxu0 0
  %53 = vmatpush1.bf16.msra.mxu0 0
  %54 = vmatprep.subr.bf16.mxu0 0
  %55 = vmatpush1.bf16.msra.mxu0 0
  %56 = vmatprep.subr.bf16.mxu0 0
  %57 = vmatpush1.bf16.msra.mxu0 0
  %58 = vmatprep.subr.bf16.mxu0 0
  %59 = vmatpush1.bf16.msra.mxu0 0
  %60 = vmatprep.subr.bf16.mxu0 0
  %61 = vmatpush1.bf16.msra.mxu0 %v41
  %62 = vmatprep.subr.bf16.mxu0 0
  %63 = vmatpush1.bf16.msra.mxu0 %v40
  %64 = vmatprep.subr.bf16.mxu0 0
  %65 = vmatpush2.bf16.msra.mxu0 0
  %66 = vmatprep.subr.bf16.mxu0 0
  %67 = vmatpush2.bf16.msra.mxu0 0
  %68 = vmatprep.subr.bf16.mxu0 0
  %69 = vmatpush2.bf16.msra.mxu0 0
  %70 = vmatprep.subr.bf16.mxu0 0
  %71 = vmatpush2.bf16.msra.mxu0 0
  %72 = vmatprep.subr.bf16.mxu0 0
  %73 = vmatpush2.bf16.msra.mxu0 0
  %74 = vmatprep.subr.bf16.mxu0 0
  %75 = vmatpush2.bf16.msra.mxu0 0
  %76 = vmatprep.subr.bf16.mxu0 0
  %77 = vmatpush2.bf16.msra.mxu0 0
  %78 = vmatprep.subr.bf16.mxu0 0
  %79 = vmatpush2.bf16.msra.mxu0 0
  %80 = vmatprep.mubr.bf16.mxu0 0
  %81 = vmatmul.mubr.bf16.gmra.mxu0 %v46
  %v82 = vpop.f32.mrf.mxu0
  %v83 = vadd.f32 %v30, %v82
  %v84 = vpop.f32.mrf.mxu0
  %v85 = vpop.f32.mrf.mxu0
  %v86 = vadd.f32 %v30, %v85
  %v87 = vpop.f32.mrf.mxu0
  %88 = vdwg.mxu0
  %v89 = vld [vmem:[%s3] sm:$0xff]
  %v90 = vld [vmem:[%s3 + $0x8] sm:$0xff]
  %v91 = vadd.f32 %v83, %v89
  %v92 = vadd.f32 %v86, %v90
  %93 = vst.msk [vmem:[%s4] sm:$0xff] %vm44, %v91
  %94 = vst.msk [vmem:[%s4 + $0x8] sm:$0xff] %vm44, %v92
  // Predicated region
  $region18: #{_lambda_.27} parent=0 // pred_check
    _
  $region19: #{_lambda_.27} parent=0 // pred_check_branch
    %96 = sbr.rel (0) target = $region21
  $region20: #{_lambda_.27} parent=0 // pred_region
    _
  $region21: #{_lambda_.27} parent=0 // pred_fallthru
    _
  // Predicated region
  $region22: #{_lambda_.27} parent=0 // pred_check
    _
  $region23: #{_lambda_.27} parent=0 // pred_check_branch
    %98 = sbr.rel (0) target = $region25
  $region24: #{_lambda_.27} parent=0 // pred_region
    _
  $region25: #{_lambda_.27} parent=0 // pred_fallthru
    _

// kernel: _lambda_.25
$region0: #{_lambda_.25}
  #allocation0 [shape = 'u32[]', space=smem, size = 0x4, offset = 0x4, fixed_abs, tag = 'smem constant byte address 0x4 - core index']
  #allocation1 [shape = 'u32[144,128]{1,0:T(1,128)}', space=vmem, size = 0x12000, scoped, tag = 'internal scratch']
  %s0 = inlined_call_operand.vmem [shape: f32[16,32], index: 0, kind: input, shape index: {}]
  %s1 = inlined_call_operand.vmem [shape: bf16[32,96], index: 1, kind: input, shape index: {}]
  %s2 = inlined_call_operand.vmem [shape: f32[1,96], index: 2, kind: input, shape index: {}]
  %s3 = inlined_call_operand.vmem [shape: f32[1,32], index: 3, kind: input, shape index: {}]
  %s4 = inlined_call_operand.vmem [shape: f32[1,32], index: 4, kind: input, shape index: {}]
  %s5 = inlined_call_operand.vmem [shape: f32[16,96], index: 5, kind: output, shape index: {}]
  %s6 = sld [smem:[#allocation0]]
  $region30: #{_lambda_.25} parent=0
    _
  %s8 = ssub.s32 1, %s6
  %s9 = scalar_select 0, %s8, %s6
  // Predicated region
  $region2: #{_lambda_.25} parent=0 // pred_check
    _
  $region3: #{_lambda_.25} parent=0 // pred_check_branch
    %11 = sbr.rel (0) target = $region5
  $region4: #{_lambda_.25} parent=0 // pred_region
    _
  $region5: #{_lambda_.25} parent=0 // pred_fallthru
    _
  // Predicated region
  $region6: #{_lambda_.25} parent=0 // pred_check
    _
  $region7: #{_lambda_.25} parent=0 // pred_check_branch
    %13 = sbr.rel (0) target = $region9
  $region8: #{_lambda_.25} parent=0 // pred_region
    _
  $region9: #{_lambda_.25} parent=0 // pred_fallthru
    _
  // Predicated region
  $region10: #{_lambda_.25} parent=0 // pred_check
    _
  $region11: #{_lambda_.25} parent=0 // pred_check_branch
    %15 = sbr.rel (0) target = $region13
  $region12: #{_lambda_.25} parent=0 // pred_region
    _
  $region13: #{_lambda_.25} parent=0 // pred_fallthru
    _
  // Predicated region
  $region14: #{_lambda_.25} parent=0 // pred_check
    _
  $region15: #{_lambda_.25} parent=0 // pred_check_branch
    %17 = sbr.rel (0) target = $region17
  $region16: #{_lambda_.25} parent=0 // pred_region
    _
  $region17: #{_lambda_.25} parent=0 // pred_fallthru
    _
  // Predicated region
  $region18: #{_lambda_.25} parent=0 // pred_check
    _
  $region19: #{_lambda_.25} parent=0 // pred_check_branch
    %19 = sbr.rel (0) target = $region21
  $region20: #{_lambda_.25} parent=0 // pred_region
    _
  $region21: #{_lambda_.25} parent=0 // pred_fallthru
    _
  %v21 = vld [vmem:[%s0] sm:$0xff]
  %v22 = vld [vmem:[%s0 + $0x8] sm:$0xff]
  %vm23 = vcmask 261120
  %v24 = vsel %vm23, %v21, 0.0
  %25 = vadd.xlane.f32.xlu0 %v24
  %v26 = vpop.xlane.xlu0 %25
  %v27 = vsel %vm23, %v22, 0.0
  %28 = vadd.xlane.f32.xlu0 %v27
  %v29 = vpop.xlane.xlu0 %28
  %v30 = vrcp.pop 32.0
  %v31 = vmul.f32 %v26, %v30
  %v32 = vmul.f32 %v29, %v30
  %v33 = vsub.f32 %v21, %v31
  %v34 = vsub.f32 %v22, %v32
  %v35 = vmul.f32 %v33, %v33
  %v36 = vmul.f32 %v34, %v34
  %v37 = vsel %vm23, %v35, 0.0
  %38 = vadd.xlane.f32.xlu0 %v37
  %v39 = vpop.xlane.xlu0 %38
  %v40 = vsel %vm23, %v36, 0.0
  %41 = vadd.xlane.f32.xlu0 %v40
  %v42 = vpop.xlane.xlu0 %41
  %v43 = vmul.f32 %v39, %v30
  %v44 = vmul.f32 %v42, %v30
  %v45 = vadd.f32 %v43, 1e-05
  %v46 = vadd.f32 %v44, 1e-05
  %v47 = vrsqrt.pop %v45
  %v48 = vrsqrt.pop %v46
  %v49 = vmul.f32 %v33, %v47
  %v50 = vmul.f32 %v34, %v48
  %v51 = vld [vmem:[%s3] sm:$0x1]
  %v53 = vlaneseq
  %v54 = vshrl.u32 %v53, 7
  %v55 = vsub.s32 0, %v54
  %v56 = vrot.slane %v51, %v55
  %v58 = vmul.f32 %v49, %v56
  %v59 = vmul.f32 %v50, %v56
  %v60 = vld [vmem:[%s4] sm:$0x1]
  %v62 = vlaneseq
  %v63 = vshrl.u32 %v62, 7
  %v64 = vsub.s32 0, %v63
  %v65 = vrot.slane %v60, %v64
  %v67 = vadd.f32 %v58, %v65
  %v68 = vadd.f32 %v59, %v65
  %v69 = vpack.c.bf16 %v68, %v67
  %v70 = vld [vmem:[%s1] sm:$0xf]
  %v71 = vld [vmem:[%s1 + $0x4] sm:$0xf]
  %v72 = vld [vmem:[%s1 + $0x8] sm:$0xf]
  %v73 = vld [vmem:[%s1 + $0xc] sm:$0xf]
  %v74 = vld [vmem:[%s2] sm:$0x1]
  %v76 = vlaneseq
  %v77 = vshrl.u32 %v76, 7
  %v78 = vsub.s32 0, %v77
  %v79 = vrot.slane %v74, %v78
  %v85 = vunpack.c.l.b16 %v70
  %v86 = vunpack.c.l.b16 %v71
  %v87 = vunpack.c.l.b16 %v72
  %v88 = vunpack.c.l.b16 %v73
  %v89 = vpack.c.b16 %v86, %v85
  %v90 = vpack.c.b16 %v88, %v87
  %v94 = vsel %vm23, %v69, 0
  %96 = vmatprep.subr.bf16.mxu0 0
  %97 = vmatpush1.bf16.msra.mxu0 0
  %98 = vmatprep.subr.bf16.mxu0 0
  %99 = vmatpush1.bf16.msra.mxu0 0
  %100 = vmatprep.subr.bf16.mxu0 0
  %101 = vmatpush1.bf16.msra.mxu0 0
  %102 = vmatprep.subr.bf16.mxu0 0
  %103 = vmatpush1.bf16.msra.mxu0 0
  %104 = vmatprep.subr.bf16.mxu0 0
  %105 = vmatpush1.bf16.msra.mxu0 0
  %106 = vmatprep.subr.bf16.mxu0 0
  %107 = vmatpush1.bf16.msra.mxu0 0
  %108 = vmatprep.subr.bf16.mxu0 0
  %109 = vmatpush1.bf16.msra.mxu0 %v90
  %110 = vmatprep.subr.bf16.mxu0 0
  %111 = vmatpush1.bf16.msra.mxu0 %v89
  %112 = vmatprep.subr.bf16.mxu0 0
  %113 = vmatpush2.bf16.msra.mxu0 0
  %114 = vmatprep.subr.bf16.mxu0 0
  %115 = vmatpush2.bf16.msra.mxu0 0
  %116 = vmatprep.subr.bf16.mxu0 0
  %117 = vmatpush2.bf16.msra.mxu0 0
  %118 = vmatprep.subr.bf16.mxu0 0
  %119 = vmatpush2.bf16.msra.mxu0 0
  %120 = vmatprep.subr.bf16.mxu0 0
  %121 = vmatpush2.bf16.msra.mxu0 0
  %122 = vmatprep.subr.bf16.mxu0 0
  %123 = vmatpush2.bf16.msra.mxu0 0
  %124 = vmatprep.subr.bf16.mxu0 0
  %125 = vmatpush2.bf16.msra.mxu0 0
  %126 = vmatprep.subr.bf16.mxu0 0
  %127 = vmatpush2.bf16.msra.mxu0 0
  %128 = vmatprep.mubr.bf16.mxu0 0
  %129 = vmatmul.mubr.bf16.gmra.mxu0 %v94
  %v130 = vpop.f32.mrf.mxu0
  %v131 = vadd.f32 %v79, %v130
  %v132 = vpop.f32.mrf.mxu0
  %v133 = vpop.f32.mrf.mxu0
  %v134 = vadd.f32 %v79, %v133
  %v135 = vpop.f32.mrf.mxu0
  %136 = vdwg.mxu0
  %vm137 = vcmask 785408
  %138 = vst.msk [vmem:[%s5] sm:$0xff] %vm137, %v131
  %139 = vst.msk [vmem:[%s5 + $0x8] sm:$0xff] %vm137, %v134
  // Predicated region
  $region22: #{_lambda_.25} parent=0 // pred_check
    _
  $region23: #{_lambda_.25} parent=0 // pred_check_branch
    %141 = sbr.rel (0) target = $region25
  $region24: #{_lambda_.25} parent=0 // pred_region
    _
  $region25: #{_lambda_.25} parent=0 // pred_fallthru
    _
  // Predicated region
  $region26: #{_lambda_.25} parent=0 // pred_check
    _
  $region27: #{_lambda_.25} parent=0 // pred_check_branch
    %143 = sbr.rel (0) target = $region29
  $region28: #{_lambda_.25} parent=0 // pred_region
    _
  $region29: #{_lambda_.25} parent=0 // pred_fallthru
    _

// kernel: _lambda_.28
$region0: #{_lambda_.28}
  #allocation0 [shape = 'u32[]', space=smem, size = 0x4, offset = 0x4, fixed_abs, tag = 'smem constant byte address 0x4 - core index']
  #allocation1 [shape = 'u32[144,128]{1,0:T(1,128)}', space=vmem, size = 0x12000, scoped, tag = 'internal scratch']
  %s0 = inlined_call_operand.vmem [shape: f32[16,32], index: 0, kind: input, shape index: {}]
  %s1 = inlined_call_operand.vmem [shape: f32[1,32], index: 1, kind: input, shape index: {}]
  %s2 = inlined_call_operand.vmem [shape: f32[1,32], index: 2, kind: input, shape index: {}]
  %s3 = inlined_call_operand.vmem [shape: bf16[32,128], index: 3, kind: input, shape index: {}]
  %s4 = inlined_call_operand.vmem [shape: f32[1,128], index: 4, kind: input, shape index: {}]
  %s5 = inlined_call_operand.vmem [shape: bf16[128,32], index: 5, kind: input, shape index: {}]
  %s6 = inlined_call_operand.vmem [shape: f32[1,32], index: 6, kind: input, shape index: {}]
  %s7 = inlined_call_operand.vmem [shape: f32[16,32], index: 7, kind: output, shape index: {}]
  %s8 = sld [smem:[#allocation0]]
  $region38: #{_lambda_.28} parent=0
    _
  %s10 = ssub.s32 1, %s8
  %s11 = scalar_select 0, %s10, %s8
  // Predicated region
  $region2: #{_lambda_.28} parent=0 // pred_check
    _
  $region3: #{_lambda_.28} parent=0 // pred_check_branch
    %13 = sbr.rel (0) target = $region5
  $region4: #{_lambda_.28} parent=0 // pred_region
    _
  $region5: #{_lambda_.28} parent=0 // pred_fallthru
    _
  // Predicated region
  $region6: #{_lambda_.28} parent=0 // pred_check
    _
  $region7: #{_lambda_.28} parent=0 // pred_check_branch
    %15 = sbr.rel (0) target = $region9
  $region8: #{_lambda_.28} parent=0 // pred_region
    _
  $region9: #{_lambda_.28} parent=0 // pred_fallthru
    _
  // Predicated region
  $region10: #{_lambda_.28} parent=0 // pred_check
    _
  $region11: #{_lambda_.28} parent=0 // pred_check_branch
    %17 = sbr.rel (0) target = $region13
  $region12: #{_lambda_.28} parent=0 // pred_region
    _
  $region13: #{_lambda_.28} parent=0 // pred_fallthru
    _
  // Predicated region
  $region14: #{_lambda_.28} parent=0 // pred_check
    _
  $region15: #{_lambda_.28} parent=0 // pred_check_branch
    %19 = sbr.rel (0) target = $region17
  $region16: #{_lambda_.28} parent=0 // pred_region
    _
  $region17: #{_lambda_.28} parent=0 // pred_fallthru
    _
  // Predicated region
  $region18: #{_lambda_.28} parent=0 // pred_check
    _
  $region19: #{_lambda_.28} parent=0 // pred_check_branch
    %21 = sbr.rel (0) target = $region21
  $region20: #{_lambda_.28} parent=0 // pred_region
    _
  $region21: #{_lambda_.28} parent=0 // pred_fallthru
    _
  // Predicated region
  $region22: #{_lambda_.28} parent=0 // pred_check
    _
  $region23: #{_lambda_.28} parent=0 // pred_check_branch
    %23 = sbr.rel (0) target = $region25
  $region24: #{_lambda_.28} parent=0 // pred_region
    _
  $region25: #{_lambda_.28} parent=0 // pred_fallthru
    _
  // Predicated region
  $region26: #{_lambda_.28} parent=0 // pred_check
    _
  $region27: #{_lambda_.28} parent=0 // pred_check_branch
    %25 = sbr.rel (0) target = $region29
  $region28: #{_lambda_.28} parent=0 // pred_region
    _
  $region29: #{_lambda_.28} parent=0 // pred_fallthru
    _
  %v27 = vld [vmem:[%s0] sm:$0xff]
  %v28 = vld [vmem:[%s0 + $0x8] sm:$0xff]
  %vm29 = vcmask 261120
  %v30 = vsel %vm29, %v27, 0.0
  %31 = vadd.xlane.f32.xlu0 %v30
  %v32 = vpop.xlane.xlu0 %31
  %v33 = vsel %vm29, %v28, 0.0
  %34 = vadd.xlane.f32.xlu0 %v33
  %v35 = vpop.xlane.xlu0 %34
  %v36 = vrcp.pop 32.0
  %v37 = vmul.f32 %v32, %v36
  %v38 = vmul.f32 %v35, %v36
  %v39 = vsub.f32 %v27, %v37
  %v40 = vsub.f32 %v28, %v38
  %v41 = vmul.f32 %v39, %v39
  %v42 = vmul.f32 %v40, %v40
  %v43 = vsel %vm29, %v41, 0.0
  %44 = vadd.xlane.f32.xlu0 %v43
  %v45 = vpop.xlane.xlu0 %44
  %v46 = vsel %vm29, %v42, 0.0
  %47 = vadd.xlane.f32.xlu0 %v46
  %v48 = vpop.xlane.xlu0 %47
  %v49 = vmul.f32 %v45, %v36
  %v50 = vmul.f32 %v48, %v36
  %v51 = vadd.f32 %v49, 1e-05
  %v52 = vadd.f32 %v50, 1e-05
  %v53 = vrsqrt.pop %v51
  %v54 = vrsqrt.pop %v52
  %v55 = vmul.f32 %v39, %v53
  %v56 = vmul.f32 %v40, %v54
  %v57 = vld [vmem:[%s1] sm:$0x1]
  %v59 = vlaneseq
  %v60 = vshrl.u32 %v59, 7
  %v61 = vsub.s32 0, %v60
  %v62 = vrot.slane %v57, %v61
  %v64 = vmul.f32 %v55, %v62
  %v65 = vmul.f32 %v56, %v62
  %v66 = vld [vmem:[%s2] sm:$0x1]
  %v68 = vlaneseq
  %v69 = vshrl.u32 %v68, 7
  %v70 = vsub.s32 0, %v69
  %v71 = vrot.slane %v66, %v70
  %v73 = vadd.f32 %v64, %v71
  %v74 = vadd.f32 %v65, %v71
  %v75 = vpack.c.bf16 %v74, %v73
  %v76 = vld [vmem:[%s3] sm:$0xf]
  %v77 = vld [vmem:[%s3 + $0x4] sm:$0xf]
  %v78 = vld [vmem:[%s3 + $0x8] sm:$0xf]
  %v79 = vld [vmem:[%s3 + $0xc] sm:$0xf]
  %v80 = vld [vmem:[%s4] sm:$0x1]
  %v82 = vlaneseq
  %v83 = vshrl.u32 %v82, 7
  %v84 = vsub.s32 0, %v83
  %v85 = vrot.slane %v80, %v84
  %v91 = vunpack.c.l.b16 %v76
  %v92 = vunpack.c.l.b16 %v77
  %v93 = vunpack.c.l.b16 %v78
  %v94 = vunpack.c.l.b16 %v79
  %v95 = vpack.c.b16 %v92, %v91
  %v96 = vpack.c.b16 %v94, %v93
  %v100 = vsel %vm29, %v75, 0
  %102 = vmatprep.subr.bf16.mxu0 0
  %103 = vmatpush1.bf16.msra.mxu0 0
  %104 = vmatprep.subr.bf16.mxu0 0
  %105 = vmatpush1.bf16.msra.mxu0 0
  %106 = vmatprep.subr.bf16.mxu0 0
  %107 = vmatpush1.bf16.msra.mxu0 0
  %108 = vmatprep.subr.bf16.mxu0 0
  %109 = vmatpush1.bf16.msra.mxu0 0
  %110 = vmatprep.subr.bf16.mxu0 0
  %111 = vmatpush1.bf16.msra.mxu0 0
  %112 = vmatprep.subr.bf16.mxu0 0
  %113 = vmatpush1.bf16.msra.mxu0 0
  %114 = vmatprep.subr.bf16.mxu0 0
  %115 = vmatpush1.bf16.msra.mxu0 %v96
  %116 = vmatprep.subr.bf16.mxu0 0
  %117 = vmatpush1.bf16.msra.mxu0 %v95
  %118 = vmatprep.subr.bf16.mxu0 0
  %119 = vmatpush2.bf16.msra.mxu0 0
  %120 = vmatprep.subr.bf16.mxu0 0
  %121 = vmatpush2.bf16.msra.mxu0 0
  %122 = vmatprep.subr.bf16.mxu0 0
  %123 = vmatpush2.bf16.msra.mxu0 0
  %124 = vmatprep.subr.bf16.mxu0 0
  %125 = vmatpush2.bf16.msra.mxu0 0
  %126 = vmatprep.subr.bf16.mxu0 0
  %127 = vmatpush2.bf16.msra.mxu0 0
  %128 = vmatprep.subr.bf16.mxu0 0
  %129 = vmatpush2.bf16.msra.mxu0 0
  %130 = vmatprep.subr.bf16.mxu0 0
  %131 = vmatpush2.bf16.msra.mxu0 0
  %132 = vmatprep.subr.bf16.mxu0 0
  %133 = vmatpush2.bf16.msra.mxu0 0
  %134 = vmatprep.mubr.bf16.mxu0 0
  %135 = vmatmul.mubr.bf16.gmra.mxu0 %v100
  %v136 = vpop.f32.mrf.mxu0
  %v137 = vadd.f32 %v85, %v136
  %v138 = vpop.f32.mrf.mxu0
  %v139 = vpop.f32.mrf.mxu0
  %v140 = vadd.f32 %v85, %v139
  %v141 = vpop.f32.mrf.mxu0
  %142 = vdwg.mxu0
  %v143 = vmax.f32 %v137, 0.0
  %v144 = vmax.f32 %v140, 0.0
  %v145 = vpack.c.bf16 %v144, %v143
  %v146 = vld [vmem:[%s5] sm:$0xf]
  %v147 = vld [vmem:[%s5 + $0x4] sm:$0xf]
  %v148 = vld [vmem:[%s5 + $0x8] sm:$0xf]
  %v149 = vld [vmem:[%s5 + $0xc] sm:$0xf]
  %v150 = vld [vmem:[%s5 + $0x10] sm:$0xf]
  %v151 = vld [vmem:[%s5 + $0x14] sm:$0xf]
  %v152 = vld [vmem:[%s5 + $0x18] sm:$0xf]
  %v153 = vld [vmem:[%s5 + $0x1c] sm:$0xf]
  %v154 = vld [vmem:[%s5 + $0x20] sm:$0xf]
  %v155 = vld [vmem:[%s5 + $0x24] sm:$0xf]
  %v156 = vld [vmem:[%s5 + $0x28] sm:$0xf]
  %v157 = vld [vmem:[%s5 + $0x2c] sm:$0xf]
  %v158 = vld [vmem:[%s5 + $0x30] sm:$0xf]
  %v159 = vld [vmem:[%s5 + $0x34] sm:$0xf]
  %v160 = vld [vmem:[%s5 + $0x38] sm:$0xf]
  %v161 = vld [vmem:[%s5 + $0x3c] sm:$0xf]
  %v162 = vld [vmem:[%s6] sm:$0x1]
  %v164 = vlaneseq
  %v165 = vshrl.u32 %v164, 7
  %v166 = vsub.s32 0, %v165
  %v167 = vrot.slane %v162, %v166
  %v185 = vunpack.c.l.b16 %v146
  %v186 = vunpack.c.l.b16 %v147
  %v187 = vunpack.c.l.b16 %v148
  %v188 = vunpack.c.l.b16 %v149
  %v189 = vunpack.c.l.b16 %v150
  %v190 = vunpack.c.l.b16 %v151
  %v191 = vunpack.c.l.b16 %v152
  %v192 = vunpack.c.l.b16 %v153
  %v193 = vunpack.c.l.b16 %v154
  %v194 = vunpack.c.l.b16 %v155
  %v195 = vunpack.c.l.b16 %v156
  %v196 = vunpack.c.l.b16 %v157
  %v197 = vunpack.c.l.b16 %v158
  %v198 = vunpack.c.l.b16 %v159
  %v199 = vunpack.c.l.b16 %v160
  %v200 = vunpack.c.l.b16 %v161
  %v201 = vpack.c.b16 %v186, %v185
  %v202 = vpack.c.b16 %v188, %v187
  %v203 = vpack.c.b16 %v190, %v189
  %v204 = vpack.c.b16 %v192, %v191
  %v205 = vpack.c.b16 %v194, %v193
  %v206 = vpack.c.b16 %v196, %v195
  %v207 = vpack.c.b16 %v198, %v197
  %v208 = vpack.c.b16 %v200, %v199
  %217 = vmatprep.subr.bf16.mxu0 0
  %218 = vmatpush1.bf16.msra.mxu0 %v208
  %219 = vmatprep.subr.bf16.mxu0 0
  %220 = vmatpush1.bf16.msra.mxu0 %v207
  %221 = vmatprep.subr.bf16.mxu0 0
  %222 = vmatpush1.bf16.msra.mxu0 %v206
  %223 = vmatprep.subr.bf16.mxu0 0
  %224 = vmatpush1.bf16.msra.mxu0 %v205
  %225 = vmatprep.subr.bf16.mxu0 0
  %226 = vmatpush1.bf16.msra.mxu0 %v204
  %227 = vmatprep.subr.bf16.mxu0 0
  %228 = vmatpush1.bf16.msra.mxu0 %v203
  %229 = vmatprep.subr.bf16.mxu0 0
  %230 = vmatpush1.bf16.msra.mxu0 %v202
  %231 = vmatprep.subr.bf16.mxu0 0
  %232 = vmatpush1.bf16.msra.mxu0 %v201
  %233 = vmatprep.subr.bf16.mxu0 0
  %234 = vmatpush2.bf16.msra.mxu0 0
  %235 = vmatprep.subr.bf16.mxu0 0
  %236 = vmatpush2.bf16.msra.mxu0 0
  %237 = vmatprep.subr.bf16.mxu0 0
  %238 = vmatpush2.bf16.msra.mxu0 0
  %239 = vmatprep.subr.bf16.mxu0 0
  %240 = vmatpush2.bf16.msra.mxu0 0
  %241 = vmatprep.subr.bf16.mxu0 0
  %242 = vmatpush2.bf16.msra.mxu0 0
  %243 = vmatprep.subr.bf16.mxu0 0
  %244 = vmatpush2.bf16.msra.mxu0 0
  %245 = vmatprep.subr.bf16.mxu0 0
  %246 = vmatpush2.bf16.msra.mxu0 0
  %247 = vmatprep.subr.bf16.mxu0 0
  %248 = vmatpush2.bf16.msra.mxu0 0
  %249 = vmatprep.mubr.bf16.mxu0 0
  %250 = vmatmul.mubr.bf16.gmra.mxu0 %v145
  %v251 = vpop.f32.mrf.mxu0
  %v252 = vadd.f32 %v167, %v251
  %v253 = vpop.f32.mrf.mxu0
  %v254 = vpop.f32.mrf.mxu0
  %v255 = vadd.f32 %v167, %v254
  %v256 = vpop.f32.mrf.mxu0
  %257 = vdwg.mxu0
  %v258 = vadd.f32 %v27, %v252
  %v259 = vadd.f32 %v28, %v255
  %260 = vst.msk [vmem:[%s7] sm:$0xff] %vm29, %v258
  %261 = vst.msk [vmem:[%s7 + $0x8] sm:$0xff] %vm29, %v259
  // Predicated region
  $region30: #{_lambda_.28} parent=0 // pred_check
    _
  $region31: #{_lambda_.28} parent=0 // pred_check_branch
    %263 = sbr.rel (0) target = $region33
  $region32: #{_lambda_.28} parent=0 // pred_region
    _
  $region33: #{_lambda_.28} parent=0 // pred_fallthru
    _
  // Predicated region
  $region34: #{_lambda_.28} parent=0 // pred_check
    _
  $region35: #{_lambda_.28} parent=0 // pred_check_branch
    %265 = sbr.rel (0) target = $region37
  $region36: #{_lambda_.28} parent=0 // pred_region
    _
  $region37: #{_lambda_.28} parent=0 // pred_fallthru
    _

// kernel: _lambda_.26
$region0: #{_lambda_.26}
  #allocation0 [shape = 'u32[]', space=smem, size = 0x4, offset = 0x4, fixed_abs, tag = 'smem constant byte address 0x4 - core index']
  #allocation1 [shape = 'u32[144,128]{1,0:T(1,128)}', space=vmem, size = 0x12000, scoped, tag = 'internal scratch']
  %s0 = inlined_call_operand.vmem [shape: f32[2,8,96], index: 0, kind: input, shape index: {}]
  %s1 = inlined_call_operand.vmem [shape: s32[2,1,8], index: 1, kind: input, shape index: {}]
  %s2 = inlined_call_operand.vmem [shape: f32[2,8,32], index: 2, kind: output, shape index: {}]
  %s3 = sld [smem:[#allocation0]]
  $region41: #{_lambda_.26} parent=0
    _
  %s5 = ssub.s32 1, %s3
  %s6 = scalar_select 0, %s5, %s3
  loop: start=0, step=1, limit=4
  $region2: #{_lambda_.26} parent=0 // loop_pre_header
    _
  $region3: #{_lambda_.26} parent=0 // loop_header
    %s8 = sphi 0, %s12
    %p9 = scmp.ge.s32.totalorder %s8, 4
    %s18 = sphi 0, %s20
    %s21 = sphi 0, %s18
    %s22 = sphi 0, %s21
    %s38 = sphi 0, %s22
    %s44 = sphi 0, %s46
    %s47 = sphi 0, %s44
    %s48 = sphi 0, %s47
    %s64 = sphi 0, %s48
    %s70 = sphi 0, %s72
    %s73 = sphi 0, %s70
    %s74 = sphi 0, %s73
    %s90 = sphi 0, %s74
  $region4: #{_lambda_.26} parent=0 // loop_header_branch
    %11 = sbr.rel (%p9) target = $region8
  $region5: #{_lambda_.26} parent=0 // loop_body
    %s13 = ssub.s32 %s8, 1
    %s14 = ssub.s32 %s8, 2
    %s15 = sadd.s32 %s8, 1
    %s16 = ssub.s32 %s8, %s15
    %p17 = scmp.eq.s32.totalorder %s16, 0
    %s19 = sadd.s32 %s18, 1
    %s20 = scalar_select %p17, %s18, %s19
    %p23 = pneg %p17
    %p24 = scmp.eq.s32.totalorder %s8, 1
    %p25 = por %p23, %p24
    %p26 = scmp.ne.s32.totalorder %s18, %s21
    %p27 = scmp.eq.s32.totalorder %s8, 0
    %p28 = por %p26, %p27
    %p29 = scmp.ne.s32.totalorder %s18, %s21
    %p30 = scmp.eq.s32.totalorder %s13, 1
    %p31 = por %p29, %p30
    %p32 = scmp.ne.s32.totalorder %s21, %s22
    %p33 = scmp.eq.s32.totalorder %s13, 0
    %p34 = por %p32, %p33
    %p35 = scmp.ne.s32.totalorder %s21, %s22
    %p36 = scmp.eq.s32.totalorder %s14, 1
    %p37 = por %p35, %p36
    %p39 = scmp.ne.s32.totalorder %s22, %s38
    %p40 = scmp.eq.s32.totalorder %s14, 0
    %p41 = por %p39, %p40
    %s42 = ssub.s32 %s8, %s15
    %p43 = scmp.eq.s32.totalorder %s42, 0
    %s45 = sadd.s32 %s44, 1
    %s46 = scalar_select %p43, %s44, %s45
    %p49 = pneg %p43
    %p50 = scmp.eq.s32.totalorder %s8, 1
    %p51 = por %p49, %p50
    %p52 = scmp.ne.s32.totalorder %s44, %s47
    %p53 = scmp.eq.s32.totalorder %s8, 0
    %p54 = por %p52, %p53
    %p55 = scmp.ne.s32.totalorder %s44, %s47
    %p56 = scmp.eq.s32.totalorder %s13, 1
    %p57 = por %p55, %p56
    %p58 = scmp.ne.s32.totalorder %s47, %s48
    %p59 = scmp.eq.s32.totalorder %s13, 0
    %p60 = por %p58, %p59
    %p61 = scmp.ne.s32.totalorder %s47, %s48
    %p62 = scmp.eq.s32.totalorder %s14, 1
    %p63 = por %p61, %p62
    %p65 = scmp.ne.s32.totalorder %s48, %s64
    %p66 = scmp.eq.s32.totalorder %s14, 0
    %p67 = por %p65, %p66
    %s68 = ssub.s32 %s8, %s15
    %p69 = scmp.eq.s32.totalorder %s68, 0
    %s71 = sadd.s32 %s70, 1
    %s72 = scalar_select %p69, %s70, %s71
    %p75 = pneg %p69
    %p76 = scmp.eq.s32.totalorder %s8, 1
    %p77 = por %p75, %p76
    %p78 = scmp.ne.s32.totalorder %s70, %s73
    %p79 = scmp.eq.s32.totalorder %s8, 0
    %p80 = por %p78, %p79
    %p81 = scmp.ne.s32.totalorder %s70, %s73
    %p82 = scmp.eq.s32.totalorder %s13, 1
    %p83 = por %p81, %p82
    %p84 = scmp.ne.s32.totalorder %s73, %s74
    %p85 = scmp.eq.s32.totalorder %s13, 0
    %p86 = por %p84, %p85
    %p87 = scmp.ne.s32.totalorder %s73, %s74
    %p88 = scmp.eq.s32.totalorder %s14, 1
    %p89 = por %p87, %p88
    %p91 = scmp.ne.s32.totalorder %s74, %s90
    %p92 = scmp.eq.s32.totalorder %s14, 0
    %p93 = por %p91, %p92
    %p94 = scmp.le.s32.totalorder 1, %s8
    %p95 = scmp.lt.s32.totalorder %s8, 3
    %p96 = pnand %p94, %p95
    %p97 = pneg %p96
    // Predicated region
    $region9: #{_lambda_.26} parent=5 // pred_check
      _
    $region10: #{_lambda_.26} parent=5 // pred_check_branch
      %99 = sbr.rel (%p96) target = $region12
    $region11: #{_lambda_.26} parent=5 // pred_region
      %s100 = ssub.s32 %s8, 1
    $region12: #{_lambda_.26} parent=5 // pred_fallthru
      _
    %p101 = scmp.lt.s32.totalorder %s8, 2
    // Predicated region
    $region13: #{_lambda_.26} parent=5 // pred_check
      %p102 = pneg %p101
    $region14: #{_lambda_.26} parent=5 // pred_check_branch
      %104 = sbr.rel (%p102) target = $region16
    $region15: #{_lambda_.26} parent=5 // pred_region
      // Predicated region
      $region17: #{_lambda_.26} parent=15 // pred_check
        %p105 = pneg %p28
      $region18: #{_lambda_.26} parent=15 // pred_check_branch
        %107 = sbr.rel (%p105) target = $region20
      $region19: #{_lambda_.26} parent=15 // pred_region
        %p108 = scmp.lt.s32.totalorder %s8, 1
        %s109 = scalar_select %p108, %s8, 1
        %s110 = smul.addr %s109, 8
        %s111 = scalar_lea.vmem %s0, %s110
      $region20: #{_lambda_.26} parent=15 // pred_fallthru
        _
      // Predicated region
      $region21: #{_lambda_.26} parent=15 // pred_check
        %p112 = pneg %p54
      $region22: #{_lambda_.26} parent=15 // pred_check_branch
        %114 = sbr.rel (%p112) target = $region24
      $region23: #{_lambda_.26} parent=15 // pred_region
        %p115 = scmp.lt.s32.totalorder %s8, 1
        %s116 = scalar_select %p115, %s8, 1
        %s117 = scalar_lea.vmem %s1, %s116
      $region24: #{_lambda_.26} parent=15 // pred_fallthru
        _
    $region16: #{_lambda_.26} parent=5 // pred_fallthru
      _
    %p118 = scmp.le.s32.totalorder 1, %s8
    %p119 = scmp.lt.s32.totalorder %s8, 3
    %p120 = pnand %p118, %p119
    %p121 = pneg %p120
    // Predicated region
    $region25: #{_lambda_.26} parent=5 // pred_check
      _
    $region26: #{_lambda_.26} parent=5 // pred_check_branch
      %123 = sbr.rel (%p120) target = $region28
    $region27: #{_lambda_.26} parent=5 // pred_region
      %s124 = ssub.s32 %s8, 1
      %p125 = scmp.lt.s32.totalorder %s13, 1
      %s126 = scalar_select %p125, %s13, 1
      %s127 = smul.addr %s126, 8
      %s128 = scalar_lea.vmem %s0, %s127
      %p129 = pneg %p34
      %p130 = pneg %p31
      %p131 = scmp.lt.s32.totalorder %s13, 1
      %s132 = scalar_select %p131, %s13, 1
      %s133 = scalar_lea.vmem %s1, %s132
      %p134 = pneg %p60
      %p135 = pneg %p57
      %p136 = pneg %p86
      %p137 = pneg %p83
      %p138 = scmp.lt.s32.totalorder %s13, 1
      %s139 = scalar_select %p138, %s13, 1
      %s140 = smul.addr %s139, 8
      %s141 = scalar_lea.vmem %s2, %s140
      %p142 = scmp.lt.s32.totalorder %s13, 1
      %s143 = scalar_select %p142, %s13, 1
      %s144 = smul.addr %s143, 8
      %s145 = scalar_lea.vmem %s0, %s144
      %p146 = scmp.lt.s32.totalorder %s13, 1
      %s147 = scalar_select %p146, %s13, 1
      %s148 = scalar_lea.vmem %s1, %s147
      %p149 = scmp.lt.s32.totalorder %s13, 1
      %s150 = scalar_select %p149, %s13, 1
      %s151 = smul.addr %s150, 8
      %s152 = scalar_lea.vmem %s2, %s151
      %v154 = vld [vmem:[%s145] sm:$0xff]
      %v155 = vld [vmem:[%s148] sm:$0x1]
      %vm156 = vcmp.gt.s32.totalorder %v155, 0
      %v157 = vsel %vm156, 1, 0
      %v158 = vlaneseq
      %v159 = vshrl.u32 %v158, 7
      %v160 = vsub.s32 0, %v159
      %v161 = vrot.slane %v157, %v160
      %vm162 = vcmp.eq.s32.totalorder %v161, 1
      %v163 = vpack.c.bf16 %v154, %v154
      %165 = vrot.lane.b32.xlu0 %v163, 96
      %v166 = vpop.permute.xlu0 %165
      %vm167 = vcmask 64512
      %v169 = vsel %vm167, %v163, 0
      %v172 = vsel %vm167, %v166, 0
      %174 = vmatprep.subr.bf16.mxu0 0
      %175 = vmatpush1.bf16.xpose.msra.mxu0 0
      %176 = vmatprep.subr.bf16.mxu0 0
      %177 = vmatpush1.bf16.xpose.msra.mxu0 0
      %178 = vmatprep.subr.bf16.mxu0 0
      %179 = vmatpush1.bf16.xpose.msra.mxu0 0
      %180 = vmatprep.subr.bf16.mxu0 0
      %181 = vmatpush1.bf16.xpose.msra.mxu0 0
      %182 = vmatprep.subr.bf16.mxu0 0
      %183 = vmatpush1.bf16.xpose.msra.mxu0 0
      %184 = vmatprep.subr.bf16.mxu0 0
      %185 = vmatpush1.bf16.xpose.msra.mxu0 0
      %186 = vmatprep.subr.bf16.mxu0 0
      %187 = vmatpush1.bf16.xpose.msra.mxu0 0
      %188 = vmatprep.subr.bf16.mxu0 0
      %189 = vmatpush1.bf16.xpose.msra.mxu0 %v172
      %190 = vmatprep.subr.bf16.mxu0 0
      %191 = vmatpush2.bf16.xpose.msra.mxu0 0
      %192 = vmatprep.subr.bf16.mxu0 0
      %193 = vmatpush2.bf16.xpose.msra.mxu0 0
      %194 = vmatprep.subr.bf16.mxu0 0
      %195 = vmatpush2.bf16.xpose.msra.mxu0 0
      %196 = vmatprep.subr.bf16.mxu0 0
      %197 = vmatpush2.bf16.xpose.msra.mxu0 0
      %198 = vmatprep.subr.bf16.mxu0 0
      %199 = vmatpush2.bf16.xpose.msra.mxu0 0
      %200 = vmatprep.subr.bf16.mxu0 0
      %201 = vmatpush2.bf16.xpose.msra.mxu0 0
      %202 = vmatprep.subr.bf16.mxu0 0
      %203 = vmatpush2.bf16.xpose.msra.mxu0 0
      %204 = vmatprep.subr.bf16.mxu0 0
      %205 = vmatpush2.bf16.xpose.msra.mxu0 0
      %206 = vmatprep.mubr.bf16.mxu0 0
      %207 = vmatmul.mubr.bf16.gmra.mxu0 %v169
      %v208 = vpop.f32.mrf.mxu0
      %v209 = vadd.f32 0.0, %v208
      %v210 = vpop.f32.mrf.mxu0
      %v211 = vpop.f32.mrf.mxu0
      %v212 = vpop.f32.mrf.mxu0
      %213 = vdwg.mxu0
      %v214 = vsel %vm162, -1e+09, %v209
      %v215 = vmul.f32 %v214, 0.35355338
      %v216 = vsel %vm167, %v215, -inf
      %217 = vmax.xlane.f32.xlu0 %v216
      %v218 = vpop.xlane.xlu0 %217
      %v219 = vsub.f32 %v215, %v218
      %v220 = vmul.f32 %v219, 1.442695
      %v221 = vpow.pop %v220
      %v222 = vsel %vm167, %v221, 0.0
      %223 = vadd.xlane.f32.xlu0 %v222
      %v224 = vpop.xlane.xlu0 %223
      %v225 = vrcp.pop %v224
      %v226 = vmul.f32 %v221, %v225
      %v227 = vpack.c.bf16 %v226, %v226
      %228 = vrot.lane.b32.xlu0 %v163, 64
      %v229 = vpop.permute.xlu0 %228
      %v231 = vsel %vm167, %v227, 0
      %vm233 = vcmask 1043456
      %v235 = vsel %vm233, %v229, 0
      %237 = vmatprep.subr.bf16.mxu0 0
      %238 = vmatpush1.bf16.msra.mxu0 0
      %239 = vmatprep.subr.bf16.mxu0 0
      %240 = vmatpush1.bf16.msra.mxu0 0
      %241 = vmatprep.subr.bf16.mxu0 0
      %242 = vmatpush1.bf16.msra.mxu0 0
      %243 = vmatprep.subr.bf16.mxu0 0
      %244 = vmatpush1.bf16.msra.mxu0 0
      %245 = vmatprep.subr.bf16.mxu0 0
      %246 = vmatpush1.bf16.msra.mxu0 0
      %247 = vmatprep.subr.bf16.mxu0 0
      %248 = vmatpush1.bf16.msra.mxu0 0
      %249 = vmatprep.subr.bf16.mxu0 0
      %250 = vmatpush1.bf16.msra.mxu0 0
      %251 = vmatprep.subr.bf16.mxu0 0
      %252 = vmatpush1.bf16.msra.mxu0 %v235
      %253 = vmatprep.subr.bf16.mxu0 0
      %254 = vmatpush2.bf16.msra.mxu0 0
      %255 = vmatprep.subr.bf16.mxu0 0
      %256 = vmatpush2.bf16.msra.mxu0 0
      %257 = vmatprep.subr.bf16.mxu0 0
      %258 = vmatpush2.bf16.msra.mxu0 0
      %259 = vmatprep.subr.bf16.mxu0 0
      %260 = vmatpush2.bf16.msra.mxu0 0
      %261 = vmatprep.subr.bf16.mxu0 0
      %262 = vmatpush2.bf16.msra.mxu0 0
      %263 = vmatprep.subr.bf16.mxu0 0
      %264 = vmatpush2.bf16.msra.mxu0 0
      %265 = vmatprep.subr.bf16.mxu0 0
      %266 = vmatpush2.bf16.msra.mxu0 0
      %267 = vmatprep.subr.bf16.mxu0 0
      %268 = vmatpush2.bf16.msra.mxu0 0
      %269 = vmatprep.mubr.bf16.mxu0 0
      %270 = vmatmul.mubr.bf16.gmra.mxu0 %v231
      %v271 = vpop.f32.mrf.mxu0
      %v272 = vadd.f32 0.0, %v271
      %v273 = vpop.f32.mrf.mxu0
      %v274 = vpop.f32.mrf.mxu0
      %v275 = vpop.f32.mrf.mxu0
      %276 = vdwg.mxu0
      %277 = vrot.lane.b32.xlu0 %v163, 120
      %v278 = vpop.permute.xlu0 %277
      %279 = vrot.lane.b32.xlu0 %v163, 88
      %v280 = vpop.permute.xlu0 %279
      %v282 = vsel %vm167, %v278, 0
      %v285 = vsel %vm167, %v280, 0
      %287 = vmatprep.subr.bf16.mxu0 0
      %288 = vmatpush1.bf16.xpose.msra.mxu0 0
      %289 = vmatprep.subr.bf16.mxu0 0
      %290 = vmatpush1.bf16.xpose.msra.mxu0 0
      %291 = vmatprep.subr.bf16.mxu0 0
      %292 = vmatpush1.bf16.xpose.msra.mxu0 0
      %293 = vmatprep.subr.bf16.mxu0 0
      %294 = vmatpush1.bf16.xpose.msra.mxu0 0
      %295 = vmatprep.subr.bf16.mxu0 0
      %296 = vmatpush1.bf16.xpose.msra.mxu0 0
      %297 = vmatprep.subr.bf16.mxu0 0
      %298 = vmatpush1.bf16.xpose.msra.mxu0 0
      %299 = vmatprep.subr.bf16.mxu0 0
      %300 = vmatpush1.bf16.xpose.msra.mxu0 0
      %301 = vmatprep.subr.bf16.mxu0 0
      %302 = vmatpush1.bf16.xpose.msra.mxu0 %v285
      %303 = vmatprep.subr.bf16.mxu0 0
      %304 = vmatpush2.bf16.xpose.msra.mxu0 0
      %305 = vmatprep.subr.bf16.mxu0 0
      %306 = vmatpush2.bf16.xpose.msra.mxu0 0
      %307 = vmatprep.subr.bf16.mxu0 0
      %308 = vmatpush2.bf16.xpose.msra.mxu0 0
      %309 = vmatprep.subr.bf16.mxu0 0
      %310 = vmatpush2.bf16.xpose.msra.mxu0 0
      %311 = vmatprep.subr.bf16.mxu0 0
      %312 = vmatpush2.bf16.xpose.msra.mxu0 0
      %313 = vmatprep.subr.bf16.mxu0 0
      %314 = vmatpush2.bf16.xpose.msra.mxu0 0
      %315 = vmatprep.subr.bf16.mxu0 0
      %316 = vmatpush2.bf16.xpose.msra.mxu0 0
      %317 = vmatprep.subr.bf16.mxu0 0
      %318 = vmatpush2.bf16.xpose.msra.mxu0 0
      %319 = vmatprep.mubr.bf16.mxu0 0
      %320 = vmatmul.mubr.bf16.gmra.mxu0 %v282
      %v321 = vpop.f32.mrf.mxu0
      %v322 = vadd.f32 0.0, %v321
      %v323 = vpop.f32.mrf.mxu0
      %v324 = vpop.f32.mrf.mxu0
      %v325 = vpop.f32.mrf.mxu0
      %326 = vdwg.mxu0
      %v327 = vsel %vm162, -1e+09, %v322
      %v328 = vmul.f32 %v327, 0.35355338
      %v329 = vsel %vm167, %v328, -inf
      %330 = vmax.xlane.f32.xlu0 %v329
      %v331 = vpop.xlane.xlu0 %330
      %v332 = vsub.f32 %v328, %v331
      %v333 = vmul.f32 %v332, 1.442695
      %v334 = vpow.pop %v333
      %v335 = vsel %vm167, %v334, 0.0
      %336 = vadd.xlane.f32.xlu0 %v335
      %v337 = vpop.xlane.xlu0 %336
      %v338 = vrcp.pop %v337
      %v339 = vmul.f32 %v334, %v338
      %v340 = vpack.c.bf16 %v339, %v339
      %341 = vrot.lane.b32.xlu0 %v163, 56
      %v342 = vpop.permute.xlu0 %341
      %v344 = vsel %vm167, %v340, 0
      %v347 = vsel %vm233, %v342, 0
      %349 = vmatprep.subr.bf16.mxu0 0
      %350 = vmatpush1.bf16.msra.mxu0 0
      %351 = vmatprep.subr.bf16.mxu0 0
      %352 = vmatpush1.bf16.msra.mxu0 0
      %353 = vmatprep.subr.bf16.mxu0 0
      %354 = vmatpush1.bf16.msra.mxu0 0
      %355 = vmatprep.subr.bf16.mxu0 0
      %356 = vmatpush1.bf16.msra.mxu0 0
      %357 = vmatprep.subr.bf16.mxu0 0
      %358 = vmatpush1.bf16.msra.mxu0 0
      %359 = vmatprep.subr.bf16.mxu0 0
      %360 = vmatpush1.bf16.msra.mxu0 0
      %361 = vmatprep.subr.bf16.mxu0 0
      %362 = vmatpush1.bf16.msra.mxu0 0
      %363 = vmatprep.subr.bf16.mxu0 0
      %364 = vmatpush1.bf16.msra.mxu0 %v347
      %365 = vmatprep.subr.bf16.mxu0 0
      %366 = vmatpush2.bf16.msra.mxu0 0
      %367 = vmatprep.subr.bf16.mxu0 0
      %368 = vmatpush2.bf16.msra.mxu0 0
      %369 = vmatprep.subr.bf16.mxu0 0
      %370 = vmatpush2.bf16.msra.mxu0 0
      %371 = vmatprep.subr.bf16.mxu0 0
      %372 = vmatpush2.bf16.msra.mxu0 0
      %373 = vmatprep.subr.bf16.mxu0 0
      %374 = vmatpush2.bf16.msra.mxu0 0
      %375 = vmatprep.subr.bf16.mxu0 0
      %376 = vmatpush2.bf16.msra.mxu0 0
      %377 = vmatprep.subr.bf16.mxu0 0
      %378 = vmatpush2.bf16.msra.mxu0 0
      %379 = vmatprep.subr.bf16.mxu0 0
      %380 = vmatpush2.bf16.msra.mxu0 0
      %381 = vmatprep.mubr.bf16.mxu0 0
      %382 = vmatmul.mubr.bf16.gmra.mxu0 %v344
      %v383 = vpop.f32.mrf.mxu0
      %v384 = vadd.f32 0.0, %v383
      %v385 = vpop.f32.mrf.mxu0
      %v386 = vpop.f32.mrf.mxu0
      %v387 = vpop.f32.mrf.mxu0
      %388 = vdwg.mxu0
      %389 = vrot.lane.b32.xlu0 %v163, 112
      %v390 = vpop.permute.xlu0 %389
      %391 = vrot.lane.b32.xlu0 %v163, 80
      %v392 = vpop.permute.xlu0 %391
      %v394 = vsel %vm167, %v390, 0
      %v397 = vsel %vm167, %v392, 0
      %399 = vmatprep.subr.bf16.mxu0 0
      %400 = vmatpush1.bf16.xpose.msra.mxu0 0
      %401 = vmatprep.subr.bf16.mxu0 0
      %402 = vmatpush1.bf16.xpose.msra.mxu0 0
      %403 = vmatprep.subr.bf16.mxu0 0
      %404 = vmatpush1.bf16.xpose.msra.mxu0 0
      %405 = vmatprep.subr.bf16.mxu0 0
      %406 = vmatpush1.bf16.xpose.msra.mxu0 0
      %407 = vmatprep.subr.bf16.mxu0 0
      %408 = vmatpush1.bf16.xpose.msra.mxu0 0
      %409 = vmatprep.subr.bf16.mxu0 0
      %410 = vmatpush1.bf16.xpose.msra.mxu0 0
      %411 = vmatprep.subr.bf16.mxu0 0
      %412 = vmatpush1.bf16.xpose.msra.mxu0 0
      %413 = vmatprep.subr.bf16.mxu0 0
      %414 = vmatpush1.bf16.xpose.msra.mxu0 %v397
      %415 = vmatprep.subr.bf16.mxu0 0
      %416 = vmatpush2.bf16.xpose.msra.mxu0 0
      %417 = vmatprep.subr.bf16.mxu0 0
      %418 = vmatpush2.bf16.xpose.msra.mxu0 0
      %419 = vmatprep.subr.bf16.mxu0 0
      %420 = vmatpush2.bf16.xpose.msra.mxu0 0
      %421 = vmatprep.subr.bf16.mxu0 0
      %422 = vmatpush2.bf16.xpose.msra.mxu0 0
      %423 = vmatprep.subr.bf16.mxu0 0
      %424 = vmatpush2.bf16.xpose.msra.mxu0 0
      %425 = vmatprep.subr.bf16.mxu0 0
      %426 = vmatpush2.bf16.xpose.msra.mxu0 0
      %427 = vmatprep.subr.bf16.mxu0 0
      %428 = vmatpush2.bf16.xpose.msra.mxu0 0
      %429 = vmatprep.subr.bf16.mxu0 0
      %430 = vmatpush2.bf16.xpose.msra.mxu0 0
      %431 = vmatprep.mubr.bf16.mxu0 0
      %432 = vmatmul.mubr.bf16.gmra.mxu0 %v394
      %v433 = vpop.f32.mrf.mxu0
      %v434 = vadd.f32 0.0, %v433
      %v435 = vpop.f32.mrf.mxu0
      %v436 = vpop.f32.mrf.mxu0
      %v437 = vpop.f32.mrf.mxu0
      %438 = vdwg.mxu0
      %v439 = vsel %vm162, -1e+09, %v434
      %v440 = vmul.f32 %v439, 0.35355338
      %v441 = vsel %vm167, %v440, -inf
      %442 = vmax.xlane.f32.xlu0 %v441
      %v443 = vpop.xlane.xlu0 %442
      %v444 = vsub.f32 %v440, %v443
      %v445 = vmul.f32 %v444, 1.442695
      %v446 = vpow.pop %v445
      %v447 = vsel %vm167, %v446, 0.0
      %448 = vadd.xlane.f32.xlu0 %v447
      %v449 = vpop.xlane.xlu0 %448
      %v450 = vrcp.pop %v449
      %v451 = vmul.f32 %v446, %v450
      %v452 = vpack.c.bf16 %v451, %v451
      %453 = vrot.lane.b32.xlu0 %v163, 48
      %v454 = vpop.permute.xlu0 %453
      %v456 = vsel %vm167, %v452, 0
      %v459 = vsel %vm233, %v454, 0
      %461 = vmatprep.subr.bf16.mxu0 0
      %462 = vmatpush1.bf16.msra.mxu0 0
      %463 = vmatprep.subr.bf16.mxu0 0
      %464 = vmatpush1.bf16.msra.mxu0 0
      %465 = vmatprep.subr.bf16.mxu0 0
      %466 = vmatpush1.bf16.msra.mxu0 0
      %467 = vmatprep.subr.bf16.mxu0 0
      %468 = vmatpush1.bf16.msra.mxu0 0
      %469 = vmatprep.subr.bf16.mxu0 0
      %470 = vmatpush1.bf16.msra.mxu0 0
      %471 = vmatprep.subr.bf16.mxu0 0
      %472 = vmatpush1.bf16.msra.mxu0 0
      %473 = vmatprep.subr.bf16.mxu0 0
      %474 = vmatpush1.bf16.msra.mxu0 0
      %475 = vmatprep.subr.bf16.mxu0 0
      %476 = vmatpush1.bf16.msra.mxu0 %v459
      %477 = vmatprep.subr.bf16.mxu0 0
      %478 = vmatpush2.bf16.msra.mxu0 0
      %479 = vmatprep.subr.bf16.mxu0 0
      %480 = vmatpush2.bf16.msra.mxu0 0
      %481 = vmatprep.subr.bf16.mxu0 0
      %482 = vmatpush2.bf16.msra.mxu0 0
      %483 = vmatprep.subr.bf16.mxu0 0
      %484 = vmatpush2.bf16.msra.mxu0 0
      %485 = vmatprep.subr.bf16.mxu0 0
      %486 = vmatpush2.bf16.msra.mxu0 0
      %487 = vmatprep.subr.bf16.mxu0 0
      %488 = vmatpush2.bf16.msra.mxu0 0
      %489 = vmatprep.subr.bf16.mxu0 0
      %490 = vmatpush2.bf16.msra.mxu0 0
      %491 = vmatprep.subr.bf16.mxu0 0
      %492 = vmatpush2.bf16.msra.mxu0 0
      %493 = vmatprep.mubr.bf16.mxu0 0
      %494 = vmatmul.mubr.bf16.gmra.mxu0 %v456
      %v495 = vpop.f32.mrf.mxu0
      %v496 = vadd.f32 0.0, %v495
      %v497 = vpop.f32.mrf.mxu0
      %v498 = vpop.f32.mrf.mxu0
      %v499 = vpop.f32.mrf.mxu0
      %500 = vdwg.mxu0
      %501 = vrot.lane.b32.xlu0 %v163, 104
      %v502 = vpop.permute.xlu0 %501
      %503 = vrot.lane.b32.xlu0 %v163, 72
      %v504 = vpop.permute.xlu0 %503
      %v506 = vsel %vm167, %v502, 0
      %v509 = vsel %vm167, %v504, 0
      %511 = vmatprep.subr.bf16.mxu0 0
      %512 = vmatpush1.bf16.xpose.msra.mxu0 0
      %513 = vmatprep.subr.bf16.mxu0 0
      %514 = vmatpush1.bf16.xpose.msra.mxu0 0
      %515 = vmatprep.subr.bf16.mxu0 0
      %516 = vmatpush1.bf16.xpose.msra.mxu0 0
      %517 = vmatprep.subr.bf16.mxu0 0
      %518 = vmatpush1.bf16.xpose.msra.mxu0 0
      %519 = vmatprep.subr.bf16.mxu0 0
      %520 = vmatpush1.bf16.xpose.msra.mxu0 0
      %521 = vmatprep.subr.bf16.mxu0 0
      %522 = vmatpush1.bf16.xpose.msra.mxu0 0
      %523 = vmatprep.subr.bf16.mxu0 0
      %524 = vmatpush1.bf16.xpose.msra.mxu0 0
      %525 = vmatprep.subr.bf16.mxu0 0
      %526 = vmatpush1.bf16.xpose.msra.mxu0 %v509
      %527 = vmatprep.subr.bf16.mxu0 0
      %528 = vmatpush2.bf16.xpose.msra.mxu0 0
      %529 = vmatprep.subr.bf16.mxu0 0
      %530 = vmatpush2.bf16.xpose.msra.mxu0 0
      %531 = vmatprep.subr.bf16.mxu0 0
      %532 = vmatpush2.bf16.xpose.msra.mxu0 0
      %533 = vmatprep.subr.bf16.mxu0 0
      %534 = vmatpush2.bf16.xpose.msra.mxu0 0
      %535 = vmatprep.subr.bf16.mxu0 0
      %536 = vmatpush2.bf16.xpose.msra.mxu0 0
      %537 = vmatprep.subr.bf16.mxu0 0
      %538 = vmatpush2.bf16.xpose.msra.mxu0 0
      %539 = vmatprep.subr.bf16.mxu0 0
      %540 = vmatpush2.bf16.xpose.msra.mxu0 0
      %541 = vmatprep.subr.bf16.mxu0 0
      %542 = vmatpush2.bf16.xpose.msra.mxu0 0
      %543 = vmatprep.mubr.bf16.mxu0 0
      %544 = vmatmul.mubr.bf16.gmra.mxu0 %v506
      %v545 = vpop.f32.mrf.mxu0
      %v546 = vadd.f32 0.0, %v545
      %v547 = vpop.f32.mrf.mxu0
      %v548 = vpop.f32.mrf.mxu0
      %v549 = vpop.f32.mrf.mxu0
      %550 = vdwg.mxu0
      %v551 = vsel %vm162, -1e+09, %v546
      %v552 = vmul.f32 %v551, 0.35355338
      %v553 = vsel %vm167, %v552, -inf
      %554 = vmax.xlane.f32.xlu0 %v553
      %v555 = vpop.xlane.xlu0 %554
      %v556 = vsub.f32 %v552, %v555
      %v557 = vmul.f32 %v556, 1.442695
      %v558 = vpow.pop %v557
      %v559 = vsel %vm167, %v558, 0.0
      %560 = vadd.xlane.f32.xlu0 %v559
      %v561 = vpop.xlane.xlu0 %560
      %v562 = vrcp.pop %v561
      %v563 = vmul.f32 %v558, %v562
      %v564 = vpack.c.bf16 %v563, %v563
      %565 = vrot.lane.b32.xlu0 %v163, 40
      %v566 = vpop.permute.xlu0 %565
      %v568 = vsel %vm167, %v564, 0
      %v571 = vsel %vm233, %v566, 0
      %573 = vmatprep.subr.bf16.mxu0 0
      %574 = vmatpush1.bf16.msra.mxu0 0
      %575 = vmatprep.subr.bf16.mxu0 0
      %576 = vmatpush1.bf16.msra.mxu0 0
      %577 = vmatprep.subr.bf16.mxu0 0
      %578 = vmatpush1.bf16.msra.mxu0 0
      %579 = vmatprep.subr.bf16.mxu0 0
      %580 = vmatpush1.bf16.msra.mxu0 0
      %581 = vmatprep.subr.bf16.mxu0 0
      %582 = vmatpush1.bf16.msra.mxu0 0
      %583 = vmatprep.subr.bf16.mxu0 0
      %584 = vmatpush1.bf16.msra.mxu0 0
      %585 = vmatprep.subr.bf16.mxu0 0
      %586 = vmatpush1.bf16.msra.mxu0 0
      %587 = vmatprep.subr.bf16.mxu0 0
      %588 = vmatpush1.bf16.msra.mxu0 %v571
      %589 = vmatprep.subr.bf16.mxu0 0
      %590 = vmatpush2.bf16.msra.mxu0 0
      %591 = vmatprep.subr.bf16.mxu0 0
      %592 = vmatpush2.bf16.msra.mxu0 0
      %593 = vmatprep.subr.bf16.mxu0 0
      %594 = vmatpush2.bf16.msra.mxu0 0
      %595 = vmatprep.subr.bf16.mxu0 0
      %596 = vmatpush2.bf16.msra.mxu0 0
      %597 = vmatprep.subr.bf16.mxu0 0
      %598 = vmatpush2.bf16.msra.mxu0 0
      %599 = vmatprep.subr.bf16.mxu0 0
      %600 = vmatpush2.bf16.msra.mxu0 0
      %601 = vmatprep.subr.bf16.mxu0 0
      %602 = vmatpush2.bf16.msra.mxu0 0
      %603 = vmatprep.subr.bf16.mxu0 0
      %604 = vmatpush2.bf16.msra.mxu0 0
      %605 = vmatprep.mubr.bf16.mxu0 0
      %606 = vmatmul.mubr.bf16.gmra.mxu0 %v568
      %v607 = vpop.f32.mrf.mxu0
      %v608 = vadd.f32 0.0, %v607
      %v609 = vpop.f32.mrf.mxu0
      %v610 = vpop.f32.mrf.mxu0
      %v611 = vpop.f32.mrf.mxu0
      %612 = vdwg.mxu0
      %614 = vrot.lane.b32.xlu0 %v384, 8
      %v615 = vpop.permute.xlu0 %614
      %618 = vrot.lane.b32.xlu0 %v496, 16
      %v619 = vpop.permute.xlu0 %618
      %622 = vrot.lane.b32.xlu0 %v608, 24
      %v623 = vpop.permute.xlu0 %622
      %v625 = vsel %vm167, %v272, %v615
      %vm626 = vcmask 130048
      %v627 = vsel %vm626, %v625, %v619
      %vm628 = vcmask 195584
      %v629 = vsel %vm628, %v627, %v623
      %vm630 = vcmask 261120
      %631 = vst.msk [vmem:[%s152] sm:$0xff] %vm630, %v629
      %p632 = scmp.lt.s32.totalorder %s13, 1
      %s633 = scalar_select %p632, %s13, 1
      %s634 = smul.addr %s633, 8
      %s635 = scalar_lea.vmem %s2, %s634
      // Predicated region
      $region29: #{_lambda_.26} parent=27 // pred_check
        %p636 = pneg %p83
      $region30: #{_lambda_.26} parent=27 // pred_check_branch
        %638 = sbr.rel (%p636) target = $region32
      $region31: #{_lambda_.26} parent=27 // pred_region
        _
      $region32: #{_lambda_.26} parent=27 // pred_fallthru
        _
    $region28: #{_lambda_.26} parent=5 // pred_fallthru
      _
    %p639 = scmp.le.s32.totalorder 2, %s8
    // Predicated region
    $region33: #{_lambda_.26} parent=5 // pred_check
      %p640 = pneg %p639
    $region34: #{_lambda_.26} parent=5 // pred_check_branch
      %642 = sbr.rel (%p640) target = $region36
    $region35: #{_lambda_.26} parent=5 // pred_region
      %s643 = ssub.s32 %s8, 2
      // Predicated region
      $region37: #{_lambda_.26} parent=35 // pred_check
        %p644 = pneg %p89
      $region38: #{_lambda_.26} parent=35 // pred_check_branch
        %646 = sbr.rel (%p644) target = $region40
      $region39: #{_lambda_.26} parent=35 // pred_region
        %p647 = scmp.lt.s32.totalorder %s14, 1
        %s648 = scalar_select %p647, %s14, 1
        %s649 = smul.addr %s648, 8
        %s650 = scalar_lea.vmem %s2, %s649
      $region40: #{_lambda_.26} parent=35 // pred_fallthru
        _
    $region36: #{_lambda_.26} parent=5 // pred_fallthru
      _
  $region6: #{_lambda_.26} parent=0 // loop_footer
    %s12 = sadd.s32 1, %s8
  $region7: #{_lambda_.26} parent=0 // loop_footer_branch
    %7 = sbr.rel target = $region3
  $region8: #{_lambda_.26} parent=0 // loop_exit
    _

// kernel: _lambda_.37
$region0: #{_lambda_.37}
  #allocation0 [shape = 'u32[]', space=smem, size = 0x4, offset = 0x4, fixed_abs, tag = 'smem constant byte address 0x4 - core index']
  #allocation1 [shape = 'u32[144,128]{1,0:T(1,128)}', space=vmem, size = 0x12000, scoped, tag = 'internal scratch']
  %s0 = inlined_call_operand.vmem [shape: f32[16,32], index: 0, kind: input, shape index: {}]
  %s1 = inlined_call_operand.vmem [shape: bf16[32,64], index: 1, kind: input, shape index: {}]
  %s2 = inlined_call_operand.vmem [shape: f32[1,64], index: 2, kind: input, shape index: {}]
  %s3 = inlined_call_operand.vmem [shape: f32[1,32], index: 3, kind: input, shape index: {}]
  %s4 = inlined_call_operand.vmem [shape: f32[1,32], index: 4, kind: input, shape index: {}]
  %s5 = inlined_call_operand.vmem [shape: f32[16,64], index: 5, kind: output, shape index: {}]
  %s6 = sld [smem:[#allocation0]]
  $region30: #{_lambda_.37} parent=0
    _
  %s8 = ssub.s32 1, %s6
  %s9 = scalar_select 0, %s8, %s6
  // Predicated region
  $region2: #{_lambda_.37} parent=0 // pred_check
    _
  $region3: #{_lambda_.37} parent=0 // pred_check_branch
    %11 = sbr.rel (0) target = $region5
  $region4: #{_lambda_.37} parent=0 // pred_region
    _
  $region5: #{_lambda_.37} parent=0 // pred_fallthru
    _
  // Predicated region
  $region6: #{_lambda_.37} parent=0 // pred_check
    _
  $region7: #{_lambda_.37} parent=0 // pred_check_branch
    %13 = sbr.rel (0) target = $region9
  $region8: #{_lambda_.37} parent=0 // pred_region
    _
  $region9: #{_lambda_.37} parent=0 // pred_fallthru
    _
  // Predicated region
  $region10: #{_lambda_.37} parent=0 // pred_check
    _
  $region11: #{_lambda_.37} parent=0 // pred_check_branch
    %15 = sbr.rel (0) target = $region13
  $region12: #{_lambda_.37} parent=0 // pred_region
    _
  $region13: #{_lambda_.37} parent=0 // pred_fallthru
    _
  // Predicated region
  $region14: #{_lambda_.37} parent=0 // pred_check
    _
  $region15: #{_lambda_.37} parent=0 // pred_check_branch
    %17 = sbr.rel (0) target = $region17
  $region16: #{_lambda_.37} parent=0 // pred_region
    _
  $region17: #{_lambda_.37} parent=0 // pred_fallthru
    _
  // Predicated region
  $region18: #{_lambda_.37} parent=0 // pred_check
    _
  $region19: #{_lambda_.37} parent=0 // pred_check_branch
    %19 = sbr.rel (0) target = $region21
  $region20: #{_lambda_.37} parent=0 // pred_region
    _
  $region21: #{_lambda_.37} parent=0 // pred_fallthru
    _
  %v21 = vld [vmem:[%s0] sm:$0xff]
  %v22 = vld [vmem:[%s0 + $0x8] sm:$0xff]
  %vm23 = vcmask 261120
  %v24 = vsel %vm23, %v21, 0.0
  %25 = vadd.xlane.f32.xlu0 %v24
  %v26 = vpop.xlane.xlu0 %25
  %v27 = vsel %vm23, %v22, 0.0
  %28 = vadd.xlane.f32.xlu0 %v27
  %v29 = vpop.xlane.xlu0 %28
  %v30 = vrcp.pop 32.0
  %v31 = vmul.f32 %v26, %v30
  %v32 = vmul.f32 %v29, %v30
  %v33 = vsub.f32 %v21, %v31
  %v34 = vsub.f32 %v22, %v32
  %v35 = vmul.f32 %v33, %v33
  %v36 = vmul.f32 %v34, %v34
  %v37 = vsel %vm23, %v35, 0.0
  %38 = vadd.xlane.f32.xlu0 %v37
  %v39 = vpop.xlane.xlu0 %38
  %v40 = vsel %vm23, %v36, 0.0
  %41 = vadd.xlane.f32.xlu0 %v40
  %v42 = vpop.xlane.xlu0 %41
  %v43 = vmul.f32 %v39, %v30
  %v44 = vmul.f32 %v42, %v30
  %v45 = vadd.f32 %v43, 1e-05
  %v46 = vadd.f32 %v44, 1e-05
  %v47 = vrsqrt.pop %v45
  %v48 = vrsqrt.pop %v46
  %v49 = vmul.f32 %v33, %v47
  %v50 = vmul.f32 %v34, %v48
  %v51 = vld [vmem:[%s3] sm:$0x1]
  %v53 = vlaneseq
  %v54 = vshrl.u32 %v53, 7
  %v55 = vsub.s32 0, %v54
  %v56 = vrot.slane %v51, %v55
  %v58 = vmul.f32 %v49, %v56
  %v59 = vmul.f32 %v50, %v56
  %v60 = vld [vmem:[%s4] sm:$0x1]
  %v62 = vlaneseq
  %v63 = vshrl.u32 %v62, 7
  %v64 = vsub.s32 0, %v63
  %v65 = vrot.slane %v60, %v64
  %v67 = vadd.f32 %v58, %v65
  %v68 = vadd.f32 %v59, %v65
  %v69 = vpack.c.bf16 %v68, %v67
  %v70 = vld [vmem:[%s1] sm:$0xf]
  %v71 = vld [vmem:[%s1 + $0x4] sm:$0xf]
  %v72 = vld [vmem:[%s1 + $0x8] sm:$0xf]
  %v73 = vld [vmem:[%s1 + $0xc] sm:$0xf]
  %v74 = vld [vmem:[%s2] sm:$0x1]
  %v76 = vlaneseq
  %v77 = vshrl.u32 %v76, 7
  %v78 = vsub.s32 0, %v77
  %v79 = vrot.slane %v74, %v78
  %v85 = vunpack.c.l.b16 %v70
  %v86 = vunpack.c.l.b16 %v71
  %v87 = vunpack.c.l.b16 %v72
  %v88 = vunpack.c.l.b16 %v73
  %v89 = vpack.c.b16 %v86, %v85
  %v90 = vpack.c.b16 %v88, %v87
  %v94 = vsel %vm23, %v69, 0
  %96 = vmatprep.subr.bf16.mxu0 0
  %97 = vmatpush1.bf16.msra.mxu0 0
  %98 = vmatprep.subr.bf16.mxu0 0
  %99 = vmatpush1.bf16.msra.mxu0 0
  %100 = vmatprep.subr.bf16.mxu0 0
  %101 = vmatpush1.bf16.msra.mxu0 0
  %102 = vmatprep.subr.bf16.mxu0 0
  %103 = vmatpush1.bf16.msra.mxu0 0
  %104 = vmatprep.subr.bf16.mxu0 0
  %105 = vmatpush1.bf16.msra.mxu0 0
  %106 = vmatprep.subr.bf16.mxu0 0
  %107 = vmatpush1.bf16.msra.mxu0 0
  %108 = vmatprep.subr.bf16.mxu0 0
  %109 = vmatpush1.bf16.msra.mxu0 %v90
  %110 = vmatprep.subr.bf16.mxu0 0
  %111 = vmatpush1.bf16.msra.mxu0 %v89
  %112 = vmatprep.subr.bf16.mxu0 0
  %113 = vmatpush2.bf16.msra.mxu0 0
  %114 = vmatprep.subr.bf16.mxu0 0
  %115 = vmatpush2.bf16.msra.mxu0 0
  %116 = vmatprep.subr.bf16.mxu0 0
  %117 = vmatpush2.bf16.msra.mxu0 0
  %118 = vmatprep.subr.bf16.mxu0 0
  %119 = vmatpush2.bf16.msra.mxu0 0
  %120 = vmatprep.subr.bf16.mxu0 0
  %121 = vmatpush2.bf16.msra.mxu0 0
  %122 = vmatprep.subr.bf16.mxu0 0
  %123 = vmatpush2.bf16.msra.mxu0 0
  %124 = vmatprep.subr.bf16.mxu0 0
  %125 = vmatpush2.bf16.msra.mxu0 0
  %126 = vmatprep.subr.bf16.mxu0 0
  %127 = vmatpush2.bf16.msra.mxu0 0
  %128 = vmatprep.mubr.bf16.mxu0 0
  %129 = vmatmul.mubr.bf16.gmra.mxu0 %v94
  %v130 = vpop.f32.mrf.mxu0
  %v131 = vadd.f32 %v79, %v130
  %v132 = vpop.f32.mrf.mxu0
  %v133 = vpop.f32.mrf.mxu0
  %v134 = vadd.f32 %v79, %v133
  %v135 = vpop.f32.mrf.mxu0
  %136 = vdwg.mxu0
  %vm137 = vcmask 523264
  %138 = vst.msk [vmem:[%s5] sm:$0xff] %vm137, %v131
  %139 = vst.msk [vmem:[%s5 + $0x8] sm:$0xff] %vm137, %v134
  // Predicated region
  $region22: #{_lambda_.37} parent=0 // pred_check
    _
  $region23: #{_lambda_.37} parent=0 // pred_check_branch
    %141 = sbr.rel (0) target = $region25
  $region24: #{_lambda_.37} parent=0 // pred_region
    _
  $region25: #{_lambda_.37} parent=0 // pred_fallthru
    _
  // Predicated region
  $region26: #{_lambda_.37} parent=0 // pred_check
    _
  $region27: #{_lambda_.37} parent=0 // pred_check_branch
    %143 = sbr.rel (0) target = $region29
  $region28: #{_lambda_.37} parent=0 // pred_region
    _
  $region29: #{_lambda_.37} parent=0 // pred_fallthru
    _

// kernel: _lambda_.36
$region0: #{_lambda_.36}
  #allocation0 [shape = 'u32[]', space=smem, size = 0x4, offset = 0x4, fixed_abs, tag = 'smem constant byte address 0x4 - core index']
  #allocation1 [shape = 'u32[144,128]{1,0:T(1,128)}', space=vmem, size = 0x12000, scoped, tag = 'internal scratch']
  %s0 = inlined_call_operand.vmem [shape: f32[16,32], index: 0, kind: input, shape index: {}]
  %s1 = inlined_call_operand.vmem [shape: bf16[32,32], index: 1, kind: input, shape index: {}]
  %s2 = inlined_call_operand.vmem [shape: f32[1,32], index: 2, kind: input, shape index: {}]
  %s3 = inlined_call_operand.vmem [shape: f32[1,32], index: 3, kind: input, shape index: {}]
  %s4 = inlined_call_operand.vmem [shape: f32[1,32], index: 4, kind: input, shape index: {}]
  %s5 = inlined_call_operand.vmem [shape: f32[16,32], index: 5, kind: output, shape index: {}]
  %s6 = sld [smem:[#allocation0]]
  $region30: #{_lambda_.36} parent=0
    _
  %s8 = ssub.s32 1, %s6
  %s9 = scalar_select 0, %s8, %s6
  // Predicated region
  $region2: #{_lambda_.36} parent=0 // pred_check
    _
  $region3: #{_lambda_.36} parent=0 // pred_check_branch
    %11 = sbr.rel (0) target = $region5
  $region4: #{_lambda_.36} parent=0 // pred_region
    _
  $region5: #{_lambda_.36} parent=0 // pred_fallthru
    _
  // Predicated region
  $region6: #{_lambda_.36} parent=0 // pred_check
    _
  $region7: #{_lambda_.36} parent=0 // pred_check_branch
    %13 = sbr.rel (0) target = $region9
  $region8: #{_lambda_.36} parent=0 // pred_region
    _
  $region9: #{_lambda_.36} parent=0 // pred_fallthru
    _
  // Predicated region
  $region10: #{_lambda_.36} parent=0 // pred_check
    _
  $region11: #{_lambda_.36} parent=0 // pred_check_branch
    %15 = sbr.rel (0) target = $region13
  $region12: #{_lambda_.36} parent=0 // pred_region
    _
  $region13: #{_lambda_.36} parent=0 // pred_fallthru
    _
  // Predicated region
  $region14: #{_lambda_.36} parent=0 // pred_check
    _
  $region15: #{_lambda_.36} parent=0 // pred_check_branch
    %17 = sbr.rel (0) target = $region17
  $region16: #{_lambda_.36} parent=0 // pred_region
    _
  $region17: #{_lambda_.36} parent=0 // pred_fallthru
    _
  // Predicated region
  $region18: #{_lambda_.36} parent=0 // pred_check
    _
  $region19: #{_lambda_.36} parent=0 // pred_check_branch
    %19 = sbr.rel (0) target = $region21
  $region20: #{_lambda_.36} parent=0 // pred_region
    _
  $region21: #{_lambda_.36} parent=0 // pred_fallthru
    _
  %v21 = vld [vmem:[%s0] sm:$0xff]
  %v22 = vld [vmem:[%s0 + $0x8] sm:$0xff]
  %vm23 = vcmask 261120
  %v24 = vsel %vm23, %v21, 0.0
  %25 = vadd.xlane.f32.xlu0 %v24
  %v26 = vpop.xlane.xlu0 %25
  %v27 = vsel %vm23, %v22, 0.0
  %28 = vadd.xlane.f32.xlu0 %v27
  %v29 = vpop.xlane.xlu0 %28
  %v30 = vrcp.pop 32.0
  %v31 = vmul.f32 %v26, %v30
  %v32 = vmul.f32 %v29, %v30
  %v33 = vsub.f32 %v21, %v31
  %v34 = vsub.f32 %v22, %v32
  %v35 = vmul.f32 %v33, %v33
  %v36 = vmul.f32 %v34, %v34
  %v37 = vsel %vm23, %v35, 0.0
  %38 = vadd.xlane.f32.xlu0 %v37
  %v39 = vpop.xlane.xlu0 %38
  %v40 = vsel %vm23, %v36, 0.0
  %41 = vadd.xlane.f32.xlu0 %v40
  %v42 = vpop.xlane.xlu0 %41
  %v43 = vmul.f32 %v39, %v30
  %v44 = vmul.f32 %v42, %v30
  %v45 = vadd.f32 %v43, 1e-05
  %v46 = vadd.f32 %v44, 1e-05
  %v47 = vrsqrt.pop %v45
  %v48 = vrsqrt.pop %v46
  %v49 = vmul.f32 %v33, %v47
  %v50 = vmul.f32 %v34, %v48
  %v51 = vld [vmem:[%s3] sm:$0x1]
  %v53 = vlaneseq
  %v54 = vshrl.u32 %v53, 7
  %v55 = vsub.s32 0, %v54
  %v56 = vrot.slane %v51, %v55
  %v58 = vmul.f32 %v49, %v56
  %v59 = vmul.f32 %v50, %v56
  %v60 = vld [vmem:[%s4] sm:$0x1]
  %v62 = vlaneseq
  %v63 = vshrl.u32 %v62, 7
  %v64 = vsub.s32 0, %v63
  %v65 = vrot.slane %v60, %v64
  %v67 = vadd.f32 %v58, %v65
  %v68 = vadd.f32 %v59, %v65
  %v69 = vpack.c.bf16 %v68, %v67
  %v70 = vld [vmem:[%s1] sm:$0xf]
  %v71 = vld [vmem:[%s1 + $0x4] sm:$0xf]
  %v72 = vld [vmem:[%s1 + $0x8] sm:$0xf]
  %v73 = vld [vmem:[%s1 + $0xc] sm:$0xf]
  %v74 = vld [vmem:[%s2] sm:$0x1]
  %v76 = vlaneseq
  %v77 = vshrl.u32 %v76, 7
  %v78 = vsub.s32 0, %v77
  %v79 = vrot.slane %v74, %v78
  %v85 = vunpack.c.l.b16 %v70
  %v86 = vunpack.c.l.b16 %v71
  %v87 = vunpack.c.l.b16 %v72
  %v88 = vunpack.c.l.b16 %v73
  %v89 = vpack.c.b16 %v86, %v85
  %v90 = vpack.c.b16 %v88, %v87
  %v94 = vsel %vm23, %v69, 0
  %96 = vmatprep.subr.bf16.mxu0 0
  %97 = vmatpush1.bf16.msra.mxu0 0
  %98 = vmatprep.subr.bf16.mxu0 0
  %99 = vmatpush1.bf16.msra.mxu0 0
  %100 = vmatprep.subr.bf16.mxu0 0
  %101 = vmatpush1.bf16.msra.mxu0 0
  %102 = vmatprep.subr.bf16.mxu0 0
  %103 = vmatpush1.bf16.msra.mxu0 0
  %104 = vmatprep.subr.bf16.mxu0 0
  %105 = vmatpush1.bf16.msra.mxu0 0
  %106 = vmatprep.subr.bf16.mxu0 0
  %107 = vmatpush1.bf16.msra.mxu0 0
  %108 = vmatprep.subr.bf16.mxu0 0
  %109 = vmatpush1.bf16.msra.mxu0 %v90
  %110 = vmatprep.subr.bf16.mxu0 0
  %111 = vmatpush1.bf16.msra.mxu0 %v89
  %112 = vmatprep.subr.bf16.mxu0 0
  %113 = vmatpush2.bf16.msra.mxu0 0
  %114 = vmatprep.subr.bf16.mxu0 0
  %115 = vmatpush2.bf16.msra.mxu0 0
  %116 = vmatprep.subr.bf16.mxu0 0
  %117 = vmatpush2.bf16.msra.mxu0 0
  %118 = vmatprep.subr.bf16.mxu0 0
  %119 = vmatpush2.bf16.msra.mxu0 0
  %120 = vmatprep.subr.bf16.mxu0 0
  %121 = vmatpush2.bf16.msra.mxu0 0
  %122 = vmatprep.subr.bf16.mxu0 0
  %123 = vmatpush2.bf16.msra.mxu0 0
  %124 = vmatprep.subr.bf16.mxu0 0
  %125 = vmatpush2.bf16.msra.mxu0 0
  %126 = vmatprep.subr.bf16.mxu0 0
  %127 = vmatpush2.bf16.msra.mxu0 0
  %128 = vmatprep.mubr.bf16.mxu0 0
  %129 = vmatmul.mubr.bf16.gmra.mxu0 %v94
  %v130 = vpop.f32.mrf.mxu0
  %v131 = vadd.f32 %v79, %v130
  %v132 = vpop.f32.mrf.mxu0
  %v133 = vpop.f32.mrf.mxu0
  %v134 = vadd.f32 %v79, %v133
  %v135 = vpop.f32.mrf.mxu0
  %136 = vdwg.mxu0
  %137 = vst.msk [vmem:[%s5] sm:$0xff] %vm23, %v131
  %138 = vst.msk [vmem:[%s5 + $0x8] sm:$0xff] %vm23, %v134
  // Predicated region
  $region22: #{_lambda_.36} parent=0 // pred_check
    _
  $region23: #{_lambda_.36} parent=0 // pred_check_branch
    %140 = sbr.rel (0) target = $region25
  $region24: #{_lambda_.36} parent=0 // pred_region
    _
  $region25: #{_lambda_.36} parent=0 // pred_fallthru
    _
  // Predicated region
  $region26: #{_lambda_.36} parent=0 // pred_check
    _
  $region27: #{_lambda_.36} parent=0 // pred_check_branch
    %142 = sbr.rel (0) target = $region29
  $region28: #{_lambda_.36} parent=0 // pred_region
    _
  $region29: #{_lambda_.36} parent=0 // pred_fallthru
    _

// kernel: _lambda_.34
$region0: #{_lambda_.34}
  #allocation0 [shape = 'u32[]', space=smem, size = 0x4, offset = 0x4, fixed_abs, tag = 'smem constant byte address 0x4 - core index']
  #allocation1 [shape = 'u32[144,128]{1,0:T(1,128)}', space=vmem, size = 0x12000, scoped, tag = 'internal scratch']
  %s0 = inlined_call_operand.vmem [shape: f32[2,8,96], index: 0, kind: input, shape index: {}]
  %s1 = inlined_call_operand.vmem [shape: s32[2,1,8], index: 1, kind: input, shape index: {}]
  %s2 = inlined_call_operand.vmem [shape: f32[2,8,32], index: 2, kind: output, shape index: {}]
  %s3 = sld [smem:[#allocation0]]
  $region41: #{_lambda_.34} parent=0
    _
  %s5 = ssub.s32 1, %s3
  %s6 = scalar_select 0, %s5, %s3
  loop: start=0, step=1, limit=4
  $region2: #{_lambda_.34} parent=0 // loop_pre_header
    _
  $region3: #{_lambda_.34} parent=0 // loop_header
    %s8 = sphi 0, %s12
    %p9 = scmp.ge.s32.totalorder %s8, 4
    %s18 = sphi 0, %s20
    %s21 = sphi 0, %s18
    %s22 = sphi 0, %s21
    %s38 = sphi 0, %s22
    %s44 = sphi 0, %s46
    %s47 = sphi 0, %s44
    %s48 = sphi 0, %s47
    %s64 = sphi 0, %s48
    %s70 = sphi 0, %s72
    %s73 = sphi 0, %s70
    %s74 = sphi 0, %s73
    %s90 = sphi 0, %s74
  $region4: #{_lambda_.34} parent=0 // loop_header_branch
    %11 = sbr.rel (%p9) target = $region8
  $region5: #{_lambda_.34} parent=0 // loop_body
    %s13 = ssub.s32 %s8, 1
    %s14 = ssub.s32 %s8, 2
    %s15 = sadd.s32 %s8, 1
    %s16 = ssub.s32 %s8, %s15
    %p17 = scmp.eq.s32.totalorder %s16, 0
    %s19 = sadd.s32 %s18, 1
    %s20 = scalar_select %p17, %s18, %s19
    %p23 = pneg %p17
    %p24 = scmp.eq.s32.totalorder %s8, 1
    %p25 = por %p23, %p24
    %p26 = scmp.ne.s32.totalorder %s18, %s21
    %p27 = scmp.eq.s32.totalorder %s8, 0
    %p28 = por %p26, %p27
    %p29 = scmp.ne.s32.totalorder %s18, %s21
    %p30 = scmp.eq.s32.totalorder %s13, 1
    %p31 = por %p29, %p30
    %p32 = scmp.ne.s32.totalorder %s21, %s22
    %p33 = scmp.eq.s32.totalorder %s13, 0
    %p34 = por %p32, %p33
    %p35 = scmp.ne.s32.totalorder %s21, %s22
    %p36 = scmp.eq.s32.totalorder %s14, 1
    %p37 = por %p35, %p36
    %p39 = scmp.ne.s32.totalorder %s22, %s38
    %p40 = scmp.eq.s32.totalorder %s14, 0
    %p41 = por %p39, %p40
    %s42 = ssub.s32 %s8, %s15
    %p43 = scmp.eq.s32.totalorder %s42, 0
    %s45 = sadd.s32 %s44, 1
    %s46 = scalar_select %p43, %s44, %s45
    %p49 = pneg %p43
    %p50 = scmp.eq.s32.totalorder %s8, 1
    %p51 = por %p49, %p50
    %p52 = scmp.ne.s32.totalorder %s44, %s47
    %p53 = scmp.eq.s32.totalorder %s8, 0
    %p54 = por %p52, %p53
    %p55 = scmp.ne.s32.totalorder %s44, %s47
    %p56 = scmp.eq.s32.totalorder %s13, 1
    %p57 = por %p55, %p56
    %p58 = scmp.ne.s32.totalorder %s47, %s48
    %p59 = scmp.eq.s32.totalorder %s13, 0
    %p60 = por %p58, %p59
    %p61 = scmp.ne.s32.totalorder %s47, %s48
    %p62 = scmp.eq.s32.totalorder %s14, 1
    %p63 = por %p61, %p62
    %p65 = scmp.ne.s32.totalorder %s48, %s64
    %p66 = scmp.eq.s32.totalorder %s14, 0
    %p67 = por %p65, %p66
    %s68 = ssub.s32 %s8, %s15
    %p69 = scmp.eq.s32.totalorder %s68, 0
    %s71 = sadd.s32 %s70, 1
    %s72 = scalar_select %p69, %s70, %s71
    %p75 = pneg %p69
    %p76 = scmp.eq.s32.totalorder %s8, 1
    %p77 = por %p75, %p76
    %p78 = scmp.ne.s32.totalorder %s70, %s73
    %p79 = scmp.eq.s32.totalorder %s8, 0
    %p80 = por %p78, %p79
    %p81 = scmp.ne.s32.totalorder %s70, %s73
    %p82 = scmp.eq.s32.totalorder %s13, 1
    %p83 = por %p81, %p82
    %p84 = scmp.ne.s32.totalorder %s73, %s74
    %p85 = scmp.eq.s32.totalorder %s13, 0
    %p86 = por %p84, %p85
    %p87 = scmp.ne.s32.totalorder %s73, %s74
    %p88 = scmp.eq.s32.totalorder %s14, 1
    %p89 = por %p87, %p88
    %p91 = scmp.ne.s32.totalorder %s74, %s90
    %p92 = scmp.eq.s32.totalorder %s14, 0
    %p93 = por %p91, %p92
    %p94 = scmp.le.s32.totalorder 1, %s8
    %p95 = scmp.lt.s32.totalorder %s8, 3
    %p96 = pnand %p94, %p95
    %p97 = pneg %p96
    // Predicated region
    $region9: #{_lambda_.34} parent=5 // pred_check
      _
    $region10: #{_lambda_.34} parent=5 // pred_check_branch
      %99 = sbr.rel (%p96) target = $region12
    $region11: #{_lambda_.34} parent=5 // pred_region
      %s100 = ssub.s32 %s8, 1
    $region12: #{_lambda_.34} parent=5 // pred_fallthru
      _
    %p101 = scmp.lt.s32.totalorder %s8, 2
    // Predicated region
    $region13: #{_lambda_.34} parent=5 // pred_check
      %p102 = pneg %p101
    $region14: #{_lambda_.34} parent=5 // pred_check_branch
      %104 = sbr.rel (%p102) target = $region16
    $region15: #{_lambda_.34} parent=5 // pred_region
      // Predicated region
      $region17: #{_lambda_.34} parent=15 // pred_check
        %p105 = pneg %p28
      $region18: #{_lambda_.34} parent=15 // pred_check_branch
        %107 = sbr.rel (%p105) target = $region20
      $region19: #{_lambda_.34} parent=15 // pred_region
        %p108 = scmp.lt.s32.totalorder %s8, 1
        %s109 = scalar_select %p108, %s8, 1
        %s110 = smul.addr %s109, 8
        %s111 = scalar_lea.vmem %s0, %s110
      $region20: #{_lambda_.34} parent=15 // pred_fallthru
        _
      // Predicated region
      $region21: #{_lambda_.34} parent=15 // pred_check
        %p112 = pneg %p54
      $region22: #{_lambda_.34} parent=15 // pred_check_branch
        %114 = sbr.rel (%p112) target = $region24
      $region23: #{_lambda_.34} parent=15 // pred_region
        %p115 = scmp.lt.s32.totalorder %s8, 1
        %s116 = scalar_select %p115, %s8, 1
        %s117 = scalar_lea.vmem %s1, %s116
      $region24: #{_lambda_.34} parent=15 // pred_fallthru
        _
    $region16: #{_lambda_.34} parent=5 // pred_fallthru
      _
    %p118 = scmp.le.s32.totalorder 1, %s8
    %p119 = scmp.lt.s32.totalorder %s8, 3
    %p120 = pnand %p118, %p119
    %p121 = pneg %p120
    // Predicated region
    $region25: #{_lambda_.34} parent=5 // pred_check
      _
    $region26: #{_lambda_.34} parent=5 // pred_check_branch
      %123 = sbr.rel (%p120) target = $region28
    $region27: #{_lambda_.34} parent=5 // pred_region
      %s124 = ssub.s32 %s8, 1
      %p125 = scmp.lt.s32.totalorder %s13, 1
      %s126 = scalar_select %p125, %s13, 1
      %s127 = smul.addr %s126, 8
      %s128 = scalar_lea.vmem %s0, %s127
      %p129 = pneg %p34
      %p130 = pneg %p31
      %p131 = scmp.lt.s32.totalorder %s13, 1
      %s132 = scalar_select %p131, %s13, 1
      %s133 = scalar_lea.vmem %s1, %s132
      %p134 = pneg %p60
      %p135 = pneg %p57
      %p136 = pneg %p86
      %p137 = pneg %p83
      %p138 = scmp.lt.s32.totalorder %s13, 1
      %s139 = scalar_select %p138, %s13, 1
      %s140 = smul.addr %s139, 8
      %s141 = scalar_lea.vmem %s2, %s140
      %p142 = scmp.lt.s32.totalorder %s13, 1
      %s143 = scalar_select %p142, %s13, 1
      %s144 = smul.addr %s143, 8
      %s145 = scalar_lea.vmem %s0, %s144
      %p146 = scmp.lt.s32.totalorder %s13, 1
      %s147 = scalar_select %p146, %s13, 1
      %s148 = scalar_lea.vmem %s1, %s147
      %p149 = scmp.lt.s32.totalorder %s13, 1
      %s150 = scalar_select %p149, %s13, 1
      %s151 = smul.addr %s150, 8
      %s152 = scalar_lea.vmem %s2, %s151
      %v154 = vld [vmem:[%s145] sm:$0xff]
      %v155 = vld [vmem:[%s148] sm:$0x1]
      %vm156 = vcmp.gt.s32.totalorder %v155, 0
      %v157 = vsel %vm156, 1, 0
      %v158 = vlaneseq
      %v159 = vshrl.u32 %v158, 7
      %v160 = vsub.s32 0, %v159
      %v161 = vrot.slane %v157, %v160
      %vm162 = vcmp.eq.s32.totalorder %v161, 1
      %v163 = vlaneseq
      %v164 = vshrl.u32 %v163, 7
      %v165 = vlaneseq
      %v166 = vand.u32 %v165, 127
      %vm167 = vcmp.gt.s32.totalorder %v166, %v164
      %vm168 = vmor %vm162, %vm167
      %v169 = vpack.c.bf16 %v154, %v154
      %171 = vrot.lane.b32.xlu0 %v169, 96
      %v172 = vpop.permute.xlu0 %171
      %vm173 = vcmask 64512
      %v175 = vsel %vm173, %v169, 0
      %v178 = vsel %vm173, %v172, 0
      %180 = vmatprep.subr.bf16.mxu0 0
      %181 = vmatpush1.bf16.xpose.msra.mxu0 0
      %182 = vmatprep.subr.bf16.mxu0 0
      %183 = vmatpush1.bf16.xpose.msra.mxu0 0
      %184 = vmatprep.subr.bf16.mxu0 0
      %185 = vmatpush1.bf16.xpose.msra.mxu0 0
      %186 = vmatprep.subr.bf16.mxu0 0
      %187 = vmatpush1.bf16.xpose.msra.mxu0 0
      %188 = vmatprep.subr.bf16.mxu0 0
      %189 = vmatpush1.bf16.xpose.msra.mxu0 0
      %190 = vmatprep.subr.bf16.mxu0 0
      %191 = vmatpush1.bf16.xpose.msra.mxu0 0
      %192 = vmatprep.subr.bf16.mxu0 0
      %193 = vmatpush1.bf16.xpose.msra.mxu0 0
      %194 = vmatprep.subr.bf16.mxu0 0
      %195 = vmatpush1.bf16.xpose.msra.mxu0 %v178
      %196 = vmatprep.subr.bf16.mxu0 0
      %197 = vmatpush2.bf16.xpose.msra.mxu0 0
      %198 = vmatprep.subr.bf16.mxu0 0
      %199 = vmatpush2.bf16.xpose.msra.mxu0 0
      %200 = vmatprep.subr.bf16.mxu0 0
      %201 = vmatpush2.bf16.xpose.msra.mxu0 0
      %202 = vmatprep.subr.bf16.mxu0 0
      %203 = vmatpush2.bf16.xpose.msra.mxu0 0
      %204 = vmatprep.subr.bf16.mxu0 0
      %205 = vmatpush2.bf16.xpose.msra.mxu0 0
      %206 = vmatprep.subr.bf16.mxu0 0
      %207 = vmatpush2.bf16.xpose.msra.mxu0 0
      %208 = vmatprep.subr.bf16.mxu0 0
      %209 = vmatpush2.bf16.xpose.msra.mxu0 0
      %210 = vmatprep.subr.bf16.mxu0 0
      %211 = vmatpush2.bf16.xpose.msra.mxu0 0
      %212 = vmatprep.mubr.bf16.mxu0 0
      %213 = vmatmul.mubr.bf16.gmra.mxu0 %v175
      %v214 = vpop.f32.mrf.mxu0
      %v215 = vadd.f32 0.0, %v214
      %v216 = vpop.f32.mrf.mxu0
      %v217 = vpop.f32.mrf.mxu0
      %v218 = vpop.f32.mrf.mxu0
      %219 = vdwg.mxu0
      %v220 = vsel %vm168, -1e+09, %v215
      %v221 = vmul.f32 %v220, 0.35355338
      %v222 = vsel %vm173, %v221, -inf
      %223 = vmax.xlane.f32.xlu0 %v222
      %v224 = vpop.xlane.xlu0 %223
      %v225 = vsub.f32 %v221, %v224
      %v226 = vmul.f32 %v225, 1.442695
      %v227 = vpow.pop %v226
      %v228 = vsel %vm173, %v227, 0.0
      %229 = vadd.xlane.f32.xlu0 %v228
      %v230 = vpop.xlane.xlu0 %229
      %v231 = vrcp.pop %v230
      %v232 = vmul.f32 %v227, %v231
      %v233 = vpack.c.bf16 %v232, %v232
      %234 = vrot.lane.b32.xlu0 %v169, 64
      %v235 = vpop.permute.xlu0 %234
      %v237 = vsel %vm173, %v233, 0
      %vm239 = vcmask 1043456
      %v241 = vsel %vm239, %v235, 0
      %243 = vmatprep.subr.bf16.mxu0 0
      %244 = vmatpush1.bf16.msra.mxu0 0
      %245 = vmatprep.subr.bf16.mxu0 0
      %246 = vmatpush1.bf16.msra.mxu0 0
      %247 = vmatprep.subr.bf16.mxu0 0
      %248 = vmatpush1.bf16.msra.mxu0 0
      %249 = vmatprep.subr.bf16.mxu0 0
      %250 = vmatpush1.bf16.msra.mxu0 0
      %251 = vmatprep.subr.bf16.mxu0 0
      %252 = vmatpush1.bf16.msra.mxu0 0
      %253 = vmatprep.subr.bf16.mxu0 0
      %254 = vmatpush1.bf16.msra.mxu0 0
      %255 = vmatprep.subr.bf16.mxu0 0
      %256 = vmatpush1.bf16.msra.mxu0 0
      %257 = vmatprep.subr.bf16.mxu0 0
      %258 = vmatpush1.bf16.msra.mxu0 %v241
      %259 = vmatprep.subr.bf16.mxu0 0
      %260 = vmatpush2.bf16.msra.mxu0 0
      %261 = vmatprep.subr.bf16.mxu0 0
      %262 = vmatpush2.bf16.msra.mxu0 0
      %263 = vmatprep.subr.bf16.mxu0 0
      %264 = vmatpush2.bf16.msra.mxu0 0
      %265 = vmatprep.subr.bf16.mxu0 0
      %266 = vmatpush2.bf16.msra.mxu0 0
      %267 = vmatprep.subr.bf16.mxu0 0
      %268 = vmatpush2.bf16.msra.mxu0 0
      %269 = vmatprep.subr.bf16.mxu0 0
      %270 = vmatpush2.bf16.msra.mxu0 0
      %271 = vmatprep.subr.bf16.mxu0 0
      %272 = vmatpush2.bf16.msra.mxu0 0
      %273 = vmatprep.subr.bf16.mxu0 0
      %274 = vmatpush2.bf16.msra.mxu0 0
      %275 = vmatprep.mubr.bf16.mxu0 0
      %276 = vmatmul.mubr.bf16.gmra.mxu0 %v237
      %v277 = vpop.f32.mrf.mxu0
      %v278 = vadd.f32 0.0, %v277
      %v279 = vpop.f32.mrf.mxu0
      %v280 = vpop.f32.mrf.mxu0
      %v281 = vpop.f32.mrf.mxu0
      %282 = vdwg.mxu0
      %283 = vrot.lane.b32.xlu0 %v169, 120
      %v284 = vpop.permute.xlu0 %283
      %285 = vrot.lane.b32.xlu0 %v169, 88
      %v286 = vpop.permute.xlu0 %285
      %v288 = vsel %vm173, %v284, 0
      %v291 = vsel %vm173, %v286, 0
      %293 = vmatprep.subr.bf16.mxu0 0
      %294 = vmatpush1.bf16.xpose.msra.mxu0 0
      %295 = vmatprep.subr.bf16.mxu0 0
      %296 = vmatpush1.bf16.xpose.msra.mxu0 0
      %297 = vmatprep.subr.bf16.mxu0 0
      %298 = vmatpush1.bf16.xpose.msra.mxu0 0
      %299 = vmatprep.subr.bf16.mxu0 0
      %300 = vmatpush1.bf16.xpose.msra.mxu0 0
      %301 = vmatprep.subr.bf16.mxu0 0
      %302 = vmatpush1.bf16.xpose.msra.mxu0 0
      %303 = vmatprep.subr.bf16.mxu0 0
      %304 = vmatpush1.bf16.xpose.msra.mxu0 0
      %305 = vmatprep.subr.bf16.mxu0 0
      %306 = vmatpush1.bf16.xpose.msra.mxu0 0
      %307 = vmatprep.subr.bf16.mxu0 0
      %308 = vmatpush1.bf16.xpose.msra.mxu0 %v291
      %309 = vmatprep.subr.bf16.mxu0 0
      %310 = vmatpush2.bf16.xpose.msra.mxu0 0
      %311 = vmatprep.subr.bf16.mxu0 0
      %312 = vmatpush2.bf16.xpose.msra.mxu0 0
      %313 = vmatprep.subr.bf16.mxu0 0
      %314 = vmatpush2.bf16.xpose.msra.mxu0 0
      %315 = vmatprep.subr.bf16.mxu0 0
      %316 = vmatpush2.bf16.xpose.msra.mxu0 0
      %317 = vmatprep.subr.bf16.mxu0 0
      %318 = vmatpush2.bf16.xpose.msra.mxu0 0
      %319 = vmatprep.subr.bf16.mxu0 0
      %320 = vmatpush2.bf16.xpose.msra.mxu0 0
      %321 = vmatprep.subr.bf16.mxu0 0
      %322 = vmatpush2.bf16.xpose.msra.mxu0 0
      %323 = vmatprep.subr.bf16.mxu0 0
      %324 = vmatpush2.bf16.xpose.msra.mxu0 0
      %325 = vmatprep.mubr.bf16.mxu0 0
      %326 = vmatmul.mubr.bf16.gmra.mxu0 %v288
      %v327 = vpop.f32.mrf.mxu0
      %v328 = vadd.f32 0.0, %v327
      %v329 = vpop.f32.mrf.mxu0
      %v330 = vpop.f32.mrf.mxu0
      %v331 = vpop.f32.mrf.mxu0
      %332 = vdwg.mxu0
      %v333 = vsel %vm168, -1e+09, %v328
      %v334 = vmul.f32 %v333, 0.35355338
      %v335 = vsel %vm173, %v334, -inf
      %336 = vmax.xlane.f32.xlu0 %v335
      %v337 = vpop.xlane.xlu0 %336
      %v338 = vsub.f32 %v334, %v337
      %v339 = vmul.f32 %v338, 1.442695
      %v340 = vpow.pop %v339
      %v341 = vsel %vm173, %v340, 0.0
      %342 = vadd.xlane.f32.xlu0 %v341
      %v343 = vpop.xlane.xlu0 %342
      %v344 = vrcp.pop %v343
      %v345 = vmul.f32 %v340, %v344
      %v346 = vpack.c.bf16 %v345, %v345
      %347 = vrot.lane.b32.xlu0 %v169, 56
      %v348 = vpop.permute.xlu0 %347
      %v350 = vsel %vm173, %v346, 0
      %v353 = vsel %vm239, %v348, 0
      %355 = vmatprep.subr.bf16.mxu0 0
      %356 = vmatpush1.bf16.msra.mxu0 0
      %357 = vmatprep.subr.bf16.mxu0 0
      %358 = vmatpush1.bf16.msra.mxu0 0
      %359 = vmatprep.subr.bf16.mxu0 0
      %360 = vmatpush1.bf16.msra.mxu0 0
      %361 = vmatprep.subr.bf16.mxu0 0
      %362 = vmatpush1.bf16.msra.mxu0 0
      %363 = vmatprep.subr.bf16.mxu0 0
      %364 = vmatpush1.bf16.msra.mxu0 0
      %365 = vmatprep.subr.bf16.mxu0 0
      %366 = vmatpush1.bf16.msra.mxu0 0
      %367 = vmatprep.subr.bf16.mxu0 0
      %368 = vmatpush1.bf16.msra.mxu0 0
      %369 = vmatprep.subr.bf16.mxu0 0
      %370 = vmatpush1.bf16.msra.mxu0 %v353
      %371 = vmatprep.subr.bf16.mxu0 0
      %372 = vmatpush2.bf16.msra.mxu0 0
      %373 = vmatprep.subr.bf16.mxu0 0
      %374 = vmatpush2.bf16.msra.mxu0 0
      %375 = vmatprep.subr.bf16.mxu0 0
      %376 = vmatpush2.bf16.msra.mxu0 0
      %377 = vmatprep.subr.bf16.mxu0 0
      %378 = vmatpush2.bf16.msra.mxu0 0
      %379 = vmatprep.subr.bf16.mxu0 0
      %380 = vmatpush2.bf16.msra.mxu0 0
      %381 = vmatprep.subr.bf16.mxu0 0
      %382 = vmatpush2.bf16.msra.mxu0 0
      %383 = vmatprep.subr.bf16.mxu0 0
      %384 = vmatpush2.bf16.msra.mxu0 0
      %385 = vmatprep.subr.bf16.mxu0 0
      %386 = vmatpush2.bf16.msra.mxu0 0
      %387 = vmatprep.mubr.bf16.mxu0 0
      %388 = vmatmul.mubr.bf16.gmra.mxu0 %v350
      %v389 = vpop.f32.mrf.mxu0
      %v390 = vadd.f32 0.0, %v389
      %v391 = vpop.f32.mrf.mxu0
      %v392 = vpop.f32.mrf.mxu0
      %v393 = vpop.f32.mrf.mxu0
      %394 = vdwg.mxu0
      %395 = vrot.lane.b32.xlu0 %v169, 112
      %v396 = vpop.permute.xlu0 %395
      %397 = vrot.lane.b32.xlu0 %v169, 80
      %v398 = vpop.permute.xlu0 %397
      %v400 = vsel %vm173, %v396, 0
      %v403 = vsel %vm173, %v398, 0
      %405 = vmatprep.subr.bf16.mxu0 0
      %406 = vmatpush1.bf16.xpose.msra.mxu0 0
      %407 = vmatprep.subr.bf16.mxu0 0
      %408 = vmatpush1.bf16.xpose.msra.mxu0 0
      %409 = vmatprep.subr.bf16.mxu0 0
      %410 = vmatpush1.bf16.xpose.msra.mxu0 0
      %411 = vmatprep.subr.bf16.mxu0 0
      %412 = vmatpush1.bf16.xpose.msra.mxu0 0
      %413 = vmatprep.subr.bf16.mxu0 0
      %414 = vmatpush1.bf16.xpose.msra.mxu0 0
      %415 = vmatprep.subr.bf16.mxu0 0
      %416 = vmatpush1.bf16.xpose.msra.mxu0 0
      %417 = vmatprep.subr.bf16.mxu0 0
      %418 = vmatpush1.bf16.xpose.msra.mxu0 0
      %419 = vmatprep.subr.bf16.mxu0 0
      %420 = vmatpush1.bf16.xpose.msra.mxu0 %v403
      %421 = vmatprep.subr.bf16.mxu0 0
      %422 = vmatpush2.bf16.xpose.msra.mxu0 0
      %423 = vmatprep.subr.bf16.mxu0 0
      %424 = vmatpush2.bf16.xpose.msra.mxu0 0
      %425 = vmatprep.subr.bf16.mxu0 0
      %426 = vmatpush2.bf16.xpose.msra.mxu0 0
      %427 = vmatprep.subr.bf16.mxu0 0
      %428 = vmatpush2.bf16.xpose.msra.mxu0 0
      %429 = vmatprep.subr.bf16.mxu0 0
      %430 = vmatpush2.bf16.xpose.msra.mxu0 0
      %431 = vmatprep.subr.bf16.mxu0 0
      %432 = vmatpush2.bf16.xpose.msra.mxu0 0
      %433 = vmatprep.subr.bf16.mxu0 0
      %434 = vmatpush2.bf16.xpose.msra.mxu0 0
      %435 = vmatprep.subr.bf16.mxu0 0
      %436 = vmatpush2.bf16.xpose.msra.mxu0 0
      %437 = vmatprep.mubr.bf16.mxu0 0
      %438 = vmatmul.mubr.bf16.gmra.mxu0 %v400
      %v439 = vpop.f32.mrf.mxu0
      %v440 = vadd.f32 0.0, %v439
      %v441 = vpop.f32.mrf.mxu0
      %v442 = vpop.f32.mrf.mxu0
      %v443 = vpop.f32.mrf.mxu0
      %444 = vdwg.mxu0
      %v445 = vsel %vm168, -1e+09, %v440
      %v446 = vmul.f32 %v445, 0.35355338
      %v447 = vsel %vm173, %v446, -inf
      %448 = vmax.xlane.f32.xlu0 %v447
      %v449 = vpop.xlane.xlu0 %448
      %v450 = vsub.f32 %v446, %v449
      %v451 = vmul.f32 %v450, 1.442695
      %v452 = vpow.pop %v451
      %v453 = vsel %vm173, %v452, 0.0
      %454 = vadd.xlane.f32.xlu0 %v453
      %v455 = vpop.xlane.xlu0 %454
      %v456 = vrcp.pop %v455
      %v457 = vmul.f32 %v452, %v456
      %v458 = vpack.c.bf16 %v457, %v457
      %459 = vrot.lane.b32.xlu0 %v169, 48
      %v460 = vpop.permute.xlu0 %459
      %v462 = vsel %vm173, %v458, 0
      %v465 = vsel %vm239, %v460, 0
      %467 = vmatprep.subr.bf16.mxu0 0
      %468 = vmatpush1.bf16.msra.mxu0 0
      %469 = vmatprep.subr.bf16.mxu0 0
      %470 = vmatpush1.bf16.msra.mxu0 0
      %471 = vmatprep.subr.bf16.mxu0 0
      %472 = vmatpush1.bf16.msra.mxu0 0
      %473 = vmatprep.subr.bf16.mxu0 0
      %474 = vmatpush1.bf16.msra.mxu0 0
      %475 = vmatprep.subr.bf16.mxu0 0
      %476 = vmatpush1.bf16.msra.mxu0 0
      %477 = vmatprep.subr.bf16.mxu0 0
      %478 = vmatpush1.bf16.msra.mxu0 0
      %479 = vmatprep.subr.bf16.mxu0 0
      %480 = vmatpush1.bf16.msra.mxu0 0
      %481 = vmatprep.subr.bf16.mxu0 0
      %482 = vmatpush1.bf16.msra.mxu0 %v465
      %483 = vmatprep.subr.bf16.mxu0 0
      %484 = vmatpush2.bf16.msra.mxu0 0
      %485 = vmatprep.subr.bf16.mxu0 0
      %486 = vmatpush2.bf16.msra.mxu0 0
      %487 = vmatprep.subr.bf16.mxu0 0
      %488 = vmatpush2.bf16.msra.mxu0 0
      %489 = vmatprep.subr.bf16.mxu0 0
      %490 = vmatpush2.bf16.msra.mxu0 0
      %491 = vmatprep.subr.bf16.mxu0 0
      %492 = vmatpush2.bf16.msra.mxu0 0
      %493 = vmatprep.subr.bf16.mxu0 0
      %494 = vmatpush2.bf16.msra.mxu0 0
      %495 = vmatprep.subr.bf16.mxu0 0
      %496 = vmatpush2.bf16.msra.mxu0 0
      %497 = vmatprep.subr.bf16.mxu0 0
      %498 = vmatpush2.bf16.msra.mxu0 0
      %499 = vmatprep.mubr.bf16.mxu0 0
      %500 = vmatmul.mubr.bf16.gmra.mxu0 %v462
      %v501 = vpop.f32.mrf.mxu0
      %v502 = vadd.f32 0.0, %v501
      %v503 = vpop.f32.mrf.mxu0
      %v504 = vpop.f32.mrf.mxu0
      %v505 = vpop.f32.mrf.mxu0
      %506 = vdwg.mxu0
      %507 = vrot.lane.b32.xlu0 %v169, 104
      %v508 = vpop.permute.xlu0 %507
      %509 = vrot.lane.b32.xlu0 %v169, 72
      %v510 = vpop.permute.xlu0 %509
      %v512 = vsel %vm173, %v508, 0
      %v515 = vsel %vm173, %v510, 0
      %517 = vmatprep.subr.bf16.mxu0 0
      %518 = vmatpush1.bf16.xpose.msra.mxu0 0
      %519 = vmatprep.subr.bf16.mxu0 0
      %520 = vmatpush1.bf16.xpose.msra.mxu0 0
      %521 = vmatprep.subr.bf16.mxu0 0
      %522 = vmatpush1.bf16.xpose.msra.mxu0 0
      %523 = vmatprep.subr.bf16.mxu0 0
      %524 = vmatpush1.bf16.xpose.msra.mxu0 0
      %525 = vmatprep.subr.bf16.mxu0 0
      %526 = vmatpush1.bf16.xpose.msra.mxu0 0
      %527 = vmatprep.subr.bf16.mxu0 0
      %528 = vmatpush1.bf16.xpose.msra.mxu0 0
      %529 = vmatprep.subr.bf16.mxu0 0
      %530 = vmatpush1.bf16.xpose.msra.mxu0 0
      %531 = vmatprep.subr.bf16.mxu0 0
      %532 = vmatpush1.bf16.xpose.msra.mxu0 %v515
      %533 = vmatprep.subr.bf16.mxu0 0
      %534 = vmatpush2.bf16.xpose.msra.mxu0 0
      %535 = vmatprep.subr.bf16.mxu0 0
      %536 = vmatpush2.bf16.xpose.msra.mxu0 0
      %537 = vmatprep.subr.bf16.mxu0 0
      %538 = vmatpush2.bf16.xpose.msra.mxu0 0
      %539 = vmatprep.subr.bf16.mxu0 0
      %540 = vmatpush2.bf16.xpose.msra.mxu0 0
      %541 = vmatprep.subr.bf16.mxu0 0
      %542 = vmatpush2.bf16.xpose.msra.mxu0 0
      %543 = vmatprep.subr.bf16.mxu0 0
      %544 = vmatpush2.bf16.xpose.msra.mxu0 0
      %545 = vmatprep.subr.bf16.mxu0 0
      %546 = vmatpush2.bf16.xpose.msra.mxu0 0
      %547 = vmatprep.subr.bf16.mxu0 0
      %548 = vmatpush2.bf16.xpose.msra.mxu0 0
      %549 = vmatprep.mubr.bf16.mxu0 0
      %550 = vmatmul.mubr.bf16.gmra.mxu0 %v512
      %v551 = vpop.f32.mrf.mxu0
      %v552 = vadd.f32 0.0, %v551
      %v553 = vpop.f32.mrf.mxu0
      %v554 = vpop.f32.mrf.mxu0
      %v555 = vpop.f32.mrf.mxu0
      %556 = vdwg.mxu0
      %v557 = vsel %vm168, -1e+09, %v552
      %v558 = vmul.f32 %v557, 0.35355338
      %v559 = vsel %vm173, %v558, -inf
      %560 = vmax.xlane.f32.xlu0 %v559
      %v561 = vpop.xlane.xlu0 %560
      %v562 = vsub.f32 %v558, %v561
      %v563 = vmul.f32 %v562, 1.442695
      %v564 = vpow.pop %v563
      %v565 = vsel %vm173, %v564, 0.0
      %566 = vadd.xlane.f32.xlu0 %v565
      %v567 = vpop.xlane.xlu0 %566
      %v568 = vrcp.pop %v567
      %v569 = vmul.f32 %v564, %v568
      %v570 = vpack.c.bf16 %v569, %v569
      %571 = vrot.lane.b32.xlu0 %v169, 40
      %v572 = vpop.permute.xlu0 %571
      %v574 = vsel %vm173, %v570, 0
      %v577 = vsel %vm239, %v572, 0
      %579 = vmatprep.subr.bf16.mxu0 0
      %580 = vmatpush1.bf16.msra.mxu0 0
      %581 = vmatprep.subr.bf16.mxu0 0
      %582 = vmatpush1.bf16.msra.mxu0 0
      %583 = vmatprep.subr.bf16.mxu0 0
      %584 = vmatpush1.bf16.msra.mxu0 0
      %585 = vmatprep.subr.bf16.mxu0 0
      %586 = vmatpush1.bf16.msra.mxu0 0
      %587 = vmatprep.subr.bf16.mxu0 0
      %588 = vmatpush1.bf16.msra.mxu0 0
      %589 = vmatprep.subr.bf16.mxu0 0
      %590 = vmatpush1.bf16.msra.mxu0 0
      %591 = vmatprep.subr.bf16.mxu0 0
      %592 = vmatpush1.bf16.msra.mxu0 0
      %593 = vmatprep.subr.bf16.mxu0 0
      %594 = vmatpush1.bf16.msra.mxu0 %v577
      %595 = vmatprep.subr.bf16.mxu0 0
      %596 = vmatpush2.bf16.msra.mxu0 0
      %597 = vmatprep.subr.bf16.mxu0 0
      %598 = vmatpush2.bf16.msra.mxu0 0
      %599 = vmatprep.subr.bf16.mxu0 0
      %600 = vmatpush2.bf16.msra.mxu0 0
      %601 = vmatprep.subr.bf16.mxu0 0
      %602 = vmatpush2.bf16.msra.mxu0 0
      %603 = vmatprep.subr.bf16.mxu0 0
      %604 = vmatpush2.bf16.msra.mxu0 0
      %605 = vmatprep.subr.bf16.mxu0 0
      %606 = vmatpush2.bf16.msra.mxu0 0
      %607 = vmatprep.subr.bf16.mxu0 0
      %608 = vmatpush2.bf16.msra.mxu0 0
      %609 = vmatprep.subr.bf16.mxu0 0
      %610 = vmatpush2.bf16.msra.mxu0 0
      %611 = vmatprep.mubr.bf16.mxu0 0
      %612 = vmatmul.mubr.bf16.gmra.mxu0 %v574
      %v613 = vpop.f32.mrf.mxu0
      %v614 = vadd.f32 0.0, %v613
      %v615 = vpop.f32.mrf.mxu0
      %v616 = vpop.f32.mrf.mxu0
      %v617 = vpop.f32.mrf.mxu0
      %618 = vdwg.mxu0
      %620 = vrot.lane.b32.xlu0 %v390, 8
      %v621 = vpop.permute.xlu0 %620
      %624 = vrot.lane.b32.xlu0 %v502, 16
      %v625 = vpop.permute.xlu0 %624
      %628 = vrot.lane.b32.xlu0 %v614, 24
      %v629 = vpop.permute.xlu0 %628
      %v631 = vsel %vm173, %v278, %v621
      %vm632 = vcmask 130048
      %v633 = vsel %vm632, %v631, %v625
      %vm634 = vcmask 195584
      %v635 = vsel %vm634, %v633, %v629
      %vm636 = vcmask 261120
      %637 = vst.msk [vmem:[%s152] sm:$0xff] %vm636, %v635
      %p638 = scmp.lt.s32.totalorder %s13, 1
      %s639 = scalar_select %p638, %s13, 1
      %s640 = smul.addr %s639, 8
      %s641 = scalar_lea.vmem %s2, %s640
      // Predicated region
      $region29: #{_lambda_.34} parent=27 // pred_check
        %p642 = pneg %p83
      $region30: #{_lambda_.34} parent=27 // pred_check_branch
        %644 = sbr.rel (%p642) target = $region32
      $region31: #{_lambda_.34} parent=27 // pred_region
        _
      $region32: #{_lambda_.34} parent=27 // pred_fallthru
        _
    $region28: #{_lambda_.34} parent=5 // pred_fallthru
      _
    %p645 = scmp.le.s32.totalorder 2, %s8
    // Predicated region
    $region33: #{_lambda_.34} parent=5 // pred_check
      %p646 = pneg %p645
    $region34: #{_lambda_.34} parent=5 // pred_check_branch
      %648 = sbr.rel (%p646) target = $region36
    $region35: #{_lambda_.34} parent=5 // pred_region
      %s649 = ssub.s32 %s8, 2
      // Predicated region
      $region37: #{_lambda_.34} parent=35 // pred_check
        %p650 = pneg %p89
      $region38: #{_lambda_.34} parent=35 // pred_check_branch
        %652 = sbr.rel (%p650) target = $region40
      $region39: #{_lambda_.34} parent=35 // pred_region
        %p653 = scmp.lt.s32.totalorder %s14, 1
        %s654 = scalar_select %p653, %s14, 1
        %s655 = smul.addr %s654, 8
        %s656 = scalar_lea.vmem %s2, %s655
      $region40: #{_lambda_.34} parent=35 // pred_fallthru
        _
    $region36: #{_lambda_.34} parent=5 // pred_fallthru
      _
  $region6: #{_lambda_.34} parent=0 // loop_footer
    %s12 = sadd.s32 1, %s8
  $region7: #{_lambda_.34} parent=0 // loop_footer_branch
    %7 = sbr.rel target = $region3
  $region8: #{_lambda_.34} parent=0 // loop_exit
    _

// kernel: _lambda_.38
$region0: #{_lambda_.38}
  #allocation0 [shape = 'u32[]', space=smem, size = 0x4, offset = 0x4, fixed_abs, tag = 'smem constant byte address 0x4 - core index']
  #allocation1 [shape = 'u32[144,128]{1,0:T(1,128)}', space=vmem, size = 0x12000, scoped, tag = 'internal scratch']
  %s0 = inlined_call_operand.vmem [shape: f32[2,8,32], index: 0, kind: input, shape index: {}]
  %s1 = inlined_call_operand.vmem [shape: f32[2,8,64], index: 1, kind: input, shape index: {}]
  %s2 = inlined_call_operand.vmem [shape: s32[2,1,8], index: 2, kind: input, shape index: {}]
  %s3 = inlined_call_operand.vmem [shape: f32[2,8,32], index: 3, kind: output, shape index: {}]
  %s4 = sld [smem:[#allocation0]]
  $region45: #{_lambda_.38} parent=0
    _
  %s6 = ssub.s32 1, %s4
  %s7 = scalar_select 0, %s6, %s4
  loop: start=0, step=1, limit=4
  $region2: #{_lambda_.38} parent=0 // loop_pre_header
    _
  $region3: #{_lambda_.38} parent=0 // loop_header
    %s9 = sphi 0, %s13
    %p10 = scmp.ge.s32.totalorder %s9, 4
    %s19 = sphi 0, %s21
    %s22 = sphi 0, %s19
    %s23 = sphi 0, %s22
    %s39 = sphi 0, %s23
    %s45 = sphi 0, %s47
    %s48 = sphi 0, %s45
    %s49 = sphi 0, %s48
    %s65 = sphi 0, %s49
    %s71 = sphi 0, %s73
    %s74 = sphi 0, %s71
    %s75 = sphi 0, %s74
    %s91 = sphi 0, %s75
    %s97 = sphi 0, %s99
    %s100 = sphi 0, %s97
    %s101 = sphi 0, %s100
    %s117 = sphi 0, %s101
  $region4: #{_lambda_.38} parent=0 // loop_header_branch
    %12 = sbr.rel (%p10) target = $region8
  $region5: #{_lambda_.38} parent=0 // loop_body
    %s14 = ssub.s32 %s9, 1
    %s15 = ssub.s32 %s9, 2
    %s16 = sadd.s32 %s9, 1
    %s17 = ssub.s32 %s9, %s16
    %p18 = scmp.eq.s32.totalorder %s17, 0
    %s20 = sadd.s32 %s19, 1
    %s21 = scalar_select %p18, %s19, %s20
    %p24 = pneg %p18
    %p25 = scmp.eq.s32.totalorder %s9, 1
    %p26 = por %p24, %p25
    %p27 = scmp.ne.s32.totalorder %s19, %s22
    %p28 = scmp.eq.s32.totalorder %s9, 0
    %p29 = por %p27, %p28
    %p30 = scmp.ne.s32.totalorder %s19, %s22
    %p31 = scmp.eq.s32.totalorder %s14, 1
    %p32 = por %p30, %p31
    %p33 = scmp.ne.s32.totalorder %s22, %s23
    %p34 = scmp.eq.s32.totalorder %s14, 0
    %p35 = por %p33, %p34
    %p36 = scmp.ne.s32.totalorder %s22, %s23
    %p37 = scmp.eq.s32.totalorder %s15, 1
    %p38 = por %p36, %p37
    %p40 = scmp.ne.s32.totalorder %s23, %s39
    %p41 = scmp.eq.s32.totalorder %s15, 0
    %p42 = por %p40, %p41
    %s43 = ssub.s32 %s9, %s16
    %p44 = scmp.eq.s32.totalorder %s43, 0
    %s46 = sadd.s32 %s45, 1
    %s47 = scalar_select %p44, %s45, %s46
    %p50 = pneg %p44
    %p51 = scmp.eq.s32.totalorder %s9, 1
    %p52 = por %p50, %p51
    %p53 = scmp.ne.s32.totalorder %s45, %s48
    %p54 = scmp.eq.s32.totalorder %s9, 0
    %p55 = por %p53, %p54
    %p56 = scmp.ne.s32.totalorder %s45, %s48
    %p57 = scmp.eq.s32.totalorder %s14, 1
    %p58 = por %p56, %p57
    %p59 = scmp.ne.s32.totalorder %s48, %s49
    %p60 = scmp.eq.s32.totalorder %s14, 0
    %p61 = por %p59, %p60
    %p62 = scmp.ne.s32.totalorder %s48, %s49
    %p63 = scmp.eq.s32.totalorder %s15, 1
    %p64 = por %p62, %p63
    %p66 = scmp.ne.s32.totalorder %s49, %s65
    %p67 = scmp.eq.s32.totalorder %s15, 0
    %p68 = por %p66, %p67
    %s69 = ssub.s32 %s9, %s16
    %p70 = scmp.eq.s32.totalorder %s69, 0
    %s72 = sadd.s32 %s71, 1
    %s73 = scalar_select %p70, %s71, %s72
    %p76 = pneg %p70
    %p77 = scmp.eq.s32.totalorder %s9, 1
    %p78 = por %p76, %p77
    %p79 = scmp.ne.s32.totalorder %s71, %s74
    %p80 = scmp.eq.s32.totalorder %s9, 0
    %p81 = por %p79, %p80
    %p82 = scmp.ne.s32.totalorder %s71, %s74
    %p83 = scmp.eq.s32.totalorder %s14, 1
    %p84 = por %p82, %p83
    %p85 = scmp.ne.s32.totalorder %s74, %s75
    %p86 = scmp.eq.s32.totalorder %s14, 0
    %p87 = por %p85, %p86
    %p88 = scmp.ne.s32.totalorder %s74, %s75
    %p89 = scmp.eq.s32.totalorder %s15, 1
    %p90 = por %p88, %p89
    %p92 = scmp.ne.s32.totalorder %s75, %s91
    %p93 = scmp.eq.s32.totalorder %s15, 0
    %p94 = por %p92, %p93
    %s95 = ssub.s32 %s9, %s16
    %p96 = scmp.eq.s32.totalorder %s95, 0
    %s98 = sadd.s32 %s97, 1
    %s99 = scalar_select %p96, %s97, %s98
    %p102 = pneg %p96
    %p103 = scmp.eq.s32.totalorder %s9, 1
    %p104 = por %p102, %p103
    %p105 = scmp.ne.s32.totalorder %s97, %s100
    %p106 = scmp.eq.s32.totalorder %s9, 0
    %p107 = por %p105, %p106
    %p108 = scmp.ne.s32.totalorder %s97, %s100
    %p109 = scmp.eq.s32.totalorder %s14, 1
    %p110 = por %p108, %p109
    %p111 = scmp.ne.s32.totalorder %s100, %s101
    %p112 = scmp.eq.s32.totalorder %s14, 0
    %p113 = por %p111, %p112
    %p114 = scmp.ne.s32.totalorder %s100, %s101
    %p115 = scmp.eq.s32.totalorder %s15, 1
    %p116 = por %p114, %p115
    %p118 = scmp.ne.s32.totalorder %s101, %s117
    %p119 = scmp.eq.s32.totalorder %s15, 0
    %p120 = por %p118, %p119
    %p121 = scmp.le.s32.totalorder 1, %s9
    %p122 = scmp.lt.s32.totalorder %s9, 3
    %p123 = pnand %p121, %p122
    %p124 = pneg %p123
    // Predicated region
    $region9: #{_lambda_.38} parent=5 // pred_check
      _
    $region10: #{_lambda_.38} parent=5 // pred_check_branch
      %126 = sbr.rel (%p123) target = $region12
    $region11: #{_lambda_.38} parent=5 // pred_region
      %s127 = ssub.s32 %s9, 1
    $region12: #{_lambda_.38} parent=5 // pred_fallthru
      _
    %p128 = scmp.lt.s32.totalorder %s9, 2
    // Predicated region
    $region13: #{_lambda_.38} parent=5 // pred_check
      %p129 = pneg %p128
    $region14: #{_lambda_.38} parent=5 // pred_check_branch
      %131 = sbr.rel (%p129) target = $region16
    $region15: #{_lambda_.38} parent=5 // pred_region
      // Predicated region
      $region17: #{_lambda_.38} parent=15 // pred_check
        %p132 = pneg %p29
      $region18: #{_lambda_.38} parent=15 // pred_check_branch
        %134 = sbr.rel (%p132) target = $region20
      $region19: #{_lambda_.38} parent=15 // pred_region
        %p135 = scmp.lt.s32.totalorder %s9, 1
        %s136 = scalar_select %p135, %s9, 1
        %s137 = smul.addr %s136, 8
        %s138 = scalar_lea.vmem %s0, %s137
      $region20: #{_lambda_.38} parent=15 // pred_fallthru
        _
      // Predicated region
      $region21: #{_lambda_.38} parent=15 // pred_check
        %p139 = pneg %p55
      $region22: #{_lambda_.38} parent=15 // pred_check_branch
        %141 = sbr.rel (%p139) target = $region24
      $region23: #{_lambda_.38} parent=15 // pred_region
        %p142 = scmp.lt.s32.totalorder %s9, 1
        %s143 = scalar_select %p142, %s9, 1
        %s144 = smul.addr %s143, 8
        %s145 = scalar_lea.vmem %s1, %s144
      $region24: #{_lambda_.38} parent=15 // pred_fallthru
        _
      // Predicated region
      $region25: #{_lambda_.38} parent=15 // pred_check
        %p146 = pneg %p81
      $region26: #{_lambda_.38} parent=15 // pred_check_branch
        %148 = sbr.rel (%p146) target = $region28
      $region27: #{_lambda_.38} parent=15 // pred_region
        %p149 = scmp.lt.s32.totalorder %s9, 1
        %s150 = scalar_select %p149, %s9, 1
        %s151 = scalar_lea.vmem %s2, %s150
      $region28: #{_lambda_.38} parent=15 // pred_fallthru
        _
    $region16: #{_lambda_.38} parent=5 // pred_fallthru
      _
    %p152 = scmp.le.s32.totalorder 1, %s9
    %p153 = scmp.lt.s32.totalorder %s9, 3
    %p154 = pnand %p152, %p153
    %p155 = pneg %p154
    // Predicated region
    $region29: #{_lambda_.38} parent=5 // pred_check
      _
    $region30: #{_lambda_.38} parent=5 // pred_check_branch
      %157 = sbr.rel (%p154) target = $region32
    $region31: #{_lambda_.38} parent=5 // pred_region
      %s158 = ssub.s32 %s9, 1
      %p159 = scmp.lt.s32.totalorder %s14, 1
      %s160 = scalar_select %p159, %s14, 1
      %s161 = smul.addr %s160, 8
      %s162 = scalar_lea.vmem %s0, %s161
      %p163 = pneg %p35
      %p164 = pneg %p32
      %p165 = scmp.lt.s32.totalorder %s14, 1
      %s166 = scalar_select %p165, %s14, 1
      %s167 = smul.addr %s166, 8
      %s168 = scalar_lea.vmem %s1, %s167
      %p169 = pneg %p61
      %p170 = pneg %p58
      %p171 = scmp.lt.s32.totalorder %s14, 1
      %s172 = scalar_select %p171, %s14, 1
      %s173 = scalar_lea.vmem %s2, %s172
      %p174 = pneg %p87
      %p175 = pneg %p84
      %p176 = pneg %p113
      %p177 = pneg %p110
      %p178 = scmp.lt.s32.totalorder %s14, 1
      %s179 = scalar_select %p178, %s14, 1
      %s180 = smul.addr %s179, 8
      %s181 = scalar_lea.vmem %s3, %s180
      %p182 = scmp.lt.s32.totalorder %s14, 1
      %s183 = scalar_select %p182, %s14, 1
      %s184 = smul.addr %s183, 8
      %s185 = scalar_lea.vmem %s0, %s184
      %p186 = scmp.lt.s32.totalorder %s14, 1
      %s187 = scalar_select %p186, %s14, 1
      %s188 = smul.addr %s187, 8
      %s189 = scalar_lea.vmem %s1, %s188
      %p190 = scmp.lt.s32.totalorder %s14, 1
      %s191 = scalar_select %p190, %s14, 1
      %s192 = scalar_lea.vmem %s2, %s191
      %p193 = scmp.lt.s32.totalorder %s14, 1
      %s194 = scalar_select %p193, %s14, 1
      %s195 = smul.addr %s194, 8
      %s196 = scalar_lea.vmem %s3, %s195
      %v198 = vld [vmem:[%s185] sm:$0xff]
      %v199 = vld [vmem:[%s189] sm:$0xff]
      %v200 = vld [vmem:[%s192] sm:$0x1]
      %vm201 = vcmp.gt.s32.totalorder %v200, 0
      %v202 = vsel %vm201, 1, 0
      %v203 = vlaneseq
      %v204 = vshrl.u32 %v203, 7
      %v205 = vsub.s32 0, %v204
      %v206 = vrot.slane %v202, %v205
      %vm207 = vcmp.eq.s32.totalorder %v206, 1
      %v208 = vpack.c.bf16 %v198, %v198
      %v209 = vpack.c.bf16 %v199, %v199
      %vm210 = vcmask 64512
      %v212 = vsel %vm210, %v208, 0
      %v215 = vsel %vm210, %v209, 0
      %217 = vmatprep.subr.bf16.mxu0 0
      %218 = vmatpush1.bf16.xpose.msra.mxu0 0
      %219 = vmatprep.subr.bf16.mxu0 0
      %220 = vmatpush1.bf16.xpose.msra.mxu0 0
      %221 = vmatprep.subr.bf16.mxu0 0
      %222 = vmatpush1.bf16.xpose.msra.mxu0 0
      %223 = vmatprep.subr.bf16.mxu0 0
      %224 = vmatpush1.bf16.xpose.msra.mxu0 0
      %225 = vmatprep.subr.bf16.mxu0 0
      %226 = vmatpush1.bf16.xpose.msra.mxu0 0
      %227 = vmatprep.subr.bf16.mxu0 0
      %228 = vmatpush1.bf16.xpose.msra.mxu0 0
      %229 = vmatprep.subr.bf16.mxu0 0
      %230 = vmatpush1.bf16.xpose.msra.mxu0 0
      %231 = vmatprep.subr.bf16.mxu0 0
      %232 = vmatpush1.bf16.xpose.msra.mxu0 %v215
      %233 = vmatprep.subr.bf16.mxu0 0
      %234 = vmatpush2.bf16.xpose.msra.mxu0 0
      %235 = vmatprep.subr.bf16.mxu0 0
      %236 = vmatpush2.bf16.xpose.msra.mxu0 0
      %237 = vmatprep.subr.bf16.mxu0 0
      %238 = vmatpush2.bf16.xpose.msra.mxu0 0
      %239 = vmatprep.subr.bf16.mxu0 0
      %240 = vmatpush2.bf16.xpose.msra.mxu0 0
      %241 = vmatprep.subr.bf16.mxu0 0
      %242 = vmatpush2.bf16.xpose.msra.mxu0 0
      %243 = vmatprep.subr.bf16.mxu0 0
      %244 = vmatpush2.bf16.xpose.msra.mxu0 0
      %245 = vmatprep.subr.bf16.mxu0 0
      %246 = vmatpush2.bf16.xpose.msra.mxu0 0
      %247 = vmatprep.subr.bf16.mxu0 0
      %248 = vmatpush2.bf16.xpose.msra.mxu0 0
      %249 = vmatprep.mubr.bf16.mxu0 0
      %250 = vmatmul.mubr.bf16.gmra.mxu0 %v212
      %v251 = vpop.f32.mrf.mxu0
      %v252 = vadd.f32 0.0, %v251
      %v253 = vpop.f32.mrf.mxu0
      %v254 = vpop.f32.mrf.mxu0
      %v255 = vpop.f32.mrf.mxu0
      %256 = vdwg.mxu0
      %v257 = vsel %vm207, -1e+09, %v252
      %v258 = vmul.f32 %v257, 0.35355338
      %v259 = vsel %vm210, %v258, -inf
      %260 = vmax.xlane.f32.xlu0 %v259
      %v261 = vpop.xlane.xlu0 %260
      %v262 = vsub.f32 %v258, %v261
      %v263 = vmul.f32 %v262, 1.442695
      %v264 = vpow.pop %v263
      %v265 = vsel %vm210, %v264, 0.0
      %266 = vadd.xlane.f32.xlu0 %v265
      %v267 = vpop.xlane.xlu0 %266
      %v268 = vrcp.pop %v267
      %v269 = vmul.f32 %v264, %v268
      %v270 = vpack.c.bf16 %v269, %v269
      %272 = vrot.lane.b32.xlu0 %v209, 96
      %v273 = vpop.permute.xlu0 %272
      %v275 = vsel %vm210, %v270, 0
      %vm277 = vcmask 1043456
      %v279 = vsel %vm277, %v273, 0
      %281 = vmatprep.subr.bf16.mxu0 0
      %282 = vmatpush1.bf16.msra.mxu0 0
      %283 = vmatprep.subr.bf16.mxu0 0
      %284 = vmatpush1.bf16.msra.mxu0 0
      %285 = vmatprep.subr.bf16.mxu0 0
      %286 = vmatpush1.bf16.msra.mxu0 0
      %287 = vmatprep.subr.bf16.mxu0 0
      %288 = vmatpush1.bf16.msra.mxu0 0
      %289 = vmatprep.subr.bf16.mxu0 0
      %290 = vmatpush1.bf16.msra.mxu0 0
      %291 = vmatprep.subr.bf16.mxu0 0
      %292 = vmatpush1.bf16.msra.mxu0 0
      %293 = vmatprep.subr.bf16.mxu0 0
      %294 = vmatpush1.bf16.msra.mxu0 0
      %295 = vmatprep.subr.bf16.mxu0 0
      %296 = vmatpush1.bf16.msra.mxu0 %v279
      %297 = vmatprep.subr.bf16.mxu0 0
      %298 = vmatpush2.bf16.msra.mxu0 0
      %299 = vmatprep.subr.bf16.mxu0 0
      %300 = vmatpush2.bf16.msra.mxu0 0
      %301 = vmatprep.subr.bf16.mxu0 0
      %302 = vmatpush2.bf16.msra.mxu0 0
      %303 = vmatprep.subr.bf16.mxu0 0
      %304 = vmatpush2.bf16.msra.mxu0 0
      %305 = vmatprep.subr.bf16.mxu0 0
      %306 = vmatpush2.bf16.msra.mxu0 0
      %307 = vmatprep.subr.bf16.mxu0 0
      %308 = vmatpush2.bf16.msra.mxu0 0
      %309 = vmatprep.subr.bf16.mxu0 0
      %310 = vmatpush2.bf16.msra.mxu0 0
      %311 = vmatprep.subr.bf16.mxu0 0
      %312 = vmatpush2.bf16.msra.mxu0 0
      %313 = vmatprep.mubr.bf16.mxu0 0
      %314 = vmatmul.mubr.bf16.gmra.mxu0 %v275
      %v315 = vpop.f32.mrf.mxu0
      %v316 = vadd.f32 0.0, %v315
      %v317 = vpop.f32.mrf.mxu0
      %v318 = vpop.f32.mrf.mxu0
      %v319 = vpop.f32.mrf.mxu0
      %320 = vdwg.mxu0
      %322 = vrot.lane.b32.xlu0 %v208, 120
      %v323 = vpop.permute.xlu0 %322
      %324 = vrot.lane.b32.xlu0 %v209, 120
      %v325 = vpop.permute.xlu0 %324
      %v327 = vsel %vm210, %v323, 0
      %v330 = vsel %vm210, %v325, 0
      %332 = vmatprep.subr.bf16.mxu0 0
      %333 = vmatpush1.bf16.xpose.msra.mxu0 0
      %334 = vmatprep.subr.bf16.mxu0 0
      %335 = vmatpush1.bf16.xpose.msra.mxu0 0
      %336 = vmatprep.subr.bf16.mxu0 0
      %337 = vmatpush1.bf16.xpose.msra.mxu0 0
      %338 = vmatprep.subr.bf16.mxu0 0
      %339 = vmatpush1.bf16.xpose.msra.mxu0 0
      %340 = vmatprep.subr.bf16.mxu0 0
      %341 = vmatpush1.bf16.xpose.msra.mxu0 0
      %342 = vmatprep.subr.bf16.mxu0 0
      %343 = vmatpush1.bf16.xpose.msra.mxu0 0
      %344 = vmatprep.subr.bf16.mxu0 0
      %345 = vmatpush1.bf16.xpose.msra.mxu0 0
      %346 = vmatprep.subr.bf16.mxu0 0
      %347 = vmatpush1.bf16.xpose.msra.mxu0 %v330
      %348 = vmatprep.subr.bf16.mxu0 0
      %349 = vmatpush2.bf16.xpose.msra.mxu0 0
      %350 = vmatprep.subr.bf16.mxu0 0
      %351 = vmatpush2.bf16.xpose.msra.mxu0 0
      %352 = vmatprep.subr.bf16.mxu0 0
      %353 = vmatpush2.bf16.xpose.msra.mxu0 0
      %354 = vmatprep.subr.bf16.mxu0 0
      %355 = vmatpush2.bf16.xpose.msra.mxu0 0
      %356 = vmatprep.subr.bf16.mxu0 0
      %357 = vmatpush2.bf16.xpose.msra.mxu0 0
      %358 = vmatprep.subr.bf16.mxu0 0
      %359 = vmatpush2.bf16.xpose.msra.mxu0 0
      %360 = vmatprep.subr.bf16.mxu0 0
      %361 = vmatpush2.bf16.xpose.msra.mxu0 0
      %362 = vmatprep.subr.bf16.mxu0 0
      %363 = vmatpush2.bf16.xpose.msra.mxu0 0
      %364 = vmatprep.mubr.bf16.mxu0 0
      %365 = vmatmul.mubr.bf16.gmra.mxu0 %v327
      %v366 = vpop.f32.mrf.mxu0
      %v367 = vadd.f32 0.0, %v366
      %v368 = vpop.f32.mrf.mxu0
      %v369 = vpop.f32.mrf.mxu0
      %v370 = vpop.f32.mrf.mxu0
      %371 = vdwg.mxu0
      %v372 = vsel %vm207, -1e+09, %v367
      %v373 = vmul.f32 %v372, 0.35355338
      %v374 = vsel %vm210, %v373, -inf
      %375 = vmax.xlane.f32.xlu0 %v374
      %v376 = vpop.xlane.xlu0 %375
      %v377 = vsub.f32 %v373, %v376
      %v378 = vmul.f32 %v377, 1.442695
      %v379 = vpow.pop %v378
      %v380 = vsel %vm210, %v379, 0.0
      %381 = vadd.xlane.f32.xlu0 %v380
      %v382 = vpop.xlane.xlu0 %381
      %v383 = vrcp.pop %v382
      %v384 = vmul.f32 %v379, %v383
      %v385 = vpack.c.bf16 %v384, %v384
      %386 = vrot.lane.b32.xlu0 %v209, 88
      %v387 = vpop.permute.xlu0 %386
      %v389 = vsel %vm210, %v385, 0
      %v392 = vsel %vm277, %v387, 0
      %394 = vmatprep.subr.bf16.mxu0 0
      %395 = vmatpush1.bf16.msra.mxu0 0
      %396 = vmatprep.subr.bf16.mxu0 0
      %397 = vmatpush1.bf16.msra.mxu0 0
      %398 = vmatprep.subr.bf16.mxu0 0
      %399 = vmatpush1.bf16.msra.mxu0 0
      %400 = vmatprep.subr.bf16.mxu0 0
      %401 = vmatpush1.bf16.msra.mxu0 0
      %402 = vmatprep.subr.bf16.mxu0 0
      %403 = vmatpush1.bf16.msra.mxu0 0
      %404 = vmatprep.subr.bf16.mxu0 0
      %405 = vmatpush1.bf16.msra.mxu0 0
      %406 = vmatprep.subr.bf16.mxu0 0
      %407 = vmatpush1.bf16.msra.mxu0 0
      %408 = vmatprep.subr.bf16.mxu0 0
      %409 = vmatpush1.bf16.msra.mxu0 %v392
      %410 = vmatprep.subr.bf16.mxu0 0
      %411 = vmatpush2.bf16.msra.mxu0 0
      %412 = vmatprep.subr.bf16.mxu0 0
      %413 = vmatpush2.bf16.msra.mxu0 0
      %414 = vmatprep.subr.bf16.mxu0 0
      %415 = vmatpush2.bf16.msra.mxu0 0
      %416 = vmatprep.subr.bf16.mxu0 0
      %417 = vmatpush2.bf16.msra.mxu0 0
      %418 = vmatprep.subr.bf16.mxu0 0
      %419 = vmatpush2.bf16.msra.mxu0 0
      %420 = vmatprep.subr.bf16.mxu0 0
      %421 = vmatpush2.bf16.msra.mxu0 0
      %422 = vmatprep.subr.bf16.mxu0 0
      %423 = vmatpush2.bf16.msra.mxu0 0
      %424 = vmatprep.subr.bf16.mxu0 0
      %425 = vmatpush2.bf16.msra.mxu0 0
      %426 = vmatprep.mubr.bf16.mxu0 0
      %427 = vmatmul.mubr.bf16.gmra.mxu0 %v389
      %v428 = vpop.f32.mrf.mxu0
      %v429 = vadd.f32 0.0, %v428
      %v430 = vpop.f32.mrf.mxu0
      %v431 = vpop.f32.mrf.mxu0
      %v432 = vpop.f32.mrf.mxu0
      %433 = vdwg.mxu0
      %434 = vrot.lane.b32.xlu0 %v208, 112
      %v435 = vpop.permute.xlu0 %434
      %436 = vrot.lane.b32.xlu0 %v209, 112
      %v437 = vpop.permute.xlu0 %436
      %v439 = vsel %vm210, %v435, 0
      %v442 = vsel %vm210, %v437, 0
      %444 = vmatprep.subr.bf16.mxu0 0
      %445 = vmatpush1.bf16.xpose.msra.mxu0 0
      %446 = vmatprep.subr.bf16.mxu0 0
      %447 = vmatpush1.bf16.xpose.msra.mxu0 0
      %448 = vmatprep.subr.bf16.mxu0 0
      %449 = vmatpush1.bf16.xpose.msra.mxu0 0
      %450 = vmatprep.subr.bf16.mxu0 0
      %451 = vmatpush1.bf16.xpose.msra.mxu0 0
      %452 = vmatprep.subr.bf16.mxu0 0
      %453 = vmatpush1.bf16.xpose.msra.mxu0 0
      %454 = vmatprep.subr.bf16.mxu0 0
      %455 = vmatpush1.bf16.xpose.msra.mxu0 0
      %456 = vmatprep.subr.bf16.mxu0 0
      %457 = vmatpush1.bf16.xpose.msra.mxu0 0
      %458 = vmatprep.subr.bf16.mxu0 0
      %459 = vmatpush1.bf16.xpose.msra.mxu0 %v442
      %460 = vmatprep.subr.bf16.mxu0 0
      %461 = vmatpush2.bf16.xpose.msra.mxu0 0
      %462 = vmatprep.subr.bf16.mxu0 0
      %463 = vmatpush2.bf16.xpose.msra.mxu0 0
      %464 = vmatprep.subr.bf16.mxu0 0
      %465 = vmatpush2.bf16.xpose.msra.mxu0 0
      %466 = vmatprep.subr.bf16.mxu0 0
      %467 = vmatpush2.bf16.xpose.msra.mxu0 0
      %468 = vmatprep.subr.bf16.mxu0 0
      %469 = vmatpush2.bf16.xpose.msra.mxu0 0
      %470 = vmatprep.subr.bf16.mxu0 0
      %471 = vmatpush2.bf16.xpose.msra.mxu0 0
      %472 = vmatprep.subr.bf16.mxu0 0
      %473 = vmatpush2.bf16.xpose.msra.mxu0 0
      %474 = vmatprep.subr.bf16.mxu0 0
      %475 = vmatpush2.bf16.xpose.msra.mxu0 0
      %476 = vmatprep.mubr.bf16.mxu0 0
      %477 = vmatmul.mubr.bf16.gmra.mxu0 %v439
      %v478 = vpop.f32.mrf.mxu0
      %v479 = vadd.f32 0.0, %v478
      %v480 = vpop.f32.mrf.mxu0
      %v481 = vpop.f32.mrf.mxu0
      %v482 = vpop.f32.mrf.mxu0
      %483 = vdwg.mxu0
      %v484 = vsel %vm207, -1e+09, %v479
      %v485 = vmul.f32 %v484, 0.35355338
      %v486 = vsel %vm210, %v485, -inf
      %487 = vmax.xlane.f32.xlu0 %v486
      %v488 = vpop.xlane.xlu0 %487
      %v489 = vsub.f32 %v485, %v488
      %v490 = vmul.f32 %v489, 1.442695
      %v491 = vpow.pop %v490
      %v492 = vsel %vm210, %v491, 0.0
      %493 = vadd.xlane.f32.xlu0 %v492
      %v494 = vpop.xlane.xlu0 %493
      %v495 = vrcp.pop %v494
      %v496 = vmul.f32 %v491, %v495
      %v497 = vpack.c.bf16 %v496, %v496
      %498 = vrot.lane.b32.xlu0 %v209, 80
      %v499 = vpop.permute.xlu0 %498
      %v501 = vsel %vm210, %v497, 0
      %v504 = vsel %vm277, %v499, 0
      %506 = vmatprep.subr.bf16.mxu0 0
      %507 = vmatpush1.bf16.msra.mxu0 0
      %508 = vmatprep.subr.bf16.mxu0 0
      %509 = vmatpush1.bf16.msra.mxu0 0
      %510 = vmatprep.subr.bf16.mxu0 0
      %511 = vmatpush1.bf16.msra.mxu0 0
      %512 = vmatprep.subr.bf16.mxu0 0
      %513 = vmatpush1.bf16.msra.mxu0 0
      %514 = vmatprep.subr.bf16.mxu0 0
      %515 = vmatpush1.bf16.msra.mxu0 0
      %516 = vmatprep.subr.bf16.mxu0 0
      %517 = vmatpush1.bf16.msra.mxu0 0
      %518 = vmatprep.subr.bf16.mxu0 0
      %519 = vmatpush1.bf16.msra.mxu0 0
      %520 = vmatprep.subr.bf16.mxu0 0
      %521 = vmatpush1.bf16.msra.mxu0 %v504
      %522 = vmatprep.subr.bf16.mxu0 0
      %523 = vmatpush2.bf16.msra.mxu0 0
      %524 = vmatprep.subr.bf16.mxu0 0
      %525 = vmatpush2.bf16.msra.mxu0 0
      %526 = vmatprep.subr.bf16.mxu0 0
      %527 = vmatpush2.bf16.msra.mxu0 0
      %528 = vmatprep.subr.bf16.mxu0 0
      %529 = vmatpush2.bf16.msra.mxu0 0
      %530 = vmatprep.subr.bf16.mxu0 0
      %531 = vmatpush2.bf16.msra.mxu0 0
      %532 = vmatprep.subr.bf16.mxu0 0
      %533 = vmatpush2.bf16.msra.mxu0 0
      %534 = vmatprep.subr.bf16.mxu0 0
      %535 = vmatpush2.bf16.msra.mxu0 0
      %536 = vmatprep.subr.bf16.mxu0 0
      %537 = vmatpush2.bf16.msra.mxu0 0
      %538 = vmatprep.mubr.bf16.mxu0 0
      %539 = vmatmul.mubr.bf16.gmra.mxu0 %v501
      %v540 = vpop.f32.mrf.mxu0
      %v541 = vadd.f32 0.0, %v540
      %v542 = vpop.f32.mrf.mxu0
      %v543 = vpop.f32.mrf.mxu0
      %v544 = vpop.f32.mrf.mxu0
      %545 = vdwg.mxu0
      %546 = vrot.lane.b32.xlu0 %v208, 104
      %v547 = vpop.permute.xlu0 %546
      %548 = vrot.lane.b32.xlu0 %v209, 104
      %v549 = vpop.permute.xlu0 %548
      %v551 = vsel %vm210, %v547, 0
      %v554 = vsel %vm210, %v549, 0
      %556 = vmatprep.subr.bf16.mxu0 0
      %557 = vmatpush1.bf16.xpose.msra.mxu0 0
      %558 = vmatprep.subr.bf16.mxu0 0
      %559 = vmatpush1.bf16.xpose.msra.mxu0 0
      %560 = vmatprep.subr.bf16.mxu0 0
      %561 = vmatpush1.bf16.xpose.msra.mxu0 0
      %562 = vmatprep.subr.bf16.mxu0 0
      %563 = vmatpush1.bf16.xpose.msra.mxu0 0
      %564 = vmatprep.subr.bf16.mxu0 0
      %565 = vmatpush1.bf16.xpose.msra.mxu0 0
      %566 = vmatprep.subr.bf16.mxu0 0
      %567 = vmatpush1.bf16.xpose.msra.mxu0 0
      %568 = vmatprep.subr.bf16.mxu0 0
      %569 = vmatpush1.bf16.xpose.msra.mxu0 0
      %570 = vmatprep.subr.bf16.mxu0 0
      %571 = vmatpush1.bf16.xpose.msra.mxu0 %v554
      %572 = vmatprep.subr.bf16.mxu0 0
      %573 = vmatpush2.bf16.xpose.msra.mxu0 0
      %574 = vmatprep.subr.bf16.mxu0 0
      %575 = vmatpush2.bf16.xpose.msra.mxu0 0
      %576 = vmatprep.subr.bf16.mxu0 0
      %577 = vmatpush2.bf16.xpose.msra.mxu0 0
      %578 = vmatprep.subr.bf16.mxu0 0
      %579 = vmatpush2.bf16.xpose.msra.mxu0 0
      %580 = vmatprep.subr.bf16.mxu0 0
      %581 = vmatpush2.bf16.xpose.msra.mxu0 0
      %582 = vmatprep.subr.bf16.mxu0 0
      %583 = vmatpush2.bf16.xpose.msra.mxu0 0
      %584 = vmatprep.subr.bf16.mxu0 0
      %585 = vmatpush2.bf16.xpose.msra.mxu0 0
      %586 = vmatprep.subr.bf16.mxu0 0
      %587 = vmatpush2.bf16.xpose.msra.mxu0 0
      %588 = vmatprep.mubr.bf16.mxu0 0
      %589 = vmatmul.mubr.bf16.gmra.mxu0 %v551
      %v590 = vpop.f32.mrf.mxu0
      %v591 = vadd.f32 0.0, %v590
      %v592 = vpop.f32.mrf.mxu0
      %v593 = vpop.f32.mrf.mxu0
      %v594 = vpop.f32.mrf.mxu0
      %595 = vdwg.mxu0
      %v596 = vsel %vm207, -1e+09, %v591
      %v597 = vmul.f32 %v596, 0.35355338
      %v598 = vsel %vm210, %v597, -inf
      %599 = vmax.xlane.f32.xlu0 %v598
      %v600 = vpop.xlane.xlu0 %599
      %v601 = vsub.f32 %v597, %v600
      %v602 = vmul.f32 %v601, 1.442695
      %v603 = vpow.pop %v602
      %v604 = vsel %vm210, %v603, 0.0
      %605 = vadd.xlane.f32.xlu0 %v604
      %v606 = vpop.xlane.xlu0 %605
      %v607 = vrcp.pop %v606
      %v608 = vmul.f32 %v603, %v607
      %v609 = vpack.c.bf16 %v608, %v608
      %610 = vrot.lane.b32.xlu0 %v209, 72
      %v611 = vpop.permute.xlu0 %610
      %v613 = vsel %vm210, %v609, 0
      %v616 = vsel %vm277, %v611, 0
      %618 = vmatprep.subr.bf16.mxu0 0
      %619 = vmatpush1.bf16.msra.mxu0 0
      %620 = vmatprep.subr.bf16.mxu0 0
      %621 = vmatpush1.bf16.msra.mxu0 0
      %622 = vmatprep.subr.bf16.mxu0 0
      %623 = vmatpush1.bf16.msra.mxu0 0
      %624 = vmatprep.subr.bf16.mxu0 0
      %625 = vmatpush1.bf16.msra.mxu0 0
      %626 = vmatprep.subr.bf16.mxu0 0
      %627 = vmatpush1.bf16.msra.mxu0 0
      %628 = vmatprep.subr.bf16.mxu0 0
      %629 = vmatpush1.bf16.msra.mxu0 0
      %630 = vmatprep.subr.bf16.mxu0 0
      %631 = vmatpush1.bf16.msra.mxu0 0
      %632 = vmatprep.subr.bf16.mxu0 0
      %633 = vmatpush1.bf16.msra.mxu0 %v616
      %634 = vmatprep.subr.bf16.mxu0 0
      %635 = vmatpush2.bf16.msra.mxu0 0
      %636 = vmatprep.subr.bf16.mxu0 0
      %637 = vmatpush2.bf16.msra.mxu0 0
      %638 = vmatprep.subr.bf16.mxu0 0
      %639 = vmatpush2.bf16.msra.mxu0 0
      %640 = vmatprep.subr.bf16.mxu0 0
      %641 = vmatpush2.bf16.msra.mxu0 0
      %642 = vmatprep.subr.bf16.mxu0 0
      %643 = vmatpush2.bf16.msra.mxu0 0
      %644 = vmatprep.subr.bf16.mxu0 0
      %645 = vmatpush2.bf16.msra.mxu0 0
      %646 = vmatprep.subr.bf16.mxu0 0
      %647 = vmatpush2.bf16.msra.mxu0 0
      %648 = vmatprep.subr.bf16.mxu0 0
      %649 = vmatpush2.bf16.msra.mxu0 0
      %650 = vmatprep.mubr.bf16.mxu0 0
      %651 = vmatmul.mubr.bf16.gmra.mxu0 %v613
      %v652 = vpop.f32.mrf.mxu0
      %v653 = vadd.f32 0.0, %v652
      %v654 = vpop.f32.mrf.mxu0
      %v655 = vpop.f32.mrf.mxu0
      %v656 = vpop.f32.mrf.mxu0
      %657 = vdwg.mxu0
      %659 = vrot.lane.b32.xlu0 %v429, 8
      %v660 = vpop.permute.xlu0 %659
      %663 = vrot.lane.b32.xlu0 %v541, 16
      %v664 = vpop.permute.xlu0 %663
      %667 = vrot.lane.b32.xlu0 %v653, 24
      %v668 = vpop.permute.xlu0 %667
      %v670 = vsel %vm210, %v316, %v660
      %vm671 = vcmask 130048
      %v672 = vsel %vm671, %v670, %v664
      %vm673 = vcmask 195584
      %v674 = vsel %vm673, %v672, %v668
      %vm675 = vcmask 261120
      %676 = vst.msk [vmem:[%s196] sm:$0xff] %vm675, %v674
      %p677 = scmp.lt.s32.totalorder %s14, 1
      %s678 = scalar_select %p677, %s14, 1
      %s679 = smul.addr %s678, 8
      %s680 = scalar_lea.vmem %s3, %s679
      // Predicated region
      $region33: #{_lambda_.38} parent=31 // pred_check
        %p681 = pneg %p110
      $region34: #{_lambda_.38} parent=31 // pred_check_branch
        %683 = sbr.rel (%p681) target = $region36
      $region35: #{_lambda_.38} parent=31 // pred_region
        _
      $region36: #{_lambda_.38} parent=31 // pred_fallthru
        _
    $region32: #{_lambda_.38} parent=5 // pred_fallthru
      _
    %p684 = scmp.le.s32.totalorder 2, %s9
    // Predicated region
    $region37: #{_lambda_.38} parent=5 // pred_check
      %p685 = pneg %p684
    $region38: #{_lambda_.38} parent=5 // pred_check_branch
      %687 = sbr.rel (%p685) target = $region40
    $region39: #{_lambda_.38} parent=5 // pred_region
      %s688 = ssub.s32 %s9, 2
      // Predicated region
      $region41: #{_lambda_.38} parent=39 // pred_check
        %p689 = pneg %p116
      $region42: #{_lambda_.38} parent=39 // pred_check_branch
        %691 = sbr.rel (%p689) target = $region44
      $region43: #{_lambda_.38} parent=39 // pred_region
        %p692 = scmp.lt.s32.totalorder %s15, 1
        %s693 = scalar_select %p692, %s15, 1
        %s694 = smul.addr %s693, 8
        %s695 = scalar_lea.vmem %s3, %s694
      $region44: #{_lambda_.38} parent=39 // pred_fallthru
        _
    $region40: #{_lambda_.38} parent=5 // pred_fallthru
      _
  $region6: #{_lambda_.38} parent=0 // loop_footer
    %s13 = sadd.s32 1, %s9
  $region7: #{_lambda_.38} parent=0 // loop_footer_branch
    %8 = sbr.rel target = $region3
  $region8: #{_lambda_.38} parent=0 // loop_exit
    _

// kernel: _lambda_.49
$region0: #{_lambda_.49}
  #allocation0 [shape = 'u32[]', space=smem, size = 0x4, offset = 0x4, fixed_abs, tag = 'smem constant byte address 0x4 - core index']
  #allocation1 [shape = 'u32[144,128]{1,0:T(1,128)}', space=vmem, size = 0x12000, scoped, tag = 'internal scratch']
  %s0 = inlined_call_operand.vmem [shape: f32[16,32], index: 0, kind: input, shape index: {}]
  %s1 = inlined_call_operand.vmem [shape: bf16[32,60], index: 1, kind: input, shape index: {}]
  %s2 = inlined_call_operand.vmem [shape: f32[1,60], index: 2, kind: input, shape index: {}]
  %s3 = inlined_call_operand.hbm [shape: f32[16,60], index: 3, kind: output, shape index: {}]
  %s4 = sld [smem:[#allocation0]]
  $region22: #{_lambda_.49} parent=0
    _
  %s6 = ssub.s32 1, %s4
  %s7 = scalar_select 0, %s6, %s4
  $region1: #{_lambda_.49} parent=0
    #allocation2 [shape = 'u8[8192]{0}', space=vmem, size = 0x2000, scoped, tag = 'output window, operand 0, single buffered']
    #allocation3 [shape = 's32[1]{0}', space=sflag, size = 0x4, scoped, tag = 'scoped memory for _lambda_.49']
    %8 = vsyncpa [#allocation3], 0
    // Predicated region
    $region2: #{_lambda_.49} parent=1 // pred_check
      _
    $region3: #{_lambda_.49} parent=1 // pred_check_branch
      %10 = sbr.rel (0) target = $region5
    $region4: #{_lambda_.49} parent=1 // pred_region
      _
    $region5: #{_lambda_.49} parent=1 // pred_fallthru
      _
    // Predicated region
    $region6: #{_lambda_.49} parent=1 // pred_check
      _
    $region7: #{_lambda_.49} parent=1 // pred_check_branch
      %12 = sbr.rel (0) target = $region9
    $region8: #{_lambda_.49} parent=1 // pred_region
      _
    $region9: #{_lambda_.49} parent=1 // pred_fallthru
      _
    // Predicated region
    $region10: #{_lambda_.49} parent=1 // pred_check
      _
    $region11: #{_lambda_.49} parent=1 // pred_check_branch
      %14 = sbr.rel (0) target = $region13
    $region12: #{_lambda_.49} parent=1 // pred_region
      _
    $region13: #{_lambda_.49} parent=1 // pred_fallthru
      _
    %v16 = vld [vmem:[%s0] sm:$0xff]
    %v17 = vld [vmem:[%s0 + $0x8] sm:$0xff]
    %v18 = vpack.c.bf16 %v17, %v16
    %v19 = vld [vmem:[%s1] sm:$0xf]
    %v20 = vld [vmem:[%s1 + $0x4] sm:$0xf]
    %v21 = vld [vmem:[%s1 + $0x8] sm:$0xf]
    %v22 = vld [vmem:[%s1 + $0xc] sm:$0xf]
    %v23 = vld [vmem:[%s2] sm:$0x1]
    %v25 = vlaneseq
    %v26 = vshrl.u32 %v25, 7
    %v27 = vsub.s32 0, %v26
    %v28 = vrot.slane %v23, %v27
    %v34 = vunpack.c.l.b16 %v19
    %v35 = vunpack.c.l.b16 %v20
    %v36 = vunpack.c.l.b16 %v21
    %v37 = vunpack.c.l.b16 %v22
    %v38 = vpack.c.b16 %v35, %v34
    %v39 = vpack.c.b16 %v37, %v36
    %vm42 = vcmask 261120
    %v44 = vsel %vm42, %v18, 0
    %46 = vmatprep.subr.bf16.mxu0 0
    %47 = vmatpush1.bf16.msra.mxu0 0
    %48 = vmatprep.subr.bf16.mxu0 0
    %49 = vmatpush1.bf16.msra.mxu0 0
    %50 = vmatprep.subr.bf16.mxu0 0
    %51 = vmatpush1.bf16.msra.mxu0 0
    %52 = vmatprep.subr.bf16.mxu0 0
    %53 = vmatpush1.bf16.msra.mxu0 0
    %54 = vmatprep.subr.bf16.mxu0 0
    %55 = vmatpush1.bf16.msra.mxu0 0
    %56 = vmatprep.subr.bf16.mxu0 0
    %57 = vmatpush1.bf16.msra.mxu0 0
    %58 = vmatprep.subr.bf16.mxu0 0
    %59 = vmatpush1.bf16.msra.mxu0 %v39
    %60 = vmatprep.subr.bf16.mxu0 0
    %61 = vmatpush1.bf16.msra.mxu0 %v38
    %62 = vmatprep.subr.bf16.mxu0 0
    %63 = vmatpush2.bf16.msra.mxu0 0
    %64 = vmatprep.subr.bf16.mxu0 0
    %65 = vmatpush2.bf16.msra.mxu0 0
    %66 = vmatprep.subr.bf16.mxu0 0
    %67 = vmatpush2.bf16.msra.mxu0 0
    %68 = vmatprep.subr.bf16.mxu0 0
    %69 = vmatpush2.bf16.msra.mxu0 0
    %70 = vmatprep.subr.bf16.mxu0 0
    %71 = vmatpush2.bf16.msra.mxu0 0
    %72 = vmatprep.subr.bf16.mxu0 0
    %73 = vmatpush2.bf16.msra.mxu0 0
    %74 = vmatprep.subr.bf16.mxu0 0
    %75 = vmatpush2.bf16.msra.mxu0 0
    %76 = vmatprep.subr.bf16.mxu0 0
    %77 = vmatpush2.bf16.msra.mxu0 0
    %78 = vmatprep.mubr.bf16.mxu0 0
    %79 = vmatmul.mubr.bf16.gmra.mxu0 %v44
    %v80 = vpop.f32.mrf.mxu0
    %v81 = vadd.f32 %v28, %v80
    %v82 = vpop.f32.mrf.mxu0
    %v83 = vpop.f32.mrf.mxu0
    %v84 = vadd.f32 %v28, %v83
    %v85 = vpop.f32.mrf.mxu0
    %86 = vdwg.mxu0
    %vm87 = vcmask 490496
    %88 = vst.msk [vmem:[#allocation2] sm:$0xff] %vm87, %v81
    %89 = vst.msk [vmem:[#allocation2 + $0x8] sm:$0xff] %vm87, %v84
    // Predicated region
    $region14: #{_lambda_.49} parent=1 // pred_check
      _
    $region15: #{_lambda_.49} parent=1 // pred_check_branch
      %91 = sbr.rel (0) target = $region17
    $region16: #{_lambda_.49} parent=1 // pred_region
      %s93 = ssub.s32 256, 256
      %94 = vsyncadd [#allocation3], %s93
      %s95 = sshll.u32 [#allocation2], 4
      %s96 = int_to_ptr.vmem [resolvable:$true] %s95
      %101 = dma.vmem_to_hbm [thread:$0]  %s96, 256, %s3, [#allocation3], 128, 128, 8
    $region17: #{_lambda_.49} parent=1 // pred_fallthru
      _
    // Predicated region
    $region18: #{_lambda_.49} parent=1 // pred_check
      _
    $region19: #{_lambda_.49} parent=1 // pred_check_branch
      %103 = sbr.rel (0) target = $region21
    $region20: #{_lambda_.49} parent=1 // pred_region
      %104 = dma.done [#allocation3], 256
    $region21: #{_lambda_.49} parent=1 // pred_fallthru
      _
    %105 = vsyncpa [#allocation3], 1

</llo_original>
